<compile_context>
chip_gen: v7x
topology: tpu7x:2x2x1
jax: 0.10.0
libtpu: 0.0.40
codegen_flags: <defaults>
</compile_context>

<pallas_src>
import functools

import jax
import jax.numpy as jnp
import numpy as np
from jax import lax
from jax.experimental import pallas as pl
from jax.experimental.pallas import tpu as pltpu

_LANE = 128
_NEG_INF = -1e30
_VMEM_LIMIT = 48 * 1024 * 1024   # > 32 MiB scoped default, <= physical on v5e/v6e/v7x


def _round_up(x, m):
    return (x + m - 1) // m * m


def _pick_tile(total, candidates=(512, 256, 128)):
    # total is always a multiple of 128, so this always returns a divisor.
    for c in candidates:
        if total % c == 0:
            return c
    return total


# ------------------------- qkv conv as tiled matmul -------------------------

def _qkv_matmul_kernel(x_ref, w_ref, b_ref, o_ref, acc_ref):
    """One (t_hw, t_k) x (t_k, Cqkv) tile of  out = patches @ W + b."""
    @pl.when(pl.program_id(2) == 0)
    def _init():
        acc_ref[...] = jnp.zeros_like(acc_ref)

    acc_ref[...] += jnp.dot(x_ref[...], w_ref[...],
                            preferred_element_type=jnp.float32)

    @pl.when(pl.program_id(2) == pl.num_programs(2) - 1)
    def _finalize():
        o_ref[...] = (acc_ref[...] + b_ref[...]).astype(o_ref.dtype)


def _qkv_matmul(patches, w, b):
    """patches (N, HWp, Kp) bf16, w (Kp, Cqkv) bf16, b (1, Cqkv) f32 -> (N, HWp, Cqkv) bf16."""
    N, HWp, Kp = patches.shape
    cqkv = w.shape[1]
    t_hw = _pick_tile(HWp)
    t_k = _pick_tile(Kp)
    grid = (N, HWp // t_hw, Kp // t_k)
    return pl.pallas_call(
        _qkv_matmul_kernel,
        out_shape=jax.ShapeDtypeStruct((N, HWp, cqkv), jnp.bfloat16),
        grid=grid,
        in_specs=[
            pl.BlockSpec((None, t_hw, t_k), lambda n, j, k: (n, j, k)),
            pl.BlockSpec((t_k, cqkv), lambda n, j, k: (k, 0)),
            pl.BlockSpec((1, cqkv), lambda n, j, k: (0, 0)),
        ],
        out_specs=pl.BlockSpec((None, t_hw, cqkv), lambda n, j, k: (n, j, 0)),
        scratch_shapes=[pltpu.VMEM((t_hw, cqkv), jnp.float32)],
        compiler_params=pltpu.CompilerParams(
            dimension_semantics=("parallel", "parallel", "arbitrary"),
            vmem_limit_bytes=_VMEM_LIMIT),
    )(patches, w, b)


# ------------------- multi-head attention + fused 1x1 conv ------------------

def _attention_kernel(qkv_ref, mask_ref, w_ref, b_ref, o_ref, *,
                      Nh, dk, dkh, dvh, scale, use_mask):
    if use_mask:
        mask = mask_ref[...]                               # (1, HWp) f32: 0 / -1e30
    acc = None
    for h in range(Nh):                                    # static unroll over heads
        qh = qkv_ref[:, h * dkh:(h + 1) * dkh]                     # (HWp, dkh) bf16
        kh = qkv_ref[:, dk + h * dkh:dk + (h + 1) * dkh]           # (HWp, dkh) bf16
        vh = qkv_ref[:, 2 * dk + h * dvh:2 * dk + (h + 1) * dvh]   # (HWp, dvh) bf16

        # logits[q, k] = sum_d qh[q, d] * kh[k, d]  (MXU NT matmul, f32 accumulation)
        logits = lax.dot_general(qh, kh, (((1,), (1,)), ((), ())),
                                 preferred_element_type=jnp.float32)   # (HWp, HWp)
        logits = logits * scale
        if use_mask:
            logits = logits + mask                       # mask padded key positions
        m = jnp.max(logits, axis=-1, keepdims=True)
        e = jnp.exp(logits - m)
        s = jnp.sum(e, axis=-1, keepdims=True)
        p = (e * pl.reciprocal(s, approx=True)).astype(jnp.bfloat16)   # softmax (bf16)

        oh = lax.dot_general(p, vh, (((1,), (0,)), ((), ())),
                             preferred_element_type=jnp.float32)       # (HWp, dvh) f32

        # fused 1x1 out-conv: apply this head's slice of W_out, accumulate the
        # result channel-first -> (dv, HWp) lane-dense output.
        wh = w_ref[:, h * dvh:(h + 1) * dvh]                           # (dv, dvh) bf16
        contrib = lax.dot_general(wh, oh.astype(jnp.bfloat16),
                                  (((1,), (1,)), ((), ())),
                                  preferred_element_type=jnp.float32)  # (dv, HWp)
        acc = contrib if acc is None else acc + contrib

    o_ref[...] = (acc + b_ref[...]).astype(o_ref.dtype)                # (dv, HWp)


def _attention(qkv, mask, w_out, b_out, *, Nh, dk, dv, dkh, dvh, scale,
               use_mask):
    N, HWp, cqkv = qkv.shape
    kernel = functools.partial(_attention_kernel, Nh=Nh, dk=dk, dkh=dkh,
                               dvh=dvh, scale=scale, use_mask=use_mask)
    return pl.pallas_call(
        kernel,
        out_shape=jax.ShapeDtypeStruct((N, dv, HWp), jnp.float32),
        grid=(N,),
        in_specs=[
            pl.BlockSpec((None, HWp, cqkv), lambda n: (n, 0, 0)),
            pl.BlockSpec((1, HWp), lambda n: (0, 0)),
            pl.BlockSpec((dv, dv), lambda n: (0, 0)),
            pl.BlockSpec((dv, 1), lambda n: (0, 0)),
        ],
        out_specs=pl.BlockSpec((None, dv, HWp), lambda n: (n, 0, 0)),
        compiler_params=pltpu.CompilerParams(
            dimension_semantics=("parallel",),
            vmem_limit_bytes=_VMEM_LIMIT),
    )(qkv, mask, w_out, b_out)


# --------------------------------- glue ------------------------------------

def _im2col(x, ksize, stride, padding):
    """x (N, C, H, W) -> patches (N, H_out*W_out, C*k*k); feature order c*k*k + i*k + j."""
    N, C, H, W = x.shape
    x_pad = jnp.pad(x, ((0, 0), (0, 0), (padding, padding), (padding, padding)))
    H_out = (H + 2 * padding - ksize) // stride + 1
    W_out = (W + 2 * padding - ksize) // stride + 1
    cols = []
    for i in range(ksize):
        for j in range(ksize):
            cols.append(x_pad[:, :, i:i + stride * H_out:stride,
                              j:j + stride * W_out:stride])   # (N, C, Ho, Wo)
    patches = jnp.stack(cols, axis=2)                          # (N, C, k*k, Ho, Wo)
    patches = patches.reshape(N, C * ksize * ksize, H_out * W_out)
    patches = jnp.transpose(patches, (0, 2, 1))                # (N, HW, C*k*k)
    return patches, H_out, W_out


def pos_attention_2d(x, params, *, kernel_size, dk, dv, Nh, stride=1,
                     single_head=False):
    """Pallas implementation of M_PosAttention2d.forward; x is NCHW float32."""
    N, C, _, _ = x.shape
    dkh, dvh = dk // Nh, dv // Nh
    padding = (kernel_size - 1) // 2
    cqkv = 2 * dk + dv
    K = C * kernel_size * kernel_size

    # qkv conv: im2col glue + tiled Pallas matmul+bias (bf16 operands, f32 acc)
    patches, H, W = _im2col(x, kernel_size, stride, padding)   # (N, HW, K)
    HW = H * W
    HWp = _round_up(HW, _LANE)
    Kp = _round_up(K, _LANE)
    patches = jnp.pad(patches, ((0, 0), (0, HWp - HW), (0, Kp - K)))
    patches = patches.astype(jnp.bfloat16)
    w_qkv = jnp.pad(params["qkv_w"].reshape(cqkv, K).T,
                    ((0, Kp - K), (0, 0))).astype(jnp.bfloat16)       # (Kp, cqkv)
    b_qkv = params["qkv_b"].reshape(1, cqkv).astype(jnp.float32)
    qkv = _qkv_matmul(patches, w_qkv, b_qkv)                          # (N, HWp, cqkv) bf16

    # additive key mask for padded positions; statically skipped when HW is aligned
    use_mask = (HWp != HW)
    mask = jnp.where(jnp.arange(HWp) < HW, 0.0, _NEG_INF)
    mask = mask.astype(jnp.float32).reshape(1, HWp)

    if single_head:
        # nn.Identity out-proj == fused 1x1 conv with identity weights / zero bias,
        # so both variants share the lane-dense channel-first kernel path.
        w_out = jnp.eye(dv, dtype=jnp.bfloat16)
        b_out = jnp.zeros((dv, 1), jnp.float32)
    else:
        w_out = params["out_w"].reshape(dv, dv).astype(jnp.bfloat16)
        b_out = params["out_b"].reshape(dv, 1).astype(jnp.float32)

    out = _attention(qkv, mask, w_out, b_out, Nh=Nh, dk=dk, dv=dv, dkh=dkh,
                     dvh=dvh, scale=dkh ** (-0.5), use_mask=use_mask)

    out = out[:, :, :HW]                              # (N, dv, HW) channel-first
    return out.reshape(N, dv, H, W)


# ----------------------------- pure-JAX reference ---------------------------

def _reference(x, params, *, kernel_size, dk, dv, Nh, stride=1,
               single_head=False):
    p = (kernel_size - 1) // 2
    dkh, dvh = dk // Nh, dv // Nh
    qkv = lax.conv_general_dilated(
        x, params["qkv_w"], (stride, stride), [(p, p), (p, p)],
        dimension_numbers=("NCHW", "OIHW", "NCHW"))
    qkv = qkv + params["qkv_b"][None, :, None, None]
    N, _, H, W = qkv.shape
    q, k, v = jnp.split(qkv, [dk, 2 * dk], axis=1)
    q = q * dkh ** (-0.5)
    flat_q = q.reshape(N, Nh, dkh, H * W)
    flat_k = k.reshape(N, Nh, dkh, H * W)
    flat_v = v.reshape(N, Nh, dvh, H * W)
    logits = jnp.einsum("nhdq,nhdk->nhqk", flat_q, flat_k)
    weights = jax.nn.softmax(logits, axis=-1)
    oh = jnp.einsum("nhqk,nhdk->nhqd", weights, flat_v)
    o_all = jnp.swapaxes(oh, 2, 3).reshape(N, dv, H, W)
    if single_head:
        return o_all
    out = jnp.einsum("oi,nihw->nohw", params["out_w"].reshape(dv, dv), o_all)
    return out + params["out_b"][None, :, None, None]


# ---------------------------------- main ------------------------------------

if __name__ == "__main__":
    N, C, H, W = 2, 4, 16, 16
    kernel_size, dk, dv, Nh, stride = 3, 8, 8, 2, 1

    key = jax.random.PRNGKey(0)
    k1, k2, k3, k4, k5 = jax.random.split(key, 5)
    x = jax.random.normal(k1, (N, C, H, W), jnp.float32)
    params = {
        "qkv_w": 0.1 * jax.random.normal(
            k2, (2 * dk + dv, C, kernel_size, kernel_size), jnp.float32),
        "qkv_b": 0.1 * jax.random.normal(k3, (2 * dk + dv,), jnp.float32),
        "out_w": 0.1 * jax.random.normal(k4, (dv, dv, 1, 1), jnp.float32),
        "out_b": 0.1 * jax.random.normal(k5, (dv,), jnp.float32),
    }

    # multi-head variant (1x1 out-conv)
    fwd = jax.jit(functools.partial(pos_attention_2d, kernel_size=kernel_size,
                                    dk=dk, dv=dv, Nh=Nh, stride=stride,
                                    single_head=False))
    out = jax.block_until_ready(fwd(x, params))
    assert out.shape == (N, dv, H, W)
    ref = _reference(x, params, kernel_size=kernel_size, dk=dk, dv=dv,
                     Nh=Nh, stride=stride, single_head=False)
    np.testing.assert_allclose(np.asarray(out), np.asarray(ref),
                               atol=5e-3, rtol=5e-3)

    # singleHead variant (nn.Identity out-proj)
    fwd_sh = jax.jit(functools.partial(pos_attention_2d, kernel_size=kernel_size,
                                       dk=dk, dv=dv, Nh=Nh, stride=stride,
                                       single_head=True))
    out_sh = jax.block_until_ready(fwd_sh(x, params))
    assert out_sh.shape == (N, dv, H, W)
    ref_sh = _reference(x, params, kernel_size=kernel_size, dk=dk, dv=dv,
                        Nh=Nh, stride=stride, single_head=True)
    np.testing.assert_allclose(np.asarray(out_sh), np.asarray(ref_sh),
                               atol=1e-2, rtol=1e-2)

    print("KERNEL_OK")
</pallas_src>

<mosaic_0001>
module attributes {stable_mosaic.version = 11 : i64} {
  func.func @_qkv_matmul_kernel(%arg0: i32, %arg1: i32, %arg2: i32, %arg3: memref<1x256x128xbf16, #tpu.memory_space<vmem>>, %arg4: memref<128x24xbf16, #tpu.memory_space<vmem>>, %arg5: memref<1x24xf32, #tpu.memory_space<vmem>>, %arg6: memref<1x256x24xbf16, #tpu.memory_space<vmem>>, %arg7: memref<256x24xf32, #tpu.memory_space<vmem>>) attributes {dimension_semantics = [#tpu.dimension_semantics<parallel>, #tpu.dimension_semantics<parallel>, #tpu.dimension_semantics<arbitrary>], iteration_bounds = array<i64: 2, 1, 1>, scalar_prefetch = 0 : i64, scratch_operands = 1 : i64, tpu.core_type = #tpu.core_type<tc>, window_params = [{transform_indices = @transform_0, window_bounds = array<i64: 1, 256, 128>}, {transform_indices = @transform_1, window_bounds = array<i64: 128, 24>}, {pipeline_mode = #tpu.pipeline_mode<synchronous>, transform_indices = @transform_2, window_bounds = array<i64: 1, 24>}, {transform_indices = @transform_3, window_bounds = array<i64: 1, 256, 24>}]} {
    %c0_i32 = arith.constant 0 : i32
    %0 = arith.cmpi eq, %arg2, %c0_i32 : i32
    %1 = arith.extui %0 : i1 to i32
    %c0_i32_0 = arith.constant 0 : i32
    %2 = arith.cmpi ne, %1, %c0_i32_0 : i32
    scf.if %2 {
      %cst_11 = arith.constant 0.000000e+00 : f32
      %13 = vector.broadcast %cst_11 : f32 to vector<256x24xf32>
      %c0_12 = arith.constant 0 : index
      %c0_13 = arith.constant 0 : index
      %14 = vector.load %arg7[%c0_12, %c0_13] : memref<256x24xf32, #tpu.memory_space<vmem>>, vector<256x24xf32>
      tpu.vector_store %arg7[%c0_12, %c0_13], %13 {strides = array<i32>} : memref<256x24xf32, #tpu.memory_space<vmem>>, vector<256x24xf32>,
    } else {
    }
    %c0 = arith.constant 0 : index
    %c0_1 = arith.constant 0 : index
    %3 = vector.load %arg7[%c0, %c0_1] : memref<256x24xf32, #tpu.memory_space<vmem>>, vector<256x24xf32>
    %c0_2 = arith.constant 0 : index
    %c0_3 = arith.constant 0 : index
    %c0_4 = arith.constant 0 : index
    %4 = vector.load %arg3[%c0_2, %c0_3, %c0_4] : memref<1x256x128xbf16, #tpu.memory_space<vmem>>, vector<1x256x128xbf16>
    %5 = vector.shape_cast %4 : vector<1x256x128xbf16> to vector<256x128xbf16>
    %c0_5 = arith.constant 0 : index
    %c0_6 = arith.constant 0 : index
    %6 = vector.load %arg4[%c0_5, %c0_6] : memref<128x24xbf16, #tpu.memory_space<vmem>>, vector<128x24xbf16>
    %cst = arith.constant dense<0.000000e+00> : vector<256x24xf32>
    %7 = tpu.matmul %5, %6, %cst {dimension_numbers = #tpu.dot_dimension_numbers<[1], [0], [0], [1], [0, 0, 1, 1], [], []>} : vector<256x128xbf16>, vector<128x24xbf16>, vector<256x24xf32> -> vector<256x24xf32>
    %8 = arith.addf %3, %7 : vector<256x24xf32>
    %c0_7 = arith.constant 0 : index
    %c0_8 = arith.constant 0 : index
    %9 = vector.load %arg7[%c0_7, %c0_8] : memref<256x24xf32, #tpu.memory_space<vmem>>, vector<256x24xf32>
    tpu.vector_store %arg7[%c0_7, %c0_8], %8 {strides = array<i32>} : memref<256x24xf32, #tpu.memory_space<vmem>>, vector<256x24xf32>,
    %c0_i32_9 = arith.constant 0 : i32
    %10 = arith.cmpi eq, %arg2, %c0_i32_9 : i32
    %11 = arith.extui %10 : i1 to i32
    %c0_i32_10 = arith.constant 0 : i32
    %12 = arith.cmpi ne, %11, %c0_i32_10 : i32
    scf.if %12 {
      %c0_11 = arith.constant 0 : index
      %c0_12 = arith.constant 0 : index
      %13 = vector.load %arg7[%c0_11, %c0_12] : memref<256x24xf32, #tpu.memory_space<vmem>>, vector<256x24xf32>
      %c0_13 = arith.constant 0 : index
      %c0_14 = arith.constant 0 : index
      %14 = vector.load %arg5[%c0_13, %c0_14] : memref<1x24xf32, #tpu.memory_space<vmem>>, vector<1x24xf32>
      %15 = vector.broadcast %14 : vector<1x24xf32> to vector<256x24xf32>
      %16 = arith.addf %13, %15 : vector<256x24xf32>
      %17 = arith.truncf %16 : vector<256x24xf32> to vector<256x24xbf16>
      %c0_15 = arith.constant 0 : index
      %c0_16 = arith.constant 0 : index
      %c0_17 = arith.constant 0 : index
      %18 = vector.load %arg6[%c0_15, %c0_16, %c0_17] : memref<1x256x24xbf16, #tpu.memory_space<vmem>>, vector<1x256x24xbf16>
      %19 = vector.shape_cast %18 : vector<1x256x24xbf16> to vector<256x24xbf16>
      %20 = vector.shape_cast %17 : vector<256x24xbf16> to vector<1x256x24xbf16>
      tpu.vector_store %arg6[%c0_15, %c0_16, %c0_17], %20 {strides = array<i32>} : memref<1x256x24xbf16, #tpu.memory_space<vmem>>, vector<1x256x24xbf16>,
    } else {
    }
    return
  }
  func.func @transform_0(%arg0: i32, %arg1: i32, %arg2: i32) -> (i32, i32, i32) {
    %c0_i32 = arith.constant 0 : i32
    return %arg0, %arg1, %arg2 : i32, i32, i32
  }
  func.func @transform_1(%arg0: i32, %arg1: i32, %arg2: i32) -> (i32, i32) {
    %c0_i32 = arith.constant 0 : i32
    %c0_i32_0 = arith.constant 0 : i32
    return %arg2, %c0_i32 : i32, i32
  }
  func.func @transform_2(%arg0: i32, %arg1: i32, %arg2: i32) -> (i32, i32) {
    %c0_i32 = arith.constant 0 : i32
    %c0_i32_0 = arith.constant 0 : i32
    %c0_i32_1 = arith.constant 0 : i32
    return %c0_i32, %c0_i32_0 : i32, i32
  }
  func.func @transform_3(%arg0: i32, %arg1: i32, %arg2: i32) -> (i32, i32, i32) {
    %c0_i32 = arith.constant 0 : i32
    %c0_i32_0 = arith.constant 0 : i32
    return %arg0, %arg1, %c0_i32 : i32, i32, i32
  }
}

module attributes {stable_mosaic.version = 11 : i64} {
  func.func @_attention_kernel(%arg0: i32, %arg1: memref<1x256x24xbf16, #tpu.memory_space<vmem>>, %arg2: memref<1x256xf32, #tpu.memory_space<vmem>>, %arg3: memref<8x8xbf16, #tpu.memory_space<vmem>>, %arg4: memref<8x1xf32, #tpu.memory_space<vmem>>, %arg5: memref<1x8x256xf32, #tpu.memory_space<vmem>>) attributes {dimension_semantics = [#tpu.dimension_semantics<parallel>], iteration_bounds = array<i64: 2>, scalar_prefetch = 0 : i64, scratch_operands = 0 : i64, tpu.core_type = #tpu.core_type<tc>, window_params = [{transform_indices = @transform_0, window_bounds = array<i64: 1, 256, 24>}, {pipeline_mode = #tpu.pipeline_mode<synchronous>, transform_indices = @transform_1, window_bounds = array<i64: 1, 256>}, {pipeline_mode = #tpu.pipeline_mode<synchronous>, transform_indices = @transform_2, window_bounds = array<i64: 8, 8>}, {pipeline_mode = #tpu.pipeline_mode<synchronous>, transform_indices = @transform_3, window_bounds = array<i64: 8, 1>}, {transform_indices = @transform_4, window_bounds = array<i64: 1, 8, 256>}]} {
    %c0 = arith.constant 0 : index
    %c0_0 = arith.constant 0 : index
    %c0_1 = arith.constant 0 : index
    %0 = vector.load %arg1[%c0, %c0_0, %c0_1] : memref<1x256x24xbf16, #tpu.memory_space<vmem>>, vector<1x256x4xbf16>
    %1 = vector.shape_cast %0 : vector<1x256x4xbf16> to vector<256x4xbf16>
    %c0_2 = arith.constant 0 : index
    %c0_3 = arith.constant 0 : index
    %c8 = arith.constant 8 : index
    %2 = vector.load %arg1[%c0_2, %c0_3, %c8] : memref<1x256x24xbf16, #tpu.memory_space<vmem>>, vector<1x256x4xbf16>
    %3 = vector.shape_cast %2 : vector<1x256x4xbf16> to vector<256x4xbf16>
    %c0_4 = arith.constant 0 : index
    %c0_5 = arith.constant 0 : index
    %c16 = arith.constant 16 : index
    %4 = vector.load %arg1[%c0_4, %c0_5, %c16] : memref<1x256x24xbf16, #tpu.memory_space<vmem>>, vector<1x256x4xbf16>
    %5 = vector.shape_cast %4 : vector<1x256x4xbf16> to vector<256x4xbf16>
    %cst = arith.constant dense<0.000000e+00> : vector<256x256xf32>
    %6 = tpu.matmul %1, %3, %cst {dimension_numbers = #tpu.dot_dimension_numbers<[1], [1], [0], [0], [0, 0, 1, 0], [], []>} : vector<256x4xbf16>, vector<256x4xbf16>, vector<256x256xf32> -> vector<256x256xf32>
    %cst_6 = arith.constant 5.000000e-01 : f32
    %7 = vector.broadcast %cst_6 : f32 to vector<256x256xf32>
    %8 = arith.mulf %6, %7 : vector<256x256xf32>
    %cst_7 = arith.constant dense<0xFF800000> : vector<256xf32>
    %9 = vector.multi_reduction <maximumf>, %8, %cst_7 [1] : vector<256x256xf32> to vector<256xf32>
    %10 = vector.shape_cast %9 : vector<256xf32> to vector<256x1xf32>
    %11 = vector.broadcast %10 : vector<256x1xf32> to vector<256x256xf32>
    %12 = arith.subf %8, %11 : vector<256x256xf32>
    %13 = math.exp %12 : vector<256x256xf32>
    %cst_8 = arith.constant dense<0.000000e+00> : vector<256xf32>
    %14 = vector.multi_reduction <add>, %13, %cst_8 [1] : vector<256x256xf32> to vector<256xf32>
    %15 = vector.shape_cast %14 : vector<256xf32> to vector<256x1xf32>
    %16 = tpu.reciprocal %15 {approx = true} : vector<256x1xf32> -> vector<256x1xf32>
    %17 = vector.broadcast %16 : vector<256x1xf32> to vector<256x256xf32>
    %18 = arith.mulf %13, %17 : vector<256x256xf32>
    %19 = arith.truncf %18 : vector<256x256xf32> to vector<256x256xbf16>
    %cst_9 = arith.constant dense<0.000000e+00> : vector<256x4xf32>
    %20 = tpu.matmul %19, %5, %cst_9 {dimension_numbers = #tpu.dot_dimension_numbers<[1], [0], [0], [1], [0, 0, 1, 1], [], []>} : vector<256x256xbf16>, vector<256x4xbf16>, vector<256x4xf32> -> vector<256x4xf32>
    %c0_10 = arith.constant 0 : index
    %c0_11 = arith.constant 0 : index
    %21 = vector.load %arg3[%c0_10, %c0_11] : memref<8x8xbf16, #tpu.memory_space<vmem>>, vector<8x4xbf16>
    %22 = arith.truncf %20 : vector<256x4xf32> to vector<256x4xbf16>
    %cst_12 = arith.constant dense<0.000000e+00> : vector<8x256xf32>
    %23 = tpu.matmul %21, %22, %cst_12 {dimension_numbers = #tpu.dot_dimension_numbers<[1], [1], [0], [0], [0, 0, 1, 0], [], []>} : vector<8x4xbf16>, vector<256x4xbf16>, vector<8x256xf32> -> vector<8x256xf32>
    %c0_13 = arith.constant 0 : index
    %c0_14 = arith.constant 0 : index
    %c4 = arith.constant 4 : index
    %24 = vector.load %arg1[%c0_13, %c0_14, %c4] : memref<1x256x24xbf16, #tpu.memory_space<vmem>>, vector<1x256x4xbf16>
    %25 = vector.shape_cast %24 : vector<1x256x4xbf16> to vector<256x4xbf16>
    %c0_15 = arith.constant 0 : index
    %c0_16 = arith.constant 0 : index
    %c12 = arith.constant 12 : index
    %26 = vector.load %arg1[%c0_15, %c0_16, %c12] : memref<1x256x24xbf16, #tpu.memory_space<vmem>>, vector<1x256x4xbf16>
    %27 = vector.shape_cast %26 : vector<1x256x4xbf16> to vector<256x4xbf16>
    %c0_17 = arith.constant 0 : index
    %c0_18 = arith.constant 0 : index
    %c20 = arith.constant 20 : index
    %28 = vector.load %arg1[%c0_17, %c0_18, %c20] : memref<1x256x24xbf16, #tpu.memory_space<vmem>>, vector<1x256x4xbf16>
    %29 = vector.shape_cast %28 : vector<1x256x4xbf16> to vector<256x4xbf16>
    %cst_19 = arith.constant dense<0.000000e+00> : vector<256x256xf32>
    %30 = tpu.matmul %25, %27, %cst_19 {dimension_numbers = #tpu.dot_dimension_numbers<[1], [1], [0], [0], [0, 0, 1, 0], [], []>} : vector<256x4xbf16>, vector<256x4xbf16>, vector<256x256xf32> -> vector<256x256xf32>
    %cst_20 = arith.constant 5.000000e-01 : f32
    %31 = vector.broadcast %cst_20 : f32 to vector<256x256xf32>
    %32 = arith.mulf %30, %31 : vector<256x256xf32>
    %cst_21 = arith.constant dense<0xFF800000> : vector<256xf32>
    %33 = vector.multi_reduction <maximumf>, %32, %cst_21 [1] : vector<256x256xf32> to vector<256xf32>
    %34 = vector.shape_cast %33 : vector<256xf32> to vector<256x1xf32>
    %35 = vector.broadcast %34 : vector<256x1xf32> to vector<256x256xf32>
    %36 = arith.subf %32, %35 : vector<256x256xf32>
    %37 = math.exp %36 : vector<256x256xf32>
    %cst_22 = arith.constant dense<0.000000e+00> : vector<256xf32>
    %38 = vector.multi_reduction <add>, %37, %cst_22 [1] : vector<256x256xf32> to vector<256xf32>
    %39 = vector.shape_cast %38 : vector<256xf32> to vector<256x1xf32>
    %40 = tpu.reciprocal %39 {approx = true} : vector<256x1xf32> -> vector<256x1xf32>
    %41 = vector.broadcast %40 : vector<256x1xf32> to vector<256x256xf32>
    %42 = arith.mulf %37, %41 : vector<256x256xf32>
    %43 = arith.truncf %42 : vector<256x256xf32> to vector<256x256xbf16>
    %cst_23 = arith.constant dense<0.000000e+00> : vector<256x4xf32>
    %44 = tpu.matmul %43, %29, %cst_23 {dimension_numbers = #tpu.dot_dimension_numbers<[1], [0], [0], [1], [0, 0, 1, 1], [], []>} : vector<256x256xbf16>, vector<256x4xbf16>, vector<256x4xf32> -> vector<256x4xf32>
    %c0_24 = arith.constant 0 : index
    %c4_25 = arith.constant 4 : index
    %45 = vector.load %arg3[%c0_24, %c4_25] : memref<8x8xbf16, #tpu.memory_space<vmem>>, vector<8x4xbf16>
    %46 = arith.truncf %44 : vector<256x4xf32> to vector<256x4xbf16>
    %cst_26 = arith.constant dense<0.000000e+00> : vector<8x256xf32>
    %47 = tpu.matmul %45, %46, %cst_26 {dimension_numbers = #tpu.dot_dimension_numbers<[1], [1], [0], [0], [0, 0, 1, 0], [], []>} : vector<8x4xbf16>, vector<256x4xbf16>, vector<8x256xf32> -> vector<8x256xf32>
    %48 = arith.addf %23, %47 : vector<8x256xf32>
    %c0_27 = arith.constant 0 : index
    %c0_28 = arith.constant 0 : index
    %49 = vector.load %arg4[%c0_27, %c0_28] : memref<8x1xf32, #tpu.memory_space<vmem>>, vector<8x1xf32>
    %50 = vector.broadcast %49 : vector<8x1xf32> to vector<8x256xf32>
    %51 = arith.addf %48, %50 : vector<8x256xf32>
    %c0_29 = arith.constant 0 : index
    %c0_30 = arith.constant 0 : index
    %c0_31 = arith.constant 0 : index
    %52 = vector.load %arg5[%c0_29, %c0_30, %c0_31] : memref<1x8x256xf32, #tpu.memory_space<vmem>>, vector<1x8x256xf32>
    %53 = vector.shape_cast %52 : vector<1x8x256xf32> to vector<8x256xf32>
    %54 = vector.shape_cast %51 : vector<8x256xf32> to vector<1x8x256xf32>
    tpu.vector_store %arg5[%c0_29, %c0_30, %c0_31], %54 {strides = array<i32>} : memref<1x8x256xf32, #tpu.memory_space<vmem>>, vector<1x8x256xf32>,
    return
  }
  func.func @transform_0(%arg0: i32) -> (i32, i32, i32) {
    %c0_i32 = arith.constant 0 : i32
    %c0_i32_0 = arith.constant 0 : i32
    %c0_i32_1 = arith.constant 0 : i32
    return %arg0, %c0_i32, %c0_i32_0 : i32, i32, i32
  }
  func.func @transform_1(%arg0: i32) -> (i32, i32) {
    %c0_i32 = arith.constant 0 : i32
    %c0_i32_0 = arith.constant 0 : i32
    %c0_i32_1 = arith.constant 0 : i32
    return %c0_i32, %c0_i32_0 : i32, i32
  }
  func.func @transform_2(%arg0: i32) -> (i32, i32) {
    %c0_i32 = arith.constant 0 : i32
    %c0_i32_0 = arith.constant 0 : i32
    %c0_i32_1 = arith.constant 0 : i32
    return %c0_i32, %c0_i32_0 : i32, i32
  }
  func.func @transform_3(%arg0: i32) -> (i32, i32) {
    %c0_i32 = arith.constant 0 : i32
    %c0_i32_0 = arith.constant 0 : i32
    %c0_i32_1 = arith.constant 0 : i32
    return %c0_i32, %c0_i32_0 : i32, i32
  }
  func.func @transform_4(%arg0: i32) -> (i32, i32, i32) {
    %c0_i32 = arith.constant 0 : i32
    %c0_i32_0 = arith.constant 0 : i32
    %c0_i32_1 = arith.constant 0 : i32
    return %arg0, %c0_i32, %c0_i32_0 : i32, i32, i32
  }
}

</mosaic_0001>

<llo_original>
// kernel: pos_attention_2d.2
$region0: #{pos_attention_2d.2}
  #allocation0 [shape = 'u32[]', space=smem, size = 0x4, offset = 0x4, fixed_abs, tag = 'smem constant byte address 0x4 - core index']
  #allocation1 [shape = 'u32[144,128]{1,0:T(1,128)}', space=vmem, size = 0x12000, scoped, tag = 'internal scratch']
  #allocation2 [shape = 'f32[256,24]{1,0:T(8,128)}', space=vmem, size = 0x20000, scoped, tag = 'scratch operand']
  %s0 = inlined_call_operand.vmem [shape: bf16[2,256,128], index: 0, kind: input, shape index: {}]
  %s1 = inlined_call_operand.vmem [shape: bf16[128,24], index: 1, kind: input, shape index: {}]
  %s2 = inlined_call_operand.vmem [shape: f32[1,24], index: 2, kind: input, shape index: {}]
  %s3 = inlined_call_operand.vmem [shape: bf16[2,256,24], index: 3, kind: output, shape index: {}]
  %s4 = sld [smem:[#allocation0]]
  $region53: #{pos_attention_2d.2} parent=0
    _
  %s6 = ssub.s32 1, %s4
  %s7 = scalar_select 0, %s6, %s4
  loop: start=0, step=1, limit=4
  $region2: #{pos_attention_2d.2} parent=0 // loop_pre_header
    _
  $region3: #{pos_attention_2d.2} parent=0 // loop_header
    %s9 = sphi 0, %s13
    %p10 = scmp.ge.s32.totalorder %s9, 4
    %s16 = sphi 0, %s35
    %s17 = sphi 0, %s31
    %s18 = sphi 0, %s27
    %s19 = sphi 0, %s16
    %s20 = sphi 0, %s17
    %s21 = sphi 0, %s18
    %s22 = sphi 0, %s19
    %s23 = sphi 0, %s20
    %s24 = sphi 0, %s21
    %s42 = sphi 0, %s44
    %s45 = sphi 0, %s42
    %s46 = sphi 0, %s45
    %s62 = sphi 0, %s46
    %s68 = sphi 0, %s70
    %s71 = sphi 0, %s68
    %s72 = sphi 0, %s71
    %s88 = sphi 0, %s72
    %s92 = sphi 0, %s92
    %s94 = sphi 0, %s92
    %s95 = sphi 0, %s94
    %s109 = sphi 0, %s95
    %s117 = sphi 0, %s119
    %s120 = sphi 0, %s117
    %s121 = sphi 0, %s120
    %s137 = sphi 0, %s121
  $region4: #{pos_attention_2d.2} parent=0 // loop_header_branch
    %12 = sbr.rel (%p10) target = $region8
  $region5: #{pos_attention_2d.2} parent=0 // loop_body
    %s14 = ssub.s32 %s9, 1
    %s15 = ssub.s32 %s9, 2
    %s25 = sadd.s32 1, %s18
    %p26 = scmp.ge.s32.totalorder %s25, 1
    %s27 = scalar_select %p26, 0, %s25
    %s28 = sadd.s32 1, %s17
    %s29 = scalar_select %p26, %s28, %s17
    %p30 = scmp.ge.s32.totalorder %s29, 1
    %s31 = scalar_select %p30, 0, %s29
    %s32 = sadd.s32 1, %s16
    %s33 = scalar_select %p30, %s32, %s16
    %p34 = scmp.ge.s32.totalorder %s33, 2
    %s35 = scalar_select %p34, 0, %s33
    %s36 = ssub.s32 %s16, %s35
    %s37 = ssub.s32 %s17, %s31
    %s38 = sor.u32 %s36, %s37
    %s39 = ssub.s32 %s18, %s27
    %s40 = sor.u32 %s38, %s39
    %p41 = scmp.eq.s32.totalorder %s40, 0
    %s43 = sadd.s32 %s42, 1
    %s44 = scalar_select %p41, %s42, %s43
    %p47 = pneg %p41
    %p48 = scmp.eq.s32.totalorder %s9, 1
    %p49 = por %p47, %p48
    %p50 = scmp.ne.s32.totalorder %s42, %s45
    %p51 = scmp.eq.s32.totalorder %s9, 0
    %p52 = por %p50, %p51
    %p53 = scmp.ne.s32.totalorder %s42, %s45
    %p54 = scmp.eq.s32.totalorder %s14, 1
    %p55 = por %p53, %p54
    %p56 = scmp.ne.s32.totalorder %s45, %s46
    %p57 = scmp.eq.s32.totalorder %s14, 0
    %p58 = por %p56, %p57
    %p59 = scmp.ne.s32.totalorder %s45, %s46
    %p60 = scmp.eq.s32.totalorder %s15, 1
    %p61 = por %p59, %p60
    %p63 = scmp.ne.s32.totalorder %s46, %s62
    %p64 = scmp.eq.s32.totalorder %s15, 0
    %p65 = por %p63, %p64
    %s66 = ssub.s32 %s18, %s27
    %p67 = scmp.eq.s32.totalorder %s66, 0
    %s69 = sadd.s32 %s68, 1
    %s70 = scalar_select %p67, %s68, %s69
    %p73 = pneg %p67
    %p74 = scmp.eq.s32.totalorder %s9, 1
    %p75 = por %p73, %p74
    %p76 = scmp.ne.s32.totalorder %s68, %s71
    %p77 = scmp.eq.s32.totalorder %s9, 0
    %p78 = por %p76, %p77
    %p79 = scmp.ne.s32.totalorder %s68, %s71
    %p80 = scmp.eq.s32.totalorder %s14, 1
    %p81 = por %p79, %p80
    %p82 = scmp.ne.s32.totalorder %s71, %s72
    %p83 = scmp.eq.s32.totalorder %s14, 0
    %p84 = por %p82, %p83
    %p85 = scmp.ne.s32.totalorder %s71, %s72
    %p86 = scmp.eq.s32.totalorder %s15, 1
    %p87 = por %p85, %p86
    %p89 = scmp.ne.s32.totalorder %s72, %s88
    %p90 = scmp.eq.s32.totalorder %s15, 0
    %p91 = por %p89, %p90
    %s93 = sadd.s32 %s92, 1
    %p96 = scmp.eq.s32.totalorder %s9, 1
    %p97 = scmp.ne.s32.totalorder %s92, %s94
    %p98 = scmp.eq.s32.totalorder %s9, 0
    %p99 = por %p97, %p98
    %p100 = scmp.ne.s32.totalorder %s92, %s94
    %p101 = scmp.eq.s32.totalorder %s14, 1
    %p102 = por %p100, %p101
    %p103 = scmp.ne.s32.totalorder %s94, %s95
    %p104 = scmp.eq.s32.totalorder %s14, 0
    %p105 = por %p103, %p104
    %p106 = scmp.ne.s32.totalorder %s94, %s95
    %p107 = scmp.eq.s32.totalorder %s15, 1
    %p108 = por %p106, %p107
    %p110 = scmp.ne.s32.totalorder %s95, %s109
    %p111 = scmp.eq.s32.totalorder %s15, 0
    %p112 = por %p110, %p111
    %s113 = ssub.s32 %s16, %s35
    %s114 = ssub.s32 %s17, %s31
    %s115 = sor.u32 %s113, %s114
    %p116 = scmp.eq.s32.totalorder %s115, 0
    %s118 = sadd.s32 %s117, 1
    %s119 = scalar_select %p116, %s117, %s118
    %p122 = pneg %p116
    %p123 = scmp.eq.s32.totalorder %s9, 1
    %p124 = por %p122, %p123
    %p125 = scmp.ne.s32.totalorder %s117, %s120
    %p126 = scmp.eq.s32.totalorder %s9, 0
    %p127 = por %p125, %p126
    %p128 = scmp.ne.s32.totalorder %s117, %s120
    %p129 = scmp.eq.s32.totalorder %s14, 1
    %p130 = por %p128, %p129
    %p131 = scmp.ne.s32.totalorder %s120, %s121
    %p132 = scmp.eq.s32.totalorder %s14, 0
    %p133 = por %p131, %p132
    %p134 = scmp.ne.s32.totalorder %s120, %s121
    %p135 = scmp.eq.s32.totalorder %s15, 1
    %p136 = por %p134, %p135
    %p138 = scmp.ne.s32.totalorder %s121, %s137
    %p139 = scmp.eq.s32.totalorder %s15, 0
    %p140 = por %p138, %p139
    %p141 = scmp.le.s32.totalorder 1, %s9
    %p142 = scmp.lt.s32.totalorder %s9, 3
    %p143 = pnand %p141, %p142
    %p144 = pneg %p143
    // Predicated region
    $region9: #{pos_attention_2d.2} parent=5 // pred_check
      _
    $region10: #{pos_attention_2d.2} parent=5 // pred_check_branch
      %146 = sbr.rel (%p143) target = $region12
    $region11: #{pos_attention_2d.2} parent=5 // pred_region
      %s147 = ssub.s32 %s9, 1
      // Predicated region
      $region13: #{pos_attention_2d.2} parent=11 // pred_check
        %p148 = pneg %p84
      $region14: #{pos_attention_2d.2} parent=11 // pred_check_branch
        %150 = sbr.rel (%p148) target = $region16
      $region15: #{pos_attention_2d.2} parent=11 // pred_region
        %s151 = smul.u32 16, %s21
        %p152 = scmp.lt.s32.totalorder %s151, 15
        %s153 = scalar_select %p152, %s151, 15
        %s154 = smul.addr %s153, 4
        %s155 = scalar_lea.vmem %s1, %s154
        %s156 = smul.u32 16, %s21
      $region16: #{pos_attention_2d.2} parent=11 // pred_fallthru
        _
      // Predicated region
      $region17: #{pos_attention_2d.2} parent=11 // pred_check
        %p157 = pneg %p105
      $region18: #{pos_attention_2d.2} parent=11 // pred_check_branch
        %159 = sbr.rel (%p157) target = $region20
      $region19: #{pos_attention_2d.2} parent=11 // pred_region
        _
      $region20: #{pos_attention_2d.2} parent=11 // pred_fallthru
        _
    $region12: #{pos_attention_2d.2} parent=5 // pred_fallthru
      _
    %p160 = scmp.lt.s32.totalorder %s9, 2
    // Predicated region
    $region21: #{pos_attention_2d.2} parent=5 // pred_check
      %p161 = pneg %p160
    $region22: #{pos_attention_2d.2} parent=5 // pred_check_branch
      %163 = sbr.rel (%p161) target = $region24
    $region23: #{pos_attention_2d.2} parent=5 // pred_region
      // Predicated region
      $region25: #{pos_attention_2d.2} parent=23 // pred_check
        %p164 = pneg %p52
      $region26: #{pos_attention_2d.2} parent=23 // pred_check_branch
        %166 = sbr.rel (%p164) target = $region28
      $region27: #{pos_attention_2d.2} parent=23 // pred_region
        %s167 = smul.u32 32, %s17
        %p168 = scmp.lt.s32.totalorder %s16, 1
        %s169 = scalar_select %p168, %s16, 1
        %p170 = scmp.lt.s32.totalorder %s167, 31
        %s171 = scalar_select %p170, %s167, 31
        %p172 = scmp.lt.s32.totalorder %s18, 0
        %s173 = scalar_select %p172, %s18, 0
        %s174 = sadd.s32 %s173, %s171
        %s175 = smul.addr %s169, 32
        %s176 = sadd.s32 %s174, %s175
        %s177 = smul.addr %s176, 4
        %s178 = scalar_lea.vmem %s0, %s177
        %s179 = smul.u32 32, %s17
      $region28: #{pos_attention_2d.2} parent=23 // pred_fallthru
        _
    $region24: #{pos_attention_2d.2} parent=5 // pred_fallthru
      _
    %p180 = scmp.le.s32.totalorder 1, %s9
    %p181 = scmp.lt.s32.totalorder %s9, 3
    %p182 = pnand %p180, %p181
    %p183 = pneg %p182
    // Predicated region
    $region29: #{pos_attention_2d.2} parent=5 // pred_check
      _
    $region30: #{pos_attention_2d.2} parent=5 // pred_check_branch
      %185 = sbr.rel (%p182) target = $region32
    $region31: #{pos_attention_2d.2} parent=5 // pred_region
      %s186 = ssub.s32 %s9, 1
      %s187 = smul.u32 32, %s20
      %p188 = scmp.lt.s32.totalorder %s19, 1
      %s189 = scalar_select %p188, %s19, 1
      %p190 = scmp.lt.s32.totalorder %s187, 31
      %s191 = scalar_select %p190, %s187, 31
      %p192 = scmp.lt.s32.totalorder %s21, 0
      %s193 = scalar_select %p192, %s21, 0
      %s194 = sadd.s32 %s193, %s191
      %s195 = smul.addr %s189, 32
      %s196 = sadd.s32 %s194, %s195
      %s197 = smul.addr %s196, 4
      %s198 = scalar_lea.vmem %s0, %s197
      %p199 = pneg %p58
      %p200 = pneg %p55
      %s201 = smul.u32 16, %s21
      %p202 = scmp.lt.s32.totalorder %s201, 15
      %s203 = scalar_select %p202, %s201, 15
      %s204 = smul.addr %s203, 4
      %s205 = scalar_lea.vmem %s1, %s204
      %p206 = pneg %p84
      %p207 = pneg %p81
      %p208 = pneg %p105
      %p209 = pneg %p102
      %p210 = pneg %p133
      %p211 = pneg %p130
      %s212 = smul.u32 32, %s20
      %p213 = scmp.lt.s32.totalorder %s19, 1
      %s214 = scalar_select %p213, %s19, 1
      %p215 = scmp.lt.s32.totalorder %s212, 31
      %s216 = scalar_select %p215, %s212, 31
      %s217 = smul.addr %s214, 32
      %s218 = sadd.s32 %s216, %s217
      %s219 = smul.addr %s218, 4
      %s220 = scalar_lea.vmem %s3, %s219
      %s221 = smul.u32 32, %s20
      %p222 = scmp.lt.s32.totalorder %s19, 1
      %s223 = scalar_select %p222, %s19, 1
      %p224 = scmp.lt.s32.totalorder %s221, 31
      %s225 = scalar_select %p224, %s221, 31
      %p226 = scmp.lt.s32.totalorder %s21, 0
      %s227 = scalar_select %p226, %s21, 0
      %s228 = sadd.s32 %s227, %s225
      %s229 = smul.addr %s223, 32
      %s230 = sadd.s32 %s228, %s229
      %s231 = smul.addr %s230, 4
      %s232 = scalar_lea.vmem %s0, %s231
      %s233 = smul.u32 32, %s20
      %s234 = smul.u32 16, %s21
      %p235 = scmp.lt.s32.totalorder %s234, 15
      %s236 = scalar_select %p235, %s234, 15
      %s237 = smul.addr %s236, 4
      %s238 = scalar_lea.vmem %s1, %s237
      %s239 = smul.u32 16, %s21
      %s240 = smul.u32 32, %s20
      %p241 = scmp.lt.s32.totalorder %s19, 1
      %s242 = scalar_select %p241, %s19, 1
      %p243 = scmp.lt.s32.totalorder %s240, 31
      %s244 = scalar_select %p243, %s240, 31
      %s245 = smul.addr %s242, 32
      %s246 = sadd.s32 %s244, %s245
      %s247 = smul.addr %s246, 4
      %s248 = scalar_lea.vmem %s3, %s247
      %s249 = smul.u32 32, %s20
      %p251 = scmp.eq.s32.totalorder %s21, 0
      // Predicated region
      $region33: #{pos_attention_2d.2} parent=31 // pred_check
        %p252 = pneg %p251
      $region34: #{pos_attention_2d.2} parent=31 // pred_check_branch
        %254 = sbr.rel (%p252) target = $region36
      $region35: #{pos_attention_2d.2} parent=31 // pred_region
        %vm255 = vcmask 195584
        %256 = vst.msk [vmem:[#allocation2] sm:$0xff] %vm255, 0.0
        %257 = vst.msk [vmem:[#allocation2 + $0x8] sm:$0xff] %vm255, 0.0
        %258 = vst.msk [vmem:[#allocation2 + $0x10] sm:$0xff] %vm255, 0.0
        %259 = vst.msk [vmem:[#allocation2 + $0x18] sm:$0xff] %vm255, 0.0
        %260 = vst.msk [vmem:[#allocation2 + $0x20] sm:$0xff] %vm255, 0.0
        %261 = vst.msk [vmem:[#allocation2 + $0x28] sm:$0xff] %vm255, 0.0
        %262 = vst.msk [vmem:[#allocation2 + $0x30] sm:$0xff] %vm255, 0.0
        %263 = vst.msk [vmem:[#allocation2 + $0x38] sm:$0xff] %vm255, 0.0
        %264 = vst.msk [vmem:[#allocation2 + $0x40] sm:$0xff] %vm255, 0.0
        %265 = vst.msk [vmem:[#allocation2 + $0x48] sm:$0xff] %vm255, 0.0
        %266 = vst.msk [vmem:[#allocation2 + $0x50] sm:$0xff] %vm255, 0.0
        %267 = vst.msk [vmem:[#allocation2 + $0x58] sm:$0xff] %vm255, 0.0
        %268 = vst.msk [vmem:[#allocation2 + $0x60] sm:$0xff] %vm255, 0.0
        %269 = vst.msk [vmem:[#allocation2 + $0x68] sm:$0xff] %vm255, 0.0
        %270 = vst.msk [vmem:[#allocation2 + $0x70] sm:$0xff] %vm255, 0.0
        %271 = vst.msk [vmem:[#allocation2 + $0x78] sm:$0xff] %vm255, 0.0
        %272 = vst.msk [vmem:[#allocation2 + $0x80] sm:$0xff] %vm255, 0.0
        %273 = vst.msk [vmem:[#allocation2 + $0x88] sm:$0xff] %vm255, 0.0
        %274 = vst.msk [vmem:[#allocation2 + $0x90] sm:$0xff] %vm255, 0.0
        %275 = vst.msk [vmem:[#allocation2 + $0x98] sm:$0xff] %vm255, 0.0
        %276 = vst.msk [vmem:[#allocation2 + $0xa0] sm:$0xff] %vm255, 0.0
        %277 = vst.msk [vmem:[#allocation2 + $0xa8] sm:$0xff] %vm255, 0.0
        %278 = vst.msk [vmem:[#allocation2 + $0xb0] sm:$0xff] %vm255, 0.0
        %279 = vst.msk [vmem:[#allocation2 + $0xb8] sm:$0xff] %vm255, 0.0
        %280 = vst.msk [vmem:[#allocation2 + $0xc0] sm:$0xff] %vm255, 0.0
        %281 = vst.msk [vmem:[#allocation2 + $0xc8] sm:$0xff] %vm255, 0.0
        %282 = vst.msk [vmem:[#allocation2 + $0xd0] sm:$0xff] %vm255, 0.0
        %283 = vst.msk [vmem:[#allocation2 + $0xd8] sm:$0xff] %vm255, 0.0
        %284 = vst.msk [vmem:[#allocation2 + $0xe0] sm:$0xff] %vm255, 0.0
        %285 = vst.msk [vmem:[#allocation2 + $0xe8] sm:$0xff] %vm255, 0.0
        %286 = vst.msk [vmem:[#allocation2 + $0xf0] sm:$0xff] %vm255, 0.0
        %287 = vst.msk [vmem:[#allocation2 + $0xf8] sm:$0xff] %vm255, 0.0
      $region36: #{pos_attention_2d.2} parent=31 // pred_fallthru
        _
      %v288 = vld [vmem:[#allocation2] sm:$0xff]
      %v289 = vld [vmem:[#allocation2 + $0x8] sm:$0xff]
      %v290 = vld [vmem:[#allocation2 + $0x10] sm:$0xff]
      %v291 = vld [vmem:[#allocation2 + $0x18] sm:$0xff]
      %v292 = vld [vmem:[#allocation2 + $0x20] sm:$0xff]
      %v293 = vld [vmem:[#allocation2 + $0x28] sm:$0xff]
      %v294 = vld [vmem:[#allocation2 + $0x30] sm:$0xff]
      %v295 = vld [vmem:[#allocation2 + $0x38] sm:$0xff]
      %v296 = vld [vmem:[#allocation2 + $0x40] sm:$0xff]
      %v297 = vld [vmem:[#allocation2 + $0x48] sm:$0xff]
      %v298 = vld [vmem:[#allocation2 + $0x50] sm:$0xff]
      %v299 = vld [vmem:[#allocation2 + $0x58] sm:$0xff]
      %v300 = vld [vmem:[#allocation2 + $0x60] sm:$0xff]
      %v301 = vld [vmem:[#allocation2 + $0x68] sm:$0xff]
      %v302 = vld [vmem:[#allocation2 + $0x70] sm:$0xff]
      %v303 = vld [vmem:[#allocation2 + $0x78] sm:$0xff]
      %v304 = vld [vmem:[#allocation2 + $0x80] sm:$0xff]
      %v305 = vld [vmem:[#allocation2 + $0x88] sm:$0xff]
      %v306 = vld [vmem:[#allocation2 + $0x90] sm:$0xff]
      %v307 = vld [vmem:[#allocation2 + $0x98] sm:$0xff]
      %v308 = vld [vmem:[#allocation2 + $0xa0] sm:$0xff]
      %v309 = vld [vmem:[#allocation2 + $0xa8] sm:$0xff]
      %v310 = vld [vmem:[#allocation2 + $0xb0] sm:$0xff]
      %v311 = vld [vmem:[#allocation2 + $0xb8] sm:$0xff]
      %v312 = vld [vmem:[#allocation2 + $0xc0] sm:$0xff]
      %v313 = vld [vmem:[#allocation2 + $0xc8] sm:$0xff]
      %v314 = vld [vmem:[#allocation2 + $0xd0] sm:$0xff]
      %v315 = vld [vmem:[#allocation2 + $0xd8] sm:$0xff]
      %v316 = vld [vmem:[#allocation2 + $0xe0] sm:$0xff]
      %v317 = vld [vmem:[#allocation2 + $0xe8] sm:$0xff]
      %v318 = vld [vmem:[#allocation2 + $0xf0] sm:$0xff]
      %v319 = vld [vmem:[#allocation2 + $0xf8] sm:$0xff]
      %v320 = vld [vmem:[%s232] sm:$0xf]
      %v321 = vld [vmem:[%s232 + $0x4] sm:$0xf]
      %v322 = vld [vmem:[%s232 + $0x8] sm:$0xf]
      %v323 = vld [vmem:[%s232 + $0xc] sm:$0xf]
      %v324 = vld [vmem:[%s232 + $0x10] sm:$0xf]
      %v325 = vld [vmem:[%s232 + $0x14] sm:$0xf]
      %v326 = vld [vmem:[%s232 + $0x18] sm:$0xf]
      %v327 = vld [vmem:[%s232 + $0x1c] sm:$0xf]
      %v328 = vld [vmem:[%s232 + $0x20] sm:$0xf]
      %v329 = vld [vmem:[%s232 + $0x24] sm:$0xf]
      %v330 = vld [vmem:[%s232 + $0x28] sm:$0xf]
      %v331 = vld [vmem:[%s232 + $0x2c] sm:$0xf]
      %v332 = vld [vmem:[%s232 + $0x30] sm:$0xf]
      %v333 = vld [vmem:[%s232 + $0x34] sm:$0xf]
      %v334 = vld [vmem:[%s232 + $0x38] sm:$0xf]
      %v335 = vld [vmem:[%s232 + $0x3c] sm:$0xf]
      %v336 = vld [vmem:[%s232 + $0x40] sm:$0xf]
      %v337 = vld [vmem:[%s232 + $0x44] sm:$0xf]
      %v338 = vld [vmem:[%s232 + $0x48] sm:$0xf]
      %v339 = vld [vmem:[%s232 + $0x4c] sm:$0xf]
      %v340 = vld [vmem:[%s232 + $0x50] sm:$0xf]
      %v341 = vld [vmem:[%s232 + $0x54] sm:$0xf]
      %v342 = vld [vmem:[%s232 + $0x58] sm:$0xf]
      %v343 = vld [vmem:[%s232 + $0x5c] sm:$0xf]
      %v344 = vld [vmem:[%s232 + $0x60] sm:$0xf]
      %v345 = vld [vmem:[%s232 + $0x64] sm:$0xf]
      %v346 = vld [vmem:[%s232 + $0x68] sm:$0xf]
      %v347 = vld [vmem:[%s232 + $0x6c] sm:$0xf]
      %v348 = vld [vmem:[%s232 + $0x70] sm:$0xf]
      %v349 = vld [vmem:[%s232 + $0x74] sm:$0xf]
      %v350 = vld [vmem:[%s232 + $0x78] sm:$0xf]
      %v351 = vld [vmem:[%s232 + $0x7c] sm:$0xf]
      %v352 = vld [vmem:[%s238] sm:$0xf]
      %v353 = vld [vmem:[%s238 + $0x4] sm:$0xf]
      %v354 = vld [vmem:[%s238 + $0x8] sm:$0xf]
      %v355 = vld [vmem:[%s238 + $0xc] sm:$0xf]
      %v356 = vld [vmem:[%s238 + $0x10] sm:$0xf]
      %v357 = vld [vmem:[%s238 + $0x14] sm:$0xf]
      %v358 = vld [vmem:[%s238 + $0x18] sm:$0xf]
      %v359 = vld [vmem:[%s238 + $0x1c] sm:$0xf]
      %v360 = vld [vmem:[%s238 + $0x20] sm:$0xf]
      %v361 = vld [vmem:[%s238 + $0x24] sm:$0xf]
      %v362 = vld [vmem:[%s238 + $0x28] sm:$0xf]
      %v363 = vld [vmem:[%s238 + $0x2c] sm:$0xf]
      %v364 = vld [vmem:[%s238 + $0x30] sm:$0xf]
      %v365 = vld [vmem:[%s238 + $0x34] sm:$0xf]
      %v366 = vld [vmem:[%s238 + $0x38] sm:$0xf]
      %v367 = vld [vmem:[%s238 + $0x3c] sm:$0xf]
      %v400 = vunpack.c.l.b16 %v320
      %v401 = vunpack.c.l.b16 %v321
      %v402 = vunpack.c.l.b16 %v322
      %v403 = vunpack.c.l.b16 %v323
      %v404 = vunpack.c.l.b16 %v324
      %v405 = vunpack.c.l.b16 %v325
      %v406 = vunpack.c.l.b16 %v326
      %v407 = vunpack.c.l.b16 %v327
      %v408 = vunpack.c.l.b16 %v328
      %v409 = vunpack.c.l.b16 %v329
      %v410 = vunpack.c.l.b16 %v330
      %v411 = vunpack.c.l.b16 %v331
      %v412 = vunpack.c.l.b16 %v332
      %v413 = vunpack.c.l.b16 %v333
      %v414 = vunpack.c.l.b16 %v334
      %v415 = vunpack.c.l.b16 %v335
      %v416 = vunpack.c.l.b16 %v336
      %v417 = vunpack.c.l.b16 %v337
      %v418 = vunpack.c.l.b16 %v338
      %v419 = vunpack.c.l.b16 %v339
      %v420 = vunpack.c.l.b16 %v340
      %v421 = vunpack.c.l.b16 %v341
      %v422 = vunpack.c.l.b16 %v342
      %v423 = vunpack.c.l.b16 %v343
      %v424 = vunpack.c.l.b16 %v344
      %v425 = vunpack.c.l.b16 %v345
      %v426 = vunpack.c.l.b16 %v346
      %v427 = vunpack.c.l.b16 %v347
      %v428 = vunpack.c.l.b16 %v348
      %v429 = vunpack.c.l.b16 %v349
      %v430 = vunpack.c.l.b16 %v350
      %v431 = vunpack.c.l.b16 %v351
      %v432 = vpack.c.b16 %v401, %v400
      %v433 = vpack.c.b16 %v403, %v402
      %v434 = vpack.c.b16 %v405, %v404
      %v435 = vpack.c.b16 %v407, %v406
      %v436 = vpack.c.b16 %v409, %v408
      %v437 = vpack.c.b16 %v411, %v410
      %v438 = vpack.c.b16 %v413, %v412
      %v439 = vpack.c.b16 %v415, %v414
      %v440 = vpack.c.b16 %v417, %v416
      %v441 = vpack.c.b16 %v419, %v418
      %v442 = vpack.c.b16 %v421, %v420
      %v443 = vpack.c.b16 %v423, %v422
      %v444 = vpack.c.b16 %v425, %v424
      %v445 = vpack.c.b16 %v427, %v426
      %v446 = vpack.c.b16 %v429, %v428
      %v447 = vpack.c.b16 %v431, %v430
      %v480 = vunpack.c.l.b16 %v352
      %v481 = vunpack.c.l.b16 %v353
      %v482 = vunpack.c.l.b16 %v354
      %v483 = vunpack.c.l.b16 %v355
      %v484 = vunpack.c.l.b16 %v356
      %v485 = vunpack.c.l.b16 %v357
      %v486 = vunpack.c.l.b16 %v358
      %v487 = vunpack.c.l.b16 %v359
      %v488 = vunpack.c.l.b16 %v360
      %v489 = vunpack.c.l.b16 %v361
      %v490 = vunpack.c.l.b16 %v362
      %v491 = vunpack.c.l.b16 %v363
      %v492 = vunpack.c.l.b16 %v364
      %v493 = vunpack.c.l.b16 %v365
      %v494 = vunpack.c.l.b16 %v366
      %v495 = vunpack.c.l.b16 %v367
      %v496 = vpack.c.b16 %v481, %v480
      %v497 = vpack.c.b16 %v483, %v482
      %v498 = vpack.c.b16 %v485, %v484
      %v499 = vpack.c.b16 %v487, %v486
      %v500 = vpack.c.b16 %v489, %v488
      %v501 = vpack.c.b16 %v491, %v490
      %v502 = vpack.c.b16 %v493, %v492
      %v503 = vpack.c.b16 %v495, %v494
      %512 = vmatprep.subr.bf16.mxu0 0
      %513 = vmatpush1.bf16.msra.mxu0 %v496
      %514 = vmatprep.subr.bf16.mxu0 0
      %515 = vmatpush1.bf16.msra.mxu0 %v497
      %516 = vmatprep.subr.bf16.mxu0 0
      %517 = vmatpush1.bf16.msra.mxu0 %v498
      %518 = vmatprep.subr.bf16.mxu0 0
      %519 = vmatpush1.bf16.msra.mxu0 %v499
      %520 = vmatprep.subr.bf16.mxu0 0
      %521 = vmatpush1.bf16.msra.mxu0 %v500
      %522 = vmatprep.subr.bf16.mxu0 0
      %523 = vmatpush1.bf16.msra.mxu0 %v501
      %524 = vmatprep.subr.bf16.mxu0 0
      %525 = vmatpush1.bf16.msra.mxu0 %v502
      %526 = vmatprep.subr.bf16.mxu0 0
      %527 = vmatpush1.bf16.msra.mxu0 %v503
      %528 = vmatprep.subr.bf16.mxu0 0
      %529 = vmatpush1.bf16.msra.mxu0 0
      %530 = vmatprep.subr.bf16.mxu0 0
      %531 = vmatpush1.bf16.msra.mxu0 0
      %532 = vmatprep.subr.bf16.mxu0 0
      %533 = vmatpush1.bf16.msra.mxu0 0
      %534 = vmatprep.subr.bf16.mxu0 0
      %535 = vmatpush1.bf16.msra.mxu0 0
      %536 = vmatprep.subr.bf16.mxu0 0
      %537 = vmatpush1.bf16.msra.mxu0 0
      %538 = vmatprep.subr.bf16.mxu0 0
      %539 = vmatpush1.bf16.msra.mxu0 0
      %540 = vmatprep.subr.bf16.mxu0 0
      %541 = vmatpush1.bf16.msra.mxu0 0
      %542 = vmatprep.subr.bf16.mxu0 0
      %543 = vmatpush1.bf16.msra.mxu0 0
      %544 = vmatprep.mubr.bf16.mxu0 0
      %545 = vmatmul.mubr.bf16.gmra.mrb[0].mxu0 %v432
      %v546 = vpop.f32.mrb[0].mxu0
      %v547 = vadd.f32 0.0, %v546
      %v548 = vpop.f32.mrb[0].mxu0
      %v549 = vpop.f32.mrb[0].mxu0
      %v550 = vadd.f32 0.0, %v549
      %v551 = vpop.f32.mrb[0].mxu0
      %552 = vmatprep.mubr.bf16.mxu0 0
      %553 = vmatmul.mubr.bf16.gmra.mrb[0].mxu0 %v433
      %v554 = vpop.f32.mrb[0].mxu0
      %v555 = vadd.f32 0.0, %v554
      %v556 = vpop.f32.mrb[0].mxu0
      %v557 = vpop.f32.mrb[0].mxu0
      %v558 = vadd.f32 0.0, %v557
      %v559 = vpop.f32.mrb[0].mxu0
      %560 = vmatprep.mubr.bf16.mxu0 0
      %561 = vmatmul.mubr.bf16.gmra.mrb[0].mxu0 %v434
      %v562 = vpop.f32.mrb[0].mxu0
      %v563 = vadd.f32 0.0, %v562
      %v564 = vpop.f32.mrb[0].mxu0
      %v565 = vpop.f32.mrb[0].mxu0
      %v566 = vadd.f32 0.0, %v565
      %v567 = vpop.f32.mrb[0].mxu0
      %568 = vmatprep.mubr.bf16.mxu0 0
      %569 = vmatmul.mubr.bf16.gmra.mrb[0].mxu0 %v435
      %v570 = vpop.f32.mrb[0].mxu0
      %v571 = vadd.f32 0.0, %v570
      %v572 = vpop.f32.mrb[0].mxu0
      %v573 = vpop.f32.mrb[0].mxu0
      %v574 = vadd.f32 0.0, %v573
      %v575 = vpop.f32.mrb[0].mxu0
      %576 = vmatprep.mubr.bf16.mxu0 0
      %577 = vmatmul.mubr.bf16.gmra.mrb[0].mxu0 %v436
      %v578 = vpop.f32.mrb[0].mxu0
      %v579 = vadd.f32 0.0, %v578
      %v580 = vpop.f32.mrb[0].mxu0
      %v581 = vpop.f32.mrb[0].mxu0
      %v582 = vadd.f32 0.0, %v581
      %v583 = vpop.f32.mrb[0].mxu0
      %584 = vmatprep.mubr.bf16.mxu0 0
      %585 = vmatmul.mubr.bf16.gmra.mrb[0].mxu0 %v437
      %v586 = vpop.f32.mrb[0].mxu0
      %v587 = vadd.f32 0.0, %v586
      %v588 = vpop.f32.mrb[0].mxu0
      %v589 = vpop.f32.mrb[0].mxu0
      %v590 = vadd.f32 0.0, %v589
      %v591 = vpop.f32.mrb[0].mxu0
      %592 = vmatprep.mubr.bf16.mxu0 0
      %593 = vmatmul.mubr.bf16.gmra.mrb[0].mxu0 %v438
      %v594 = vpop.f32.mrb[0].mxu0
      %v595 = vadd.f32 0.0, %v594
      %v596 = vpop.f32.mrb[0].mxu0
      %v597 = vpop.f32.mrb[0].mxu0
      %v598 = vadd.f32 0.0, %v597
      %v599 = vpop.f32.mrb[0].mxu0
      %600 = vmatprep.mubr.bf16.mxu0 0
      %601 = vmatmul.mubr.bf16.gmra.mrb[0].mxu0 %v439
      %v602 = vpop.f32.mrb[0].mxu0
      %v603 = vadd.f32 0.0, %v602
      %v604 = vpop.f32.mrb[0].mxu0
      %v605 = vpop.f32.mrb[0].mxu0
      %v606 = vadd.f32 0.0, %v605
      %v607 = vpop.f32.mrb[0].mxu0
      %608 = vmatprep.mubr.bf16.mxu0 0
      %609 = vmatmul.mubr.bf16.gmra.mrb[0].mxu0 %v440
      %v610 = vpop.f32.mrb[0].mxu0
      %v611 = vadd.f32 0.0, %v610
      %v612 = vpop.f32.mrb[0].mxu0
      %v613 = vpop.f32.mrb[0].mxu0
      %v614 = vadd.f32 0.0, %v613
      %v615 = vpop.f32.mrb[0].mxu0
      %616 = vmatprep.mubr.bf16.mxu0 0
      %617 = vmatmul.mubr.bf16.gmra.mrb[0].mxu0 %v441
      %v618 = vpop.f32.mrb[0].mxu0
      %v619 = vadd.f32 0.0, %v618
      %v620 = vpop.f32.mrb[0].mxu0
      %v621 = vpop.f32.mrb[0].mxu0
      %v622 = vadd.f32 0.0, %v621
      %v623 = vpop.f32.mrb[0].mxu0
      %624 = vmatprep.mubr.bf16.mxu0 0
      %625 = vmatmul.mubr.bf16.gmra.mrb[0].mxu0 %v442
      %v626 = vpop.f32.mrb[0].mxu0
      %v627 = vadd.f32 0.0, %v626
      %v628 = vpop.f32.mrb[0].mxu0
      %v629 = vpop.f32.mrb[0].mxu0
      %v630 = vadd.f32 0.0, %v629
      %v631 = vpop.f32.mrb[0].mxu0
      %632 = vmatprep.mubr.bf16.mxu0 0
      %633 = vmatmul.mubr.bf16.gmra.mrb[0].mxu0 %v443
      %v634 = vpop.f32.mrb[0].mxu0
      %v635 = vadd.f32 0.0, %v634
      %v636 = vpop.f32.mrb[0].mxu0
      %v637 = vpop.f32.mrb[0].mxu0
      %v638 = vadd.f32 0.0, %v637
      %v639 = vpop.f32.mrb[0].mxu0
      %640 = vmatprep.mubr.bf16.mxu0 0
      %641 = vmatmul.mubr.bf16.gmra.mrb[0].mxu0 %v444
      %v642 = vpop.f32.mrb[0].mxu0
      %v643 = vadd.f32 0.0, %v642
      %v644 = vpop.f32.mrb[0].mxu0
      %v645 = vpop.f32.mrb[0].mxu0
      %v646 = vadd.f32 0.0, %v645
      %v647 = vpop.f32.mrb[0].mxu0
      %648 = vmatprep.mubr.bf16.mxu0 0
      %649 = vmatmul.mubr.bf16.gmra.mrb[0].mxu0 %v445
      %v650 = vpop.f32.mrb[0].mxu0
      %v651 = vadd.f32 0.0, %v650
      %v652 = vpop.f32.mrb[0].mxu0
      %v653 = vpop.f32.mrb[0].mxu0
      %v654 = vadd.f32 0.0, %v653
      %v655 = vpop.f32.mrb[0].mxu0
      %656 = vmatprep.mubr.bf16.mxu0 0
      %657 = vmatmul.mubr.bf16.gmra.mrb[0].mxu0 %v446
      %v658 = vpop.f32.mrb[0].mxu0
      %v659 = vadd.f32 0.0, %v658
      %v660 = vpop.f32.mrb[0].mxu0
      %v661 = vpop.f32.mrb[0].mxu0
      %v662 = vadd.f32 0.0, %v661
      %v663 = vpop.f32.mrb[0].mxu0
      %664 = vmatprep.mubr.bf16.mxu0 0
      %665 = vmatmul.mubr.bf16.gmra.mrb[0].mxu0 %v447
      %v666 = vpop.f32.mrb[0].mxu0
      %v667 = vadd.f32 0.0, %v666
      %v668 = vpop.f32.mrb[0].mxu0
      %v669 = vpop.f32.mrb[0].mxu0
      %v670 = vadd.f32 0.0, %v669
      %v671 = vpop.f32.mrb[0].mxu0
      %672 = vdwg.mxu0
      %v673 = vadd.f32 %v288, %v547
      %v674 = vadd.f32 %v289, %v550
      %v675 = vadd.f32 %v290, %v555
      %v676 = vadd.f32 %v291, %v558
      %v677 = vadd.f32 %v292, %v563
      %v678 = vadd.f32 %v293, %v566
      %v679 = vadd.f32 %v294, %v571
      %v680 = vadd.f32 %v295, %v574
      %v681 = vadd.f32 %v296, %v579
      %v682 = vadd.f32 %v297, %v582
      %v683 = vadd.f32 %v298, %v587
      %v684 = vadd.f32 %v299, %v590
      %v685 = vadd.f32 %v300, %v595
      %v686 = vadd.f32 %v301, %v598
      %v687 = vadd.f32 %v302, %v603
      %v688 = vadd.f32 %v303, %v606
      %v689 = vadd.f32 %v304, %v611
      %v690 = vadd.f32 %v305, %v614
      %v691 = vadd.f32 %v306, %v619
      %v692 = vadd.f32 %v307, %v622
      %v693 = vadd.f32 %v308, %v627
      %v694 = vadd.f32 %v309, %v630
      %v695 = vadd.f32 %v310, %v635
      %v696 = vadd.f32 %v311, %v638
      %v697 = vadd.f32 %v312, %v643
      %v698 = vadd.f32 %v313, %v646
      %v699 = vadd.f32 %v314, %v651
      %v700 = vadd.f32 %v315, %v654
      %v701 = vadd.f32 %v316, %v659
      %v702 = vadd.f32 %v317, %v662
      %v703 = vadd.f32 %v318, %v667
      %v704 = vadd.f32 %v319, %v670
      %vm705 = vcmask 195584
      %706 = vst.msk [vmem:[#allocation2] sm:$0xff] %vm705, %v673
      %707 = vst.msk [vmem:[#allocation2 + $0x8] sm:$0xff] %vm705, %v674
      %708 = vst.msk [vmem:[#allocation2 + $0x10] sm:$0xff] %vm705, %v675
      %709 = vst.msk [vmem:[#allocation2 + $0x18] sm:$0xff] %vm705, %v676
      %710 = vst.msk [vmem:[#allocation2 + $0x20] sm:$0xff] %vm705, %v677
      %711 = vst.msk [vmem:[#allocation2 + $0x28] sm:$0xff] %vm705, %v678
      %712 = vst.msk [vmem:[#allocation2 + $0x30] sm:$0xff] %vm705, %v679
      %713 = vst.msk [vmem:[#allocation2 + $0x38] sm:$0xff] %vm705, %v680
      %714 = vst.msk [vmem:[#allocation2 + $0x40] sm:$0xff] %vm705, %v681
      %715 = vst.msk [vmem:[#allocation2 + $0x48] sm:$0xff] %vm705, %v682
      %716 = vst.msk [vmem:[#allocation2 + $0x50] sm:$0xff] %vm705, %v683
      %717 = vst.msk [vmem:[#allocation2 + $0x58] sm:$0xff] %vm705, %v684
      %718 = vst.msk [vmem:[#allocation2 + $0x60] sm:$0xff] %vm705, %v685
      %719 = vst.msk [vmem:[#allocation2 + $0x68] sm:$0xff] %vm705, %v686
      %720 = vst.msk [vmem:[#allocation2 + $0x70] sm:$0xff] %vm705, %v687
      %721 = vst.msk [vmem:[#allocation2 + $0x78] sm:$0xff] %vm705, %v688
      %722 = vst.msk [vmem:[#allocation2 + $0x80] sm:$0xff] %vm705, %v689
      %723 = vst.msk [vmem:[#allocation2 + $0x88] sm:$0xff] %vm705, %v690
      %724 = vst.msk [vmem:[#allocation2 + $0x90] sm:$0xff] %vm705, %v691
      %725 = vst.msk [vmem:[#allocation2 + $0x98] sm:$0xff] %vm705, %v692
      %726 = vst.msk [vmem:[#allocation2 + $0xa0] sm:$0xff] %vm705, %v693
      %727 = vst.msk [vmem:[#allocation2 + $0xa8] sm:$0xff] %vm705, %v694
      %728 = vst.msk [vmem:[#allocation2 + $0xb0] sm:$0xff] %vm705, %v695
      %729 = vst.msk [vmem:[#allocation2 + $0xb8] sm:$0xff] %vm705, %v696
      %730 = vst.msk [vmem:[#allocation2 + $0xc0] sm:$0xff] %vm705, %v697
      %731 = vst.msk [vmem:[#allocation2 + $0xc8] sm:$0xff] %vm705, %v698
      %732 = vst.msk [vmem:[#allocation2 + $0xd0] sm:$0xff] %vm705, %v699
      %733 = vst.msk [vmem:[#allocation2 + $0xd8] sm:$0xff] %vm705, %v700
      %734 = vst.msk [vmem:[#allocation2 + $0xe0] sm:$0xff] %vm705, %v701
      %735 = vst.msk [vmem:[#allocation2 + $0xe8] sm:$0xff] %vm705, %v702
      %736 = vst.msk [vmem:[#allocation2 + $0xf0] sm:$0xff] %vm705, %v703
      %737 = vst.msk [vmem:[#allocation2 + $0xf8] sm:$0xff] %vm705, %v704
      // Predicated region
      $region37: #{pos_attention_2d.2} parent=31 // pred_check
        %p738 = pneg %p251
      $region38: #{pos_attention_2d.2} parent=31 // pred_check_branch
        %740 = sbr.rel (%p738) target = $region40
      $region39: #{pos_attention_2d.2} parent=31 // pred_region
        %v741 = vld [vmem:[#allocation2] sm:$0xff]
        %v742 = vld [vmem:[#allocation2 + $0x8] sm:$0xff]
        %v743 = vld [vmem:[#allocation2 + $0x10] sm:$0xff]
        %v744 = vld [vmem:[#allocation2 + $0x18] sm:$0xff]
        %v745 = vld [vmem:[#allocation2 + $0x20] sm:$0xff]
        %v746 = vld [vmem:[#allocation2 + $0x28] sm:$0xff]
        %v747 = vld [vmem:[#allocation2 + $0x30] sm:$0xff]
        %v748 = vld [vmem:[#allocation2 + $0x38] sm:$0xff]
        %v749 = vld [vmem:[#allocation2 + $0x40] sm:$0xff]
        %v750 = vld [vmem:[#allocation2 + $0x48] sm:$0xff]
        %v751 = vld [vmem:[#allocation2 + $0x50] sm:$0xff]
        %v752 = vld [vmem:[#allocation2 + $0x58] sm:$0xff]
        %v753 = vld [vmem:[#allocation2 + $0x60] sm:$0xff]
        %v754 = vld [vmem:[#allocation2 + $0x68] sm:$0xff]
        %v755 = vld [vmem:[#allocation2 + $0x70] sm:$0xff]
        %v756 = vld [vmem:[#allocation2 + $0x78] sm:$0xff]
        %v757 = vld [vmem:[#allocation2 + $0x80] sm:$0xff]
        %v758 = vld [vmem:[#allocation2 + $0x88] sm:$0xff]
        %v759 = vld [vmem:[#allocation2 + $0x90] sm:$0xff]
        %v760 = vld [vmem:[#allocation2 + $0x98] sm:$0xff]
        %v761 = vld [vmem:[#allocation2 + $0xa0] sm:$0xff]
        %v762 = vld [vmem:[#allocation2 + $0xa8] sm:$0xff]
        %v763 = vld [vmem:[#allocation2 + $0xb0] sm:$0xff]
        %v764 = vld [vmem:[#allocation2 + $0xb8] sm:$0xff]
        %v765 = vld [vmem:[#allocation2 + $0xc0] sm:$0xff]
        %v766 = vld [vmem:[#allocation2 + $0xc8] sm:$0xff]
        %v767 = vld [vmem:[#allocation2 + $0xd0] sm:$0xff]
        %v768 = vld [vmem:[#allocation2 + $0xd8] sm:$0xff]
        %v769 = vld [vmem:[#allocation2 + $0xe0] sm:$0xff]
        %v770 = vld [vmem:[#allocation2 + $0xe8] sm:$0xff]
        %v771 = vld [vmem:[#allocation2 + $0xf0] sm:$0xff]
        %v772 = vld [vmem:[#allocation2 + $0xf8] sm:$0xff]
        %v773 = vld [vmem:[%s2] sm:$0x1]
        %v775 = vlaneseq
        %v776 = vshrl.u32 %v775, 7
        %v777 = vsub.s32 0, %v776
        %v778 = vrot.slane %v773, %v777
        %v780 = vadd.f32 %v741, %v778
        %v781 = vadd.f32 %v742, %v778
        %v782 = vadd.f32 %v743, %v778
        %v783 = vadd.f32 %v744, %v778
        %v784 = vadd.f32 %v745, %v778
        %v785 = vadd.f32 %v746, %v778
        %v786 = vadd.f32 %v747, %v778
        %v787 = vadd.f32 %v748, %v778
        %v788 = vadd.f32 %v749, %v778
        %v789 = vadd.f32 %v750, %v778
        %v790 = vadd.f32 %v751, %v778
        %v791 = vadd.f32 %v752, %v778
        %v792 = vadd.f32 %v753, %v778
        %v793 = vadd.f32 %v754, %v778
        %v794 = vadd.f32 %v755, %v778
        %v795 = vadd.f32 %v756, %v778
        %v796 = vadd.f32 %v757, %v778
        %v797 = vadd.f32 %v758, %v778
        %v798 = vadd.f32 %v759, %v778
        %v799 = vadd.f32 %v760, %v778
        %v800 = vadd.f32 %v761, %v778
        %v801 = vadd.f32 %v762, %v778
        %v802 = vadd.f32 %v763, %v778
        %v803 = vadd.f32 %v764, %v778
        %v804 = vadd.f32 %v765, %v778
        %v805 = vadd.f32 %v766, %v778
        %v806 = vadd.f32 %v767, %v778
        %v807 = vadd.f32 %v768, %v778
        %v808 = vadd.f32 %v769, %v778
        %v809 = vadd.f32 %v770, %v778
        %v810 = vadd.f32 %v771, %v778
        %v811 = vadd.f32 %v772, %v778
        %v812 = vpack.c.bf16 %v781, %v780
        %v813 = vpack.c.bf16 %v783, %v782
        %v814 = vpack.c.bf16 %v785, %v784
        %v815 = vpack.c.bf16 %v787, %v786
        %v816 = vpack.c.bf16 %v789, %v788
        %v817 = vpack.c.bf16 %v791, %v790
        %v818 = vpack.c.bf16 %v793, %v792
        %v819 = vpack.c.bf16 %v795, %v794
        %v820 = vpack.c.bf16 %v797, %v796
        %v821 = vpack.c.bf16 %v799, %v798
        %v822 = vpack.c.bf16 %v801, %v800
        %v823 = vpack.c.bf16 %v803, %v802
        %v824 = vpack.c.bf16 %v805, %v804
        %v825 = vpack.c.bf16 %v807, %v806
        %v826 = vpack.c.bf16 %v809, %v808
        %v827 = vpack.c.bf16 %v811, %v810
        %v844 = vunpack.c.l.b16 %v812
        %v845 = vunpack.c.h.b16 %v812
        %v846 = vunpack.c.l.b16 %v813
        %v847 = vunpack.c.h.b16 %v813
        %v848 = vunpack.c.l.b16 %v814
        %v849 = vunpack.c.h.b16 %v814
        %v850 = vunpack.c.l.b16 %v815
        %v851 = vunpack.c.h.b16 %v815
        %v852 = vunpack.c.l.b16 %v816
        %v853 = vunpack.c.h.b16 %v816
        %v854 = vunpack.c.l.b16 %v817
        %v855 = vunpack.c.h.b16 %v817
        %v856 = vunpack.c.l.b16 %v818
        %v857 = vunpack.c.h.b16 %v818
        %v858 = vunpack.c.l.b16 %v819
        %v859 = vunpack.c.h.b16 %v819
        %v860 = vunpack.c.l.b16 %v820
        %v861 = vunpack.c.h.b16 %v820
        %v862 = vunpack.c.l.b16 %v821
        %v863 = vunpack.c.h.b16 %v821
        %v864 = vunpack.c.l.b16 %v822
        %v865 = vunpack.c.h.b16 %v822
        %v866 = vunpack.c.l.b16 %v823
        %v867 = vunpack.c.h.b16 %v823
        %v868 = vunpack.c.l.b16 %v824
        %v869 = vunpack.c.h.b16 %v824
        %v870 = vunpack.c.l.b16 %v825
        %v871 = vunpack.c.h.b16 %v825
        %v872 = vunpack.c.l.b16 %v826
        %v873 = vunpack.c.h.b16 %v826
        %v874 = vunpack.c.l.b16 %v827
        %v875 = vunpack.c.h.b16 %v827
        %v876 = vpack.c.b16 %v844, %v844
        %v877 = vpack.c.b16 %v845, %v845
        %v878 = vpack.c.b16 %v846, %v846
        %v879 = vpack.c.b16 %v847, %v847
        %v880 = vpack.c.b16 %v848, %v848
        %v881 = vpack.c.b16 %v849, %v849
        %v882 = vpack.c.b16 %v850, %v850
        %v883 = vpack.c.b16 %v851, %v851
        %v884 = vpack.c.b16 %v852, %v852
        %v885 = vpack.c.b16 %v853, %v853
        %v886 = vpack.c.b16 %v854, %v854
        %v887 = vpack.c.b16 %v855, %v855
        %v888 = vpack.c.b16 %v856, %v856
        %v889 = vpack.c.b16 %v857, %v857
        %v890 = vpack.c.b16 %v858, %v858
        %v891 = vpack.c.b16 %v859, %v859
        %v892 = vpack.c.b16 %v860, %v860
        %v893 = vpack.c.b16 %v861, %v861
        %v894 = vpack.c.b16 %v862, %v862
        %v895 = vpack.c.b16 %v863, %v863
        %v896 = vpack.c.b16 %v864, %v864
        %v897 = vpack.c.b16 %v865, %v865
        %v898 = vpack.c.b16 %v866, %v866
        %v899 = vpack.c.b16 %v867, %v867
        %v900 = vpack.c.b16 %v868, %v868
        %v901 = vpack.c.b16 %v869, %v869
        %v902 = vpack.c.b16 %v870, %v870
        %v903 = vpack.c.b16 %v871, %v871
        %v904 = vpack.c.b16 %v872, %v872
        %v905 = vpack.c.b16 %v873, %v873
        %v906 = vpack.c.b16 %v874, %v874
        %v907 = vpack.c.b16 %v875, %v875
        %vm940 = vcmask 191488
        %941 = vst.msk [vmem:[%s248] sm:$0xf] %vm940, %v876
        %942 = vst.msk [vmem:[%s248 + $0x4] sm:$0xf] %vm940, %v877
        %943 = vst.msk [vmem:[%s248 + $0x8] sm:$0xf] %vm940, %v878
        %944 = vst.msk [vmem:[%s248 + $0xc] sm:$0xf] %vm940, %v879
        %945 = vst.msk [vmem:[%s248 + $0x10] sm:$0xf] %vm940, %v880
        %946 = vst.msk [vmem:[%s248 + $0x14] sm:$0xf] %vm940, %v881
        %947 = vst.msk [vmem:[%s248 + $0x18] sm:$0xf] %vm940, %v882
        %948 = vst.msk [vmem:[%s248 + $0x1c] sm:$0xf] %vm940, %v883
        %949 = vst.msk [vmem:[%s248 + $0x20] sm:$0xf] %vm940, %v884
        %950 = vst.msk [vmem:[%s248 + $0x24] sm:$0xf] %vm940, %v885
        %951 = vst.msk [vmem:[%s248 + $0x28] sm:$0xf] %vm940, %v886
        %952 = vst.msk [vmem:[%s248 + $0x2c] sm:$0xf] %vm940, %v887
        %953 = vst.msk [vmem:[%s248 + $0x30] sm:$0xf] %vm940, %v888
        %954 = vst.msk [vmem:[%s248 + $0x34] sm:$0xf] %vm940, %v889
        %955 = vst.msk [vmem:[%s248 + $0x38] sm:$0xf] %vm940, %v890
        %956 = vst.msk [vmem:[%s248 + $0x3c] sm:$0xf] %vm940, %v891
        %957 = vst.msk [vmem:[%s248 + $0x40] sm:$0xf] %vm940, %v892
        %958 = vst.msk [vmem:[%s248 + $0x44] sm:$0xf] %vm940, %v893
        %959 = vst.msk [vmem:[%s248 + $0x48] sm:$0xf] %vm940, %v894
        %960 = vst.msk [vmem:[%s248 + $0x4c] sm:$0xf] %vm940, %v895
        %961 = vst.msk [vmem:[%s248 + $0x50] sm:$0xf] %vm940, %v896
        %962 = vst.msk [vmem:[%s248 + $0x54] sm:$0xf] %vm940, %v897
        %963 = vst.msk [vmem:[%s248 + $0x58] sm:$0xf] %vm940, %v898
        %964 = vst.msk [vmem:[%s248 + $0x5c] sm:$0xf] %vm940, %v899
        %965 = vst.msk [vmem:[%s248 + $0x60] sm:$0xf] %vm940, %v900
        %966 = vst.msk [vmem:[%s248 + $0x64] sm:$0xf] %vm940, %v901
        %967 = vst.msk [vmem:[%s248 + $0x68] sm:$0xf] %vm940, %v902
        %968 = vst.msk [vmem:[%s248 + $0x6c] sm:$0xf] %vm940, %v903
        %969 = vst.msk [vmem:[%s248 + $0x70] sm:$0xf] %vm940, %v904
        %970 = vst.msk [vmem:[%s248 + $0x74] sm:$0xf] %vm940, %v905
        %971 = vst.msk [vmem:[%s248 + $0x78] sm:$0xf] %vm940, %v906
        %972 = vst.msk [vmem:[%s248 + $0x7c] sm:$0xf] %vm940, %v907
      $region40: #{pos_attention_2d.2} parent=31 // pred_fallthru
        _
      %s973 = smul.u32 32, %s20
      %p974 = scmp.lt.s32.totalorder %s19, 1
      %s975 = scalar_select %p974, %s19, 1
      %p976 = scmp.lt.s32.totalorder %s973, 31
      %s977 = scalar_select %p976, %s973, 31
      %s978 = smul.addr %s975, 32
      %s979 = sadd.s32 %s977, %s978
      %s980 = smul.addr %s979, 4
      %s981 = scalar_lea.vmem %s3, %s980
      // Predicated region
      $region41: #{pos_attention_2d.2} parent=31 // pred_check
        %p982 = pneg %p130
      $region42: #{pos_attention_2d.2} parent=31 // pred_check_branch
        %984 = sbr.rel (%p982) target = $region44
      $region43: #{pos_attention_2d.2} parent=31 // pred_region
        %s985 = smul.u32 32, %s20
      $region44: #{pos_attention_2d.2} parent=31 // pred_fallthru
        _
    $region32: #{pos_attention_2d.2} parent=5 // pred_fallthru
      _
    %p986 = scmp.le.s32.totalorder 2, %s9
    // Predicated region
    $region45: #{pos_attention_2d.2} parent=5 // pred_check
      %p987 = pneg %p986
    $region46: #{pos_attention_2d.2} parent=5 // pred_check_branch
      %989 = sbr.rel (%p987) target = $region48
    $region47: #{pos_attention_2d.2} parent=5 // pred_region
      %s990 = ssub.s32 %s9, 2
      // Predicated region
      $region49: #{pos_attention_2d.2} parent=47 // pred_check
        %p991 = pneg %p136
      $region50: #{pos_attention_2d.2} parent=47 // pred_check_branch
        %993 = sbr.rel (%p991) target = $region52
      $region51: #{pos_attention_2d.2} parent=47 // pred_region
        %s994 = smul.u32 32, %s23
        %p995 = scmp.lt.s32.totalorder %s22, 1
        %s996 = scalar_select %p995, %s22, 1
        %p997 = scmp.lt.s32.totalorder %s994, 31
        %s998 = scalar_select %p997, %s994, 31
        %s999 = smul.addr %s996, 32
        %s1000 = sadd.s32 %s998, %s999
        %s1001 = smul.addr %s1000, 4
        %s1002 = scalar_lea.vmem %s3, %s1001
      $region52: #{pos_attention_2d.2} parent=47 // pred_fallthru
        _
    $region48: #{pos_attention_2d.2} parent=5 // pred_fallthru
      _
  $region6: #{pos_attention_2d.2} parent=0 // loop_footer
    %s13 = sadd.s32 1, %s9
  $region7: #{pos_attention_2d.2} parent=0 // loop_footer_branch
    %8 = sbr.rel target = $region3
  $region8: #{pos_attention_2d.2} parent=0 // loop_exit
    _

// kernel: pos_attention_2d.3
$region0: #{pos_attention_2d.3}
  #allocation0 [shape = 'u32[]', space=smem, size = 0x4, offset = 0x4, fixed_abs, tag = 'smem constant byte address 0x4 - core index']
  #allocation1 [shape = 'u32[144,128]{1,0:T(1,128)}', space=vmem, size = 0x12000, scoped, tag = 'internal scratch']
  %s0 = inlined_call_operand.vmem [shape: bf16[2,256,24], index: 0, kind: input, shape index: {}]
  %s1 = inlined_call_operand.vmem [shape: f32[1,256], index: 1, kind: input, shape index: {}]
  %s2 = inlined_call_operand.vmem [shape: bf16[8,8], index: 2, kind: input, shape index: {}]
  %s3 = inlined_call_operand.vmem [shape: f32[8,1], index: 3, kind: input, shape index: {}]
  %s4 = inlined_call_operand.vmem [shape: f32[2,8,256], index: 4, kind: output, shape index: {}]
  %s5 = sld [smem:[#allocation0]]
  $region49: #{pos_attention_2d.3} parent=0
    _
  %s7 = ssub.s32 1, %s5
  %s8 = scalar_select 0, %s7, %s5
  loop: start=0, step=1, limit=4
  $region2: #{pos_attention_2d.3} parent=0 // loop_pre_header
    _
  $region3: #{pos_attention_2d.3} parent=0 // loop_header
    %s10 = sphi 0, %s14
    %p11 = scmp.ge.s32.totalorder %s10, 4
    %s20 = sphi 0, %s22
    %s23 = sphi 0, %s20
    %s24 = sphi 0, %s23
    %s40 = sphi 0, %s24
    %s44 = sphi 0, %s44
    %s46 = sphi 0, %s44
    %s47 = sphi 0, %s46
    %s61 = sphi 0, %s47
    %s65 = sphi 0, %s65
    %s67 = sphi 0, %s65
    %s68 = sphi 0, %s67
    %s82 = sphi 0, %s68
    %s86 = sphi 0, %s86
    %s88 = sphi 0, %s86
    %s89 = sphi 0, %s88
    %s103 = sphi 0, %s89
    %s109 = sphi 0, %s111
    %s112 = sphi 0, %s109
    %s113 = sphi 0, %s112
    %s129 = sphi 0, %s113
  $region4: #{pos_attention_2d.3} parent=0 // loop_header_branch
    %13 = sbr.rel (%p11) target = $region8
  $region5: #{pos_attention_2d.3} parent=0 // loop_body
    %s15 = ssub.s32 %s10, 1
    %s16 = ssub.s32 %s10, 2
    %s17 = sadd.s32 %s10, 1
    %s18 = ssub.s32 %s10, %s17
    %p19 = scmp.eq.s32.totalorder %s18, 0
    %s21 = sadd.s32 %s20, 1
    %s22 = scalar_select %p19, %s20, %s21
    %p25 = pneg %p19
    %p26 = scmp.eq.s32.totalorder %s10, 1
    %p27 = por %p25, %p26
    %p28 = scmp.ne.s32.totalorder %s20, %s23
    %p29 = scmp.eq.s32.totalorder %s10, 0
    %p30 = por %p28, %p29
    %p31 = scmp.ne.s32.totalorder %s20, %s23
    %p32 = scmp.eq.s32.totalorder %s15, 1
    %p33 = por %p31, %p32
    %p34 = scmp.ne.s32.totalorder %s23, %s24
    %p35 = scmp.eq.s32.totalorder %s15, 0
    %p36 = por %p34, %p35
    %p37 = scmp.ne.s32.totalorder %s23, %s24
    %p38 = scmp.eq.s32.totalorder %s16, 1
    %p39 = por %p37, %p38
    %p41 = scmp.ne.s32.totalorder %s24, %s40
    %p42 = scmp.eq.s32.totalorder %s16, 0
    %p43 = por %p41, %p42
    %s45 = sadd.s32 %s44, 1
    %p48 = scmp.eq.s32.totalorder %s10, 1
    %p49 = scmp.ne.s32.totalorder %s44, %s46
    %p50 = scmp.eq.s32.totalorder %s10, 0
    %p51 = por %p49, %p50
    %p52 = scmp.ne.s32.totalorder %s44, %s46
    %p53 = scmp.eq.s32.totalorder %s15, 1
    %p54 = por %p52, %p53
    %p55 = scmp.ne.s32.totalorder %s46, %s47
    %p56 = scmp.eq.s32.totalorder %s15, 0
    %p57 = por %p55, %p56
    %p58 = scmp.ne.s32.totalorder %s46, %s47
    %p59 = scmp.eq.s32.totalorder %s16, 1
    %p60 = por %p58, %p59
    %p62 = scmp.ne.s32.totalorder %s47, %s61
    %p63 = scmp.eq.s32.totalorder %s16, 0
    %p64 = por %p62, %p63
    %s66 = sadd.s32 %s65, 1
    %p69 = scmp.eq.s32.totalorder %s10, 1
    %p70 = scmp.ne.s32.totalorder %s65, %s67
    %p71 = scmp.eq.s32.totalorder %s10, 0
    %p72 = por %p70, %p71
    %p73 = scmp.ne.s32.totalorder %s65, %s67
    %p74 = scmp.eq.s32.totalorder %s15, 1
    %p75 = por %p73, %p74
    %p76 = scmp.ne.s32.totalorder %s67, %s68
    %p77 = scmp.eq.s32.totalorder %s15, 0
    %p78 = por %p76, %p77
    %p79 = scmp.ne.s32.totalorder %s67, %s68
    %p80 = scmp.eq.s32.totalorder %s16, 1
    %p81 = por %p79, %p80
    %p83 = scmp.ne.s32.totalorder %s68, %s82
    %p84 = scmp.eq.s32.totalorder %s16, 0
    %p85 = por %p83, %p84
    %s87 = sadd.s32 %s86, 1
    %p90 = scmp.eq.s32.totalorder %s10, 1
    %p91 = scmp.ne.s32.totalorder %s86, %s88
    %p92 = scmp.eq.s32.totalorder %s10, 0
    %p93 = por %p91, %p92
    %p94 = scmp.ne.s32.totalorder %s86, %s88
    %p95 = scmp.eq.s32.totalorder %s15, 1
    %p96 = por %p94, %p95
    %p97 = scmp.ne.s32.totalorder %s88, %s89
    %p98 = scmp.eq.s32.totalorder %s15, 0
    %p99 = por %p97, %p98
    %p100 = scmp.ne.s32.totalorder %s88, %s89
    %p101 = scmp.eq.s32.totalorder %s16, 1
    %p102 = por %p100, %p101
    %p104 = scmp.ne.s32.totalorder %s89, %s103
    %p105 = scmp.eq.s32.totalorder %s16, 0
    %p106 = por %p104, %p105
    %s107 = ssub.s32 %s10, %s17
    %p108 = scmp.eq.s32.totalorder %s107, 0
    %s110 = sadd.s32 %s109, 1
    %s111 = scalar_select %p108, %s109, %s110
    %p114 = pneg %p108
    %p115 = scmp.eq.s32.totalorder %s10, 1
    %p116 = por %p114, %p115
    %p117 = scmp.ne.s32.totalorder %s109, %s112
    %p118 = scmp.eq.s32.totalorder %s10, 0
    %p119 = por %p117, %p118
    %p120 = scmp.ne.s32.totalorder %s109, %s112
    %p121 = scmp.eq.s32.totalorder %s15, 1
    %p122 = por %p120, %p121
    %p123 = scmp.ne.s32.totalorder %s112, %s113
    %p124 = scmp.eq.s32.totalorder %s15, 0
    %p125 = por %p123, %p124
    %p126 = scmp.ne.s32.totalorder %s112, %s113
    %p127 = scmp.eq.s32.totalorder %s16, 1
    %p128 = por %p126, %p127
    %p130 = scmp.ne.s32.totalorder %s113, %s129
    %p131 = scmp.eq.s32.totalorder %s16, 0
    %p132 = por %p130, %p131
    %p133 = scmp.le.s32.totalorder 1, %s10
    %p134 = scmp.lt.s32.totalorder %s10, 3
    %p135 = pnand %p133, %p134
    %p136 = pneg %p135
    // Predicated region
    $region9: #{pos_attention_2d.3} parent=5 // pred_check
      _
    $region10: #{pos_attention_2d.3} parent=5 // pred_check_branch
      %138 = sbr.rel (%p135) target = $region12
    $region11: #{pos_attention_2d.3} parent=5 // pred_region
      %s139 = ssub.s32 %s10, 1
      // Predicated region
      $region13: #{pos_attention_2d.3} parent=11 // pred_check
        %p140 = pneg %p57
      $region14: #{pos_attention_2d.3} parent=11 // pred_check_branch
        %142 = sbr.rel (%p140) target = $region16
      $region15: #{pos_attention_2d.3} parent=11 // pred_region
        _
      $region16: #{pos_attention_2d.3} parent=11 // pred_fallthru
        _
      // Predicated region
      $region17: #{pos_attention_2d.3} parent=11 // pred_check
        %p143 = pneg %p78
      $region18: #{pos_attention_2d.3} parent=11 // pred_check_branch
        %145 = sbr.rel (%p143) target = $region20
      $region19: #{pos_attention_2d.3} parent=11 // pred_region
        _
      $region20: #{pos_attention_2d.3} parent=11 // pred_fallthru
        _
      // Predicated region
      $region21: #{pos_attention_2d.3} parent=11 // pred_check
        %p146 = pneg %p99
      $region22: #{pos_attention_2d.3} parent=11 // pred_check_branch
        %148 = sbr.rel (%p146) target = $region24
      $region23: #{pos_attention_2d.3} parent=11 // pred_region
        _
      $region24: #{pos_attention_2d.3} parent=11 // pred_fallthru
        _
    $region12: #{pos_attention_2d.3} parent=5 // pred_fallthru
      _
    %p149 = scmp.lt.s32.totalorder %s10, 2
    // Predicated region
    $region25: #{pos_attention_2d.3} parent=5 // pred_check
      %p150 = pneg %p149
    $region26: #{pos_attention_2d.3} parent=5 // pred_check_branch
      %152 = sbr.rel (%p150) target = $region28
    $region27: #{pos_attention_2d.3} parent=5 // pred_region
      // Predicated region
      $region29: #{pos_attention_2d.3} parent=27 // pred_check
        %p153 = pneg %p30
      $region30: #{pos_attention_2d.3} parent=27 // pred_check_branch
        %155 = sbr.rel (%p153) target = $region32
      $region31: #{pos_attention_2d.3} parent=27 // pred_region
        %p156 = scmp.lt.s32.totalorder %s10, 1
        %s157 = scalar_select %p156, %s10, 1
        %s158 = smul.addr %s157, 32
        %s159 = smul.addr %s158, 4
        %s160 = scalar_lea.vmem %s0, %s159
      $region32: #{pos_attention_2d.3} parent=27 // pred_fallthru
        _
    $region28: #{pos_attention_2d.3} parent=5 // pred_fallthru
      _
    %p161 = scmp.le.s32.totalorder 1, %s10
    %p162 = scmp.lt.s32.totalorder %s10, 3
    %p163 = pnand %p161, %p162
    %p164 = pneg %p163
    // Predicated region
    $region33: #{pos_attention_2d.3} parent=5 // pred_check
      _
    $region34: #{pos_attention_2d.3} parent=5 // pred_check_branch
      %166 = sbr.rel (%p163) target = $region36
    $region35: #{pos_attention_2d.3} parent=5 // pred_region
      %s167 = ssub.s32 %s10, 1
      %p168 = scmp.lt.s32.totalorder %s15, 1
      %s169 = scalar_select %p168, %s15, 1
      %s170 = smul.addr %s169, 32
      %s171 = smul.addr %s170, 4
      %s172 = scalar_lea.vmem %s0, %s171
      %p173 = pneg %p36
      %p174 = pneg %p33
      %p175 = pneg %p57
      %p176 = pneg %p54
      %p177 = pneg %p78
      %p178 = pneg %p75
      %p179 = pneg %p99
      %p180 = pneg %p96
      %p181 = pneg %p125
      %p182 = pneg %p122
      %p183 = scmp.lt.s32.totalorder %s15, 1
      %s184 = scalar_select %p183, %s15, 1
      %s185 = smul.addr %s184, 2
      %s186 = smul.addr %s185, 8
      %s187 = scalar_lea.vmem %s4, %s186
      %p188 = scmp.lt.s32.totalorder %s15, 1
      %s189 = scalar_select %p188, %s15, 1
      %s190 = smul.addr %s189, 32
      %s191 = smul.addr %s190, 4
      %s192 = scalar_lea.vmem %s0, %s191
      %p193 = scmp.lt.s32.totalorder %s15, 1
      %s194 = scalar_select %p193, %s15, 1
      %s195 = smul.addr %s194, 2
      %s196 = smul.addr %s195, 8
      %s197 = scalar_lea.vmem %s4, %s196
      %v199 = vld [vmem:[%s192] sm:$0xf]
      %v200 = vld [vmem:[%s192 + $0x4] sm:$0xf]
      %v201 = vld [vmem:[%s192 + $0x8] sm:$0xf]
      %v202 = vld [vmem:[%s192 + $0xc] sm:$0xf]
      %v203 = vld [vmem:[%s192 + $0x10] sm:$0xf]
      %v204 = vld [vmem:[%s192 + $0x14] sm:$0xf]
      %v205 = vld [vmem:[%s192 + $0x18] sm:$0xf]
      %v206 = vld [vmem:[%s192 + $0x1c] sm:$0xf]
      %v207 = vld [vmem:[%s192 + $0x20] sm:$0xf]
      %v208 = vld [vmem:[%s192 + $0x24] sm:$0xf]
      %v209 = vld [vmem:[%s192 + $0x28] sm:$0xf]
      %v210 = vld [vmem:[%s192 + $0x2c] sm:$0xf]
      %v211 = vld [vmem:[%s192 + $0x30] sm:$0xf]
      %v212 = vld [vmem:[%s192 + $0x34] sm:$0xf]
      %v213 = vld [vmem:[%s192 + $0x38] sm:$0xf]
      %v214 = vld [vmem:[%s192 + $0x3c] sm:$0xf]
      %v215 = vld [vmem:[%s192 + $0x40] sm:$0xf]
      %v216 = vld [vmem:[%s192 + $0x44] sm:$0xf]
      %v217 = vld [vmem:[%s192 + $0x48] sm:$0xf]
      %v218 = vld [vmem:[%s192 + $0x4c] sm:$0xf]
      %v219 = vld [vmem:[%s192 + $0x50] sm:$0xf]
      %v220 = vld [vmem:[%s192 + $0x54] sm:$0xf]
      %v221 = vld [vmem:[%s192 + $0x58] sm:$0xf]
      %v222 = vld [vmem:[%s192 + $0x5c] sm:$0xf]
      %v223 = vld [vmem:[%s192 + $0x60] sm:$0xf]
      %v224 = vld [vmem:[%s192 + $0x64] sm:$0xf]
      %v225 = vld [vmem:[%s192 + $0x68] sm:$0xf]
      %v226 = vld [vmem:[%s192 + $0x6c] sm:$0xf]
      %v227 = vld [vmem:[%s192 + $0x70] sm:$0xf]
      %v228 = vld [vmem:[%s192 + $0x74] sm:$0xf]
      %v229 = vld [vmem:[%s192 + $0x78] sm:$0xf]
      %v230 = vld [vmem:[%s192 + $0x7c] sm:$0xf]
      %v263 = vunpack.c.l.b16 %v199
      %v264 = vunpack.c.l.b16 %v200
      %v265 = vunpack.c.l.b16 %v201
      %v266 = vunpack.c.l.b16 %v202
      %v267 = vunpack.c.l.b16 %v203
      %v268 = vunpack.c.l.b16 %v204
      %v269 = vunpack.c.l.b16 %v205
      %v270 = vunpack.c.l.b16 %v206
      %v271 = vunpack.c.l.b16 %v207
      %v272 = vunpack.c.l.b16 %v208
      %v273 = vunpack.c.l.b16 %v209
      %v274 = vunpack.c.l.b16 %v210
      %v275 = vunpack.c.l.b16 %v211
      %v276 = vunpack.c.l.b16 %v212
      %v277 = vunpack.c.l.b16 %v213
      %v278 = vunpack.c.l.b16 %v214
      %v279 = vunpack.c.l.b16 %v215
      %v280 = vunpack.c.l.b16 %v216
      %v281 = vunpack.c.l.b16 %v217
      %v282 = vunpack.c.l.b16 %v218
      %v283 = vunpack.c.l.b16 %v219
      %v284 = vunpack.c.l.b16 %v220
      %v285 = vunpack.c.l.b16 %v221
      %v286 = vunpack.c.l.b16 %v222
      %v287 = vunpack.c.l.b16 %v223
      %v288 = vunpack.c.l.b16 %v224
      %v289 = vunpack.c.l.b16 %v225
      %v290 = vunpack.c.l.b16 %v226
      %v291 = vunpack.c.l.b16 %v227
      %v292 = vunpack.c.l.b16 %v228
      %v293 = vunpack.c.l.b16 %v229
      %v294 = vunpack.c.l.b16 %v230
      %v295 = vpack.c.b16 %v264, %v263
      %v296 = vpack.c.b16 %v266, %v265
      %v297 = vpack.c.b16 %v268, %v267
      %v298 = vpack.c.b16 %v270, %v269
      %v299 = vpack.c.b16 %v272, %v271
      %v300 = vpack.c.b16 %v274, %v273
      %v301 = vpack.c.b16 %v276, %v275
      %v302 = vpack.c.b16 %v278, %v277
      %v303 = vpack.c.b16 %v280, %v279
      %v304 = vpack.c.b16 %v282, %v281
      %v305 = vpack.c.b16 %v284, %v283
      %v306 = vpack.c.b16 %v286, %v285
      %v307 = vpack.c.b16 %v288, %v287
      %v308 = vpack.c.b16 %v290, %v289
      %v309 = vpack.c.b16 %v292, %v291
      %v310 = vpack.c.b16 %v294, %v293
      %311 = vrot.lane.b32.xlu0 %v295, 120
      %v312 = vpop.permute.xlu0 %311
      %313 = vrot.lane.b32.xlu0 %v296, 120
      %v314 = vpop.permute.xlu0 %313
      %315 = vrot.lane.b32.xlu0 %v297, 120
      %v316 = vpop.permute.xlu0 %315
      %317 = vrot.lane.b32.xlu0 %v298, 120
      %v318 = vpop.permute.xlu0 %317
      %319 = vrot.lane.b32.xlu0 %v299, 120
      %v320 = vpop.permute.xlu0 %319
      %321 = vrot.lane.b32.xlu0 %v300, 120
      %v322 = vpop.permute.xlu0 %321
      %323 = vrot.lane.b32.xlu0 %v301, 120
      %v324 = vpop.permute.xlu0 %323
      %325 = vrot.lane.b32.xlu0 %v302, 120
      %v326 = vpop.permute.xlu0 %325
      %327 = vrot.lane.b32.xlu0 %v303, 120
      %v328 = vpop.permute.xlu0 %327
      %329 = vrot.lane.b32.xlu0 %v304, 120
      %v330 = vpop.permute.xlu0 %329
      %331 = vrot.lane.b32.xlu0 %v305, 120
      %v332 = vpop.permute.xlu0 %331
      %333 = vrot.lane.b32.xlu0 %v306, 120
      %v334 = vpop.permute.xlu0 %333
      %335 = vrot.lane.b32.xlu0 %v307, 120
      %v336 = vpop.permute.xlu0 %335
      %337 = vrot.lane.b32.xlu0 %v308, 120
      %v338 = vpop.permute.xlu0 %337
      %339 = vrot.lane.b32.xlu0 %v309, 120
      %v340 = vpop.permute.xlu0 %339
      %341 = vrot.lane.b32.xlu0 %v310, 120
      %v342 = vpop.permute.xlu0 %341
      %vm343 = vcmask 31744
      %v345 = vsel %vm343, %v295, 0
      %v348 = vsel %vm343, %v296, 0
      %v351 = vsel %vm343, %v297, 0
      %v354 = vsel %vm343, %v298, 0
      %v357 = vsel %vm343, %v299, 0
      %v360 = vsel %vm343, %v300, 0
      %v363 = vsel %vm343, %v301, 0
      %v366 = vsel %vm343, %v302, 0
      %v369 = vsel %vm343, %v303, 0
      %v372 = vsel %vm343, %v304, 0
      %v375 = vsel %vm343, %v305, 0
      %v378 = vsel %vm343, %v306, 0
      %v381 = vsel %vm343, %v307, 0
      %v384 = vsel %vm343, %v308, 0
      %v387 = vsel %vm343, %v309, 0
      %v390 = vsel %vm343, %v310, 0
      %v393 = vsel %vm343, %v312, 0
      %v396 = vsel %vm343, %v314, 0
      %v399 = vsel %vm343, %v316, 0
      %v402 = vsel %vm343, %v318, 0
      %v405 = vsel %vm343, %v320, 0
      %v408 = vsel %vm343, %v322, 0
      %v411 = vsel %vm343, %v324, 0
      %v414 = vsel %vm343, %v326, 0
      %v417 = vsel %vm343, %v328, 0
      %v420 = vsel %vm343, %v330, 0
      %v423 = vsel %vm343, %v332, 0
      %v426 = vsel %vm343, %v334, 0
      %v429 = vsel %vm343, %v336, 0
      %v432 = vsel %vm343, %v338, 0
      %v435 = vsel %vm343, %v340, 0
      %v438 = vsel %vm343, %v342, 0
      %440 = vmatprep.subr.bf16.mxu0 0
      %441 = vmatpush1.bf16.xpose.msra.mxu0 %v393
      %442 = vmatprep.subr.bf16.mxu0 0
      %443 = vmatpush1.bf16.xpose.msra.mxu0 %v396
      %444 = vmatprep.subr.bf16.mxu0 0
      %445 = vmatpush1.bf16.xpose.msra.mxu0 %v399
      %446 = vmatprep.subr.bf16.mxu0 0
      %447 = vmatpush1.bf16.xpose.msra.mxu0 %v402
      %448 = vmatprep.subr.bf16.mxu0 0
      %449 = vmatpush1.bf16.xpose.msra.mxu0 %v405
      %450 = vmatprep.subr.bf16.mxu0 0
      %451 = vmatpush1.bf16.xpose.msra.mxu0 %v408
      %452 = vmatprep.subr.bf16.mxu0 0
      %453 = vmatpush1.bf16.xpose.msra.mxu0 %v411
      %454 = vmatprep.subr.bf16.mxu0 0
      %455 = vmatpush1.bf16.xpose.msra.mxu0 %v414
      %456 = vmatprep.subr.bf16.mxu0 0
      %457 = vmatpush1.bf16.xpose.msra.mxu0 %v417
      %458 = vmatprep.subr.bf16.mxu0 0
      %459 = vmatpush1.bf16.xpose.msra.mxu0 %v420
      %460 = vmatprep.subr.bf16.mxu0 0
      %461 = vmatpush1.bf16.xpose.msra.mxu0 %v423
      %462 = vmatprep.subr.bf16.mxu0 0
      %463 = vmatpush1.bf16.xpose.msra.mxu0 %v426
      %464 = vmatprep.subr.bf16.mxu0 0
      %465 = vmatpush1.bf16.xpose.msra.mxu0 %v429
      %466 = vmatprep.subr.bf16.mxu0 0
      %467 = vmatpush1.bf16.xpose.msra.mxu0 %v432
      %468 = vmatprep.subr.bf16.mxu0 0
      %469 = vmatpush1.bf16.xpose.msra.mxu0 %v435
      %470 = vmatprep.subr.bf16.mxu0 0
      %471 = vmatpush1.bf16.xpose.msra.mxu0 %v438
      %472 = vmatprep.mubr.bf16.mxu0 0
      %473 = vmatmul.mubr.bf16.gmra.mrb[0].mxu0 %v345
      %v474 = vpop.f32.mrb[0].mxu0
      %v475 = vadd.f32 0.0, %v474
      %v476 = vpop.f32.mrb[0].mxu0
      %v477 = vadd.f32 0.0, %v476
      %v478 = vpop.f32.mrb[0].mxu0
      %v479 = vadd.f32 0.0, %v478
      %v480 = vpop.f32.mrb[0].mxu0
      %v481 = vadd.f32 0.0, %v480
      %482 = vmatprep.mubr.bf16.mxu0 0
      %483 = vmatmul.mubr.bf16.gmra.mrb[0].mxu0 %v348
      %v484 = vpop.f32.mrb[0].mxu0
      %v485 = vadd.f32 0.0, %v484
      %v486 = vpop.f32.mrb[0].mxu0
      %v487 = vadd.f32 0.0, %v486
      %v488 = vpop.f32.mrb[0].mxu0
      %v489 = vadd.f32 0.0, %v488
      %v490 = vpop.f32.mrb[0].mxu0
      %v491 = vadd.f32 0.0, %v490
      %492 = vmatprep.mubr.bf16.mxu0 0
      %493 = vmatmul.mubr.bf16.gmra.mrb[0].mxu0 %v351
      %v494 = vpop.f32.mrb[0].mxu0
      %v495 = vadd.f32 0.0, %v494
      %v496 = vpop.f32.mrb[0].mxu0
      %v497 = vadd.f32 0.0, %v496
      %v498 = vpop.f32.mrb[0].mxu0
      %v499 = vadd.f32 0.0, %v498
      %v500 = vpop.f32.mrb[0].mxu0
      %v501 = vadd.f32 0.0, %v500
      %502 = vmatprep.mubr.bf16.mxu0 0
      %503 = vmatmul.mubr.bf16.gmra.mrb[0].mxu0 %v354
      %v504 = vpop.f32.mrb[0].mxu0
      %v505 = vadd.f32 0.0, %v504
      %v506 = vpop.f32.mrb[0].mxu0
      %v507 = vadd.f32 0.0, %v506
      %v508 = vpop.f32.mrb[0].mxu0
      %v509 = vadd.f32 0.0, %v508
      %v510 = vpop.f32.mrb[0].mxu0
      %v511 = vadd.f32 0.0, %v510
      %512 = vmatprep.mubr.bf16.mxu0 0
      %513 = vmatmul.mubr.bf16.gmra.mrb[0].mxu0 %v357
      %v514 = vpop.f32.mrb[0].mxu0
      %v515 = vadd.f32 0.0, %v514
      %v516 = vpop.f32.mrb[0].mxu0
      %v517 = vadd.f32 0.0, %v516
      %v518 = vpop.f32.mrb[0].mxu0
      %v519 = vadd.f32 0.0, %v518
      %v520 = vpop.f32.mrb[0].mxu0
      %v521 = vadd.f32 0.0, %v520
      %522 = vmatprep.mubr.bf16.mxu0 0
      %523 = vmatmul.mubr.bf16.gmra.mrb[0].mxu0 %v360
      %v524 = vpop.f32.mrb[0].mxu0
      %v525 = vadd.f32 0.0, %v524
      %v526 = vpop.f32.mrb[0].mxu0
      %v527 = vadd.f32 0.0, %v526
      %v528 = vpop.f32.mrb[0].mxu0
      %v529 = vadd.f32 0.0, %v528
      %v530 = vpop.f32.mrb[0].mxu0
      %v531 = vadd.f32 0.0, %v530
      %532 = vmatprep.mubr.bf16.mxu0 0
      %533 = vmatmul.mubr.bf16.gmra.mrb[0].mxu0 %v363
      %v534 = vpop.f32.mrb[0].mxu0
      %v535 = vadd.f32 0.0, %v534
      %v536 = vpop.f32.mrb[0].mxu0
      %v537 = vadd.f32 0.0, %v536
      %v538 = vpop.f32.mrb[0].mxu0
      %v539 = vadd.f32 0.0, %v538
      %v540 = vpop.f32.mrb[0].mxu0
      %v541 = vadd.f32 0.0, %v540
      %542 = vmatprep.mubr.bf16.mxu0 0
      %543 = vmatmul.mubr.bf16.gmra.mrb[0].mxu0 %v366
      %v544 = vpop.f32.mrb[0].mxu0
      %v545 = vadd.f32 0.0, %v544
      %v546 = vpop.f32.mrb[0].mxu0
      %v547 = vadd.f32 0.0, %v546
      %v548 = vpop.f32.mrb[0].mxu0
      %v549 = vadd.f32 0.0, %v548
      %v550 = vpop.f32.mrb[0].mxu0
      %v551 = vadd.f32 0.0, %v550
      %552 = vmatprep.mubr.bf16.mxu0 0
      %553 = vmatmul.mubr.bf16.gmra.mrb[0].mxu0 %v369
      %v554 = vpop.f32.mrb[0].mxu0
      %v555 = vadd.f32 0.0, %v554
      %v556 = vpop.f32.mrb[0].mxu0
      %v557 = vadd.f32 0.0, %v556
      %v558 = vpop.f32.mrb[0].mxu0
      %v559 = vadd.f32 0.0, %v558
      %v560 = vpop.f32.mrb[0].mxu0
      %v561 = vadd.f32 0.0, %v560
      %562 = vmatprep.mubr.bf16.mxu0 0
      %563 = vmatmul.mubr.bf16.gmra.mrb[0].mxu0 %v372
      %v564 = vpop.f32.mrb[0].mxu0
      %v565 = vadd.f32 0.0, %v564
      %v566 = vpop.f32.mrb[0].mxu0
      %v567 = vadd.f32 0.0, %v566
      %v568 = vpop.f32.mrb[0].mxu0
      %v569 = vadd.f32 0.0, %v568
      %v570 = vpop.f32.mrb[0].mxu0
      %v571 = vadd.f32 0.0, %v570
      %572 = vmatprep.mubr.bf16.mxu0 0
      %573 = vmatmul.mubr.bf16.gmra.mrb[0].mxu0 %v375
      %v574 = vpop.f32.mrb[0].mxu0
      %v575 = vadd.f32 0.0, %v574
      %v576 = vpop.f32.mrb[0].mxu0
      %v577 = vadd.f32 0.0, %v576
      %v578 = vpop.f32.mrb[0].mxu0
      %v579 = vadd.f32 0.0, %v578
      %v580 = vpop.f32.mrb[0].mxu0
      %v581 = vadd.f32 0.0, %v580
      %582 = vmatprep.mubr.bf16.mxu0 0
      %583 = vmatmul.mubr.bf16.gmra.mrb[0].mxu0 %v378
      %v584 = vpop.f32.mrb[0].mxu0
      %v585 = vadd.f32 0.0, %v584
      %v586 = vpop.f32.mrb[0].mxu0
      %v587 = vadd.f32 0.0, %v586
      %v588 = vpop.f32.mrb[0].mxu0
      %v589 = vadd.f32 0.0, %v588
      %v590 = vpop.f32.mrb[0].mxu0
      %v591 = vadd.f32 0.0, %v590
      %592 = vmatprep.mubr.bf16.mxu0 0
      %593 = vmatmul.mubr.bf16.gmra.mrb[0].mxu0 %v381
      %v594 = vpop.f32.mrb[0].mxu0
      %v595 = vadd.f32 0.0, %v594
      %v596 = vpop.f32.mrb[0].mxu0
      %v597 = vadd.f32 0.0, %v596
      %v598 = vpop.f32.mrb[0].mxu0
      %v599 = vadd.f32 0.0, %v598
      %v600 = vpop.f32.mrb[0].mxu0
      %v601 = vadd.f32 0.0, %v600
      %602 = vmatprep.mubr.bf16.mxu0 0
      %603 = vmatmul.mubr.bf16.gmra.mrb[0].mxu0 %v384
      %v604 = vpop.f32.mrb[0].mxu0
      %v605 = vadd.f32 0.0, %v604
      %v606 = vpop.f32.mrb[0].mxu0
      %v607 = vadd.f32 0.0, %v606
      %v608 = vpop.f32.mrb[0].mxu0
      %v609 = vadd.f32 0.0, %v608
      %v610 = vpop.f32.mrb[0].mxu0
      %v611 = vadd.f32 0.0, %v610
      %612 = vmatprep.mubr.bf16.mxu0 0
      %613 = vmatmul.mubr.bf16.gmra.mrb[0].mxu0 %v387
      %v614 = vpop.f32.mrb[0].mxu0
      %v615 = vadd.f32 0.0, %v614
      %v616 = vpop.f32.mrb[0].mxu0
      %v617 = vadd.f32 0.0, %v616
      %v618 = vpop.f32.mrb[0].mxu0
      %v619 = vadd.f32 0.0, %v618
      %v620 = vpop.f32.mrb[0].mxu0
      %v621 = vadd.f32 0.0, %v620
      %622 = vmatprep.mubr.bf16.mxu0 0
      %623 = vmatmul.mubr.bf16.gmra.mrb[0].mxu0 %v390
      %v624 = vpop.f32.mrb[0].mxu0
      %v625 = vadd.f32 0.0, %v624
      %v626 = vpop.f32.mrb[0].mxu0
      %v627 = vadd.f32 0.0, %v626
      %v628 = vpop.f32.mrb[0].mxu0
      %v629 = vadd.f32 0.0, %v628
      %v630 = vpop.f32.mrb[0].mxu0
      %v631 = vadd.f32 0.0, %v630
      %632 = vdwg.mxu0
      %v633 = vmul.f32 %v475, 0.5
      %v634 = vmul.f32 %v477, 0.5
      %v635 = vmul.f32 %v479, 0.5
      %v636 = vmul.f32 %v481, 0.5
      %v637 = vmul.f32 %v485, 0.5
      %v638 = vmul.f32 %v487, 0.5
      %v639 = vmul.f32 %v489, 0.5
      %v640 = vmul.f32 %v491, 0.5
      %v641 = vmul.f32 %v495, 0.5
      %v642 = vmul.f32 %v497, 0.5
      %v643 = vmul.f32 %v499, 0.5
      %v644 = vmul.f32 %v501, 0.5
      %v645 = vmul.f32 %v505, 0.5
      %v646 = vmul.f32 %v507, 0.5
      %v647 = vmul.f32 %v509, 0.5
      %v648 = vmul.f32 %v511, 0.5
      %v649 = vmul.f32 %v515, 0.5
      %v650 = vmul.f32 %v517, 0.5
      %v651 = vmul.f32 %v519, 0.5
      %v652 = vmul.f32 %v521, 0.5
      %v653 = vmul.f32 %v525, 0.5
      %v654 = vmul.f32 %v527, 0.5
      %v655 = vmul.f32 %v529, 0.5
      %v656 = vmul.f32 %v531, 0.5
      %v657 = vmul.f32 %v535, 0.5
      %v658 = vmul.f32 %v537, 0.5
      %v659 = vmul.f32 %v539, 0.5
      %v660 = vmul.f32 %v541, 0.5
      %v661 = vmul.f32 %v545, 0.5
      %v662 = vmul.f32 %v547, 0.5
      %v663 = vmul.f32 %v549, 0.5
      %v664 = vmul.f32 %v551, 0.5
      %v665 = vmul.f32 %v555, 0.5
      %v666 = vmul.f32 %v557, 0.5
      %v667 = vmul.f32 %v559, 0.5
      %v668 = vmul.f32 %v561, 0.5
      %v669 = vmul.f32 %v565, 0.5
      %v670 = vmul.f32 %v567, 0.5
      %v671 = vmul.f32 %v569, 0.5
      %v672 = vmul.f32 %v571, 0.5
      %v673 = vmul.f32 %v575, 0.5
      %v674 = vmul.f32 %v577, 0.5
      %v675 = vmul.f32 %v579, 0.5
      %v676 = vmul.f32 %v581, 0.5
      %v677 = vmul.f32 %v585, 0.5
      %v678 = vmul.f32 %v587, 0.5
      %v679 = vmul.f32 %v589, 0.5
      %v680 = vmul.f32 %v591, 0.5
      %v681 = vmul.f32 %v595, 0.5
      %v682 = vmul.f32 %v597, 0.5
      %v683 = vmul.f32 %v599, 0.5
      %v684 = vmul.f32 %v601, 0.5
      %v685 = vmul.f32 %v605, 0.5
      %v686 = vmul.f32 %v607, 0.5
      %v687 = vmul.f32 %v609, 0.5
      %v688 = vmul.f32 %v611, 0.5
      %v689 = vmul.f32 %v615, 0.5
      %v690 = vmul.f32 %v617, 0.5
      %v691 = vmul.f32 %v619, 0.5
      %v692 = vmul.f32 %v621, 0.5
      %v693 = vmul.f32 %v625, 0.5
      %v694 = vmul.f32 %v627, 0.5
      %v695 = vmul.f32 %v629, 0.5
      %v696 = vmul.f32 %v631, 0.5
      %v697 = vmax.f32 %v633, %v634
      %698 = vmax.xlane.f32.xlu0 %v697
      %v699 = vpop.xlane.xlu0 %698
      %v700 = vmax.f32 %v635, %v636
      %701 = vmax.xlane.f32.xlu0 %v700
      %v702 = vpop.xlane.xlu0 %701
      %v703 = vmax.f32 %v637, %v638
      %704 = vmax.xlane.f32.xlu0 %v703
      %v705 = vpop.xlane.xlu0 %704
      %v706 = vmax.f32 %v639, %v640
      %707 = vmax.xlane.f32.xlu0 %v706
      %v708 = vpop.xlane.xlu0 %707
      %v709 = vmax.f32 %v641, %v642
      %710 = vmax.xlane.f32.xlu0 %v709
      %v711 = vpop.xlane.xlu0 %710
      %v712 = vmax.f32 %v643, %v644
      %713 = vmax.xlane.f32.xlu0 %v712
      %v714 = vpop.xlane.xlu0 %713
      %v715 = vmax.f32 %v645, %v646
      %716 = vmax.xlane.f32.xlu0 %v715
      %v717 = vpop.xlane.xlu0 %716
      %v718 = vmax.f32 %v647, %v648
      %719 = vmax.xlane.f32.xlu0 %v718
      %v720 = vpop.xlane.xlu0 %719
      %v721 = vmax.f32 %v649, %v650
      %722 = vmax.xlane.f32.xlu0 %v721
      %v723 = vpop.xlane.xlu0 %722
      %v724 = vmax.f32 %v651, %v652
      %725 = vmax.xlane.f32.xlu0 %v724
      %v726 = vpop.xlane.xlu0 %725
      %v727 = vmax.f32 %v653, %v654
      %728 = vmax.xlane.f32.xlu0 %v727
      %v729 = vpop.xlane.xlu0 %728
      %v730 = vmax.f32 %v655, %v656
      %731 = vmax.xlane.f32.xlu0 %v730
      %v732 = vpop.xlane.xlu0 %731
      %v733 = vmax.f32 %v657, %v658
      %734 = vmax.xlane.f32.xlu0 %v733
      %v735 = vpop.xlane.xlu0 %734
      %v736 = vmax.f32 %v659, %v660
      %737 = vmax.xlane.f32.xlu0 %v736
      %v738 = vpop.xlane.xlu0 %737
      %v739 = vmax.f32 %v661, %v662
      %740 = vmax.xlane.f32.xlu0 %v739
      %v741 = vpop.xlane.xlu0 %740
      %v742 = vmax.f32 %v663, %v664
      %743 = vmax.xlane.f32.xlu0 %v742
      %v744 = vpop.xlane.xlu0 %743
      %v745 = vmax.f32 %v665, %v666
      %746 = vmax.xlane.f32.xlu0 %v745
      %v747 = vpop.xlane.xlu0 %746
      %v748 = vmax.f32 %v667, %v668
      %749 = vmax.xlane.f32.xlu0 %v748
      %v750 = vpop.xlane.xlu0 %749
      %v751 = vmax.f32 %v669, %v670
      %752 = vmax.xlane.f32.xlu0 %v751
      %v753 = vpop.xlane.xlu0 %752
      %v754 = vmax.f32 %v671, %v672
      %755 = vmax.xlane.f32.xlu0 %v754
      %v756 = vpop.xlane.xlu0 %755
      %v757 = vmax.f32 %v673, %v674
      %758 = vmax.xlane.f32.xlu0 %v757
      %v759 = vpop.xlane.xlu0 %758
      %v760 = vmax.f32 %v675, %v676
      %761 = vmax.xlane.f32.xlu0 %v760
      %v762 = vpop.xlane.xlu0 %761
      %v763 = vmax.f32 %v677, %v678
      %764 = vmax.xlane.f32.xlu0 %v763
      %v765 = vpop.xlane.xlu0 %764
      %v766 = vmax.f32 %v679, %v680
      %767 = vmax.xlane.f32.xlu0 %v766
      %v768 = vpop.xlane.xlu0 %767
      %v769 = vmax.f32 %v681, %v682
      %770 = vmax.xlane.f32.xlu0 %v769
      %v771 = vpop.xlane.xlu0 %770
      %v772 = vmax.f32 %v683, %v684
      %773 = vmax.xlane.f32.xlu0 %v772
      %v774 = vpop.xlane.xlu0 %773
      %v775 = vmax.f32 %v685, %v686
      %776 = vmax.xlane.f32.xlu0 %v775
      %v777 = vpop.xlane.xlu0 %776
      %v778 = vmax.f32 %v687, %v688
      %779 = vmax.xlane.f32.xlu0 %v778
      %v780 = vpop.xlane.xlu0 %779
      %v781 = vmax.f32 %v689, %v690
      %782 = vmax.xlane.f32.xlu0 %v781
      %v783 = vpop.xlane.xlu0 %782
      %v784 = vmax.f32 %v691, %v692
      %785 = vmax.xlane.f32.xlu0 %v784
      %v786 = vpop.xlane.xlu0 %785
      %v787 = vmax.f32 %v693, %v694
      %788 = vmax.xlane.f32.xlu0 %v787
      %v789 = vpop.xlane.xlu0 %788
      %v790 = vmax.f32 %v695, %v696
      %791 = vmax.xlane.f32.xlu0 %v790
      %v792 = vpop.xlane.xlu0 %791
      %v793 = vsub.f32 %v633, %v699
      %v794 = vsub.f32 %v634, %v699
      %v795 = vsub.f32 %v635, %v702
      %v796 = vsub.f32 %v636, %v702
      %v797 = vsub.f32 %v637, %v705
      %v798 = vsub.f32 %v638, %v705
      %v799 = vsub.f32 %v639, %v708
      %v800 = vsub.f32 %v640, %v708
      %v801 = vsub.f32 %v641, %v711
      %v802 = vsub.f32 %v642, %v711
      %v803 = vsub.f32 %v643, %v714
      %v804 = vsub.f32 %v644, %v714
      %v805 = vsub.f32 %v645, %v717
      %v806 = vsub.f32 %v646, %v717
      %v807 = vsub.f32 %v647, %v720
      %v808 = vsub.f32 %v648, %v720
      %v809 = vsub.f32 %v649, %v723
      %v810 = vsub.f32 %v650, %v723
      %v811 = vsub.f32 %v651, %v726
      %v812 = vsub.f32 %v652, %v726
      %v813 = vsub.f32 %v653, %v729
      %v814 = vsub.f32 %v654, %v729
      %v815 = vsub.f32 %v655, %v732
      %v816 = vsub.f32 %v656, %v732
      %v817 = vsub.f32 %v657, %v735
      %v818 = vsub.f32 %v658, %v735
      %v819 = vsub.f32 %v659, %v738
      %v820 = vsub.f32 %v660, %v738
      %v821 = vsub.f32 %v661, %v741
      %v822 = vsub.f32 %v662, %v741
      %v823 = vsub.f32 %v663, %v744
      %v824 = vsub.f32 %v664, %v744
      %v825 = vsub.f32 %v665, %v747
      %v826 = vsub.f32 %v666, %v747
      %v827 = vsub.f32 %v667, %v750
      %v828 = vsub.f32 %v668, %v750
      %v829 = vsub.f32 %v669, %v753
      %v830 = vsub.f32 %v670, %v753
      %v831 = vsub.f32 %v671, %v756
      %v832 = vsub.f32 %v672, %v756
      %v833 = vsub.f32 %v673, %v759
      %v834 = vsub.f32 %v674, %v759
      %v835 = vsub.f32 %v675, %v762
      %v836 = vsub.f32 %v676, %v762
      %v837 = vsub.f32 %v677, %v765
      %v838 = vsub.f32 %v678, %v765
      %v839 = vsub.f32 %v679, %v768
      %v840 = vsub.f32 %v680, %v768
      %v841 = vsub.f32 %v681, %v771
      %v842 = vsub.f32 %v682, %v771
      %v843 = vsub.f32 %v683, %v774
      %v844 = vsub.f32 %v684, %v774
      %v845 = vsub.f32 %v685, %v777
      %v846 = vsub.f32 %v686, %v777
      %v847 = vsub.f32 %v687, %v780
      %v848 = vsub.f32 %v688, %v780
      %v849 = vsub.f32 %v689, %v783
      %v850 = vsub.f32 %v690, %v783
      %v851 = vsub.f32 %v691, %v786
      %v852 = vsub.f32 %v692, %v786
      %v853 = vsub.f32 %v693, %v789
      %v854 = vsub.f32 %v694, %v789
      %v855 = vsub.f32 %v695, %v792
      %v856 = vsub.f32 %v696, %v792
      %v857 = vmul.f32 %v793, 1.442695
      %v858 = vpow.pop %v857
      %v859 = vmul.f32 %v794, 1.442695
      %v860 = vpow.pop %v859
      %v861 = vmul.f32 %v795, 1.442695
      %v862 = vpow.pop %v861
      %v863 = vmul.f32 %v796, 1.442695
      %v864 = vpow.pop %v863
      %v865 = vmul.f32 %v797, 1.442695
      %v866 = vpow.pop %v865
      %v867 = vmul.f32 %v798, 1.442695
      %v868 = vpow.pop %v867
      %v869 = vmul.f32 %v799, 1.442695
      %v870 = vpow.pop %v869
      %v871 = vmul.f32 %v800, 1.442695
      %v872 = vpow.pop %v871
      %v873 = vmul.f32 %v801, 1.442695
      %v874 = vpow.pop %v873
      %v875 = vmul.f32 %v802, 1.442695
      %v876 = vpow.pop %v875
      %v877 = vmul.f32 %v803, 1.442695
      %v878 = vpow.pop %v877
      %v879 = vmul.f32 %v804, 1.442695
      %v880 = vpow.pop %v879
      %v881 = vmul.f32 %v805, 1.442695
      %v882 = vpow.pop %v881
      %v883 = vmul.f32 %v806, 1.442695
      %v884 = vpow.pop %v883
      %v885 = vmul.f32 %v807, 1.442695
      %v886 = vpow.pop %v885
      %v887 = vmul.f32 %v808, 1.442695
      %v888 = vpow.pop %v887
      %v889 = vmul.f32 %v809, 1.442695
      %v890 = vpow.pop %v889
      %v891 = vmul.f32 %v810, 1.442695
      %v892 = vpow.pop %v891
      %v893 = vmul.f32 %v811, 1.442695
      %v894 = vpow.pop %v893
      %v895 = vmul.f32 %v812, 1.442695
      %v896 = vpow.pop %v895
      %v897 = vmul.f32 %v813, 1.442695
      %v898 = vpow.pop %v897
      %v899 = vmul.f32 %v814, 1.442695
      %v900 = vpow.pop %v899
      %v901 = vmul.f32 %v815, 1.442695
      %v902 = vpow.pop %v901
      %v903 = vmul.f32 %v816, 1.442695
      %v904 = vpow.pop %v903
      %v905 = vmul.f32 %v817, 1.442695
      %v906 = vpow.pop %v905
      %v907 = vmul.f32 %v818, 1.442695
      %v908 = vpow.pop %v907
      %v909 = vmul.f32 %v819, 1.442695
      %v910 = vpow.pop %v909
      %v911 = vmul.f32 %v820, 1.442695
      %v912 = vpow.pop %v911
      %v913 = vmul.f32 %v821, 1.442695
      %v914 = vpow.pop %v913
      %v915 = vmul.f32 %v822, 1.442695
      %v916 = vpow.pop %v915
      %v917 = vmul.f32 %v823, 1.442695
      %v918 = vpow.pop %v917
      %v919 = vmul.f32 %v824, 1.442695
      %v920 = vpow.pop %v919
      %v921 = vmul.f32 %v825, 1.442695
      %v922 = vpow.pop %v921
      %v923 = vmul.f32 %v826, 1.442695
      %v924 = vpow.pop %v923
      %v925 = vmul.f32 %v827, 1.442695
      %v926 = vpow.pop %v925
      %v927 = vmul.f32 %v828, 1.442695
      %v928 = vpow.pop %v927
      %v929 = vmul.f32 %v829, 1.442695
      %v930 = vpow.pop %v929
      %v931 = vmul.f32 %v830, 1.442695
      %v932 = vpow.pop %v931
      %v933 = vmul.f32 %v831, 1.442695
      %v934 = vpow.pop %v933
      %v935 = vmul.f32 %v832, 1.442695
      %v936 = vpow.pop %v935
      %v937 = vmul.f32 %v833, 1.442695
      %v938 = vpow.pop %v937
      %v939 = vmul.f32 %v834, 1.442695
      %v940 = vpow.pop %v939
      %v941 = vmul.f32 %v835, 1.442695
      %v942 = vpow.pop %v941
      %v943 = vmul.f32 %v836, 1.442695
      %v944 = vpow.pop %v943
      %v945 = vmul.f32 %v837, 1.442695
      %v946 = vpow.pop %v945
      %v947 = vmul.f32 %v838, 1.442695
      %v948 = vpow.pop %v947
      %v949 = vmul.f32 %v839, 1.442695
      %v950 = vpow.pop %v949
      %v951 = vmul.f32 %v840, 1.442695
      %v952 = vpow.pop %v951
      %v953 = vmul.f32 %v841, 1.442695
      %v954 = vpow.pop %v953
      %v955 = vmul.f32 %v842, 1.442695
      %v956 = vpow.pop %v955
      %v957 = vmul.f32 %v843, 1.442695
      %v958 = vpow.pop %v957
      %v959 = vmul.f32 %v844, 1.442695
      %v960 = vpow.pop %v959
      %v961 = vmul.f32 %v845, 1.442695
      %v962 = vpow.pop %v961
      %v963 = vmul.f32 %v846, 1.442695
      %v964 = vpow.pop %v963
      %v965 = vmul.f32 %v847, 1.442695
      %v966 = vpow.pop %v965
      %v967 = vmul.f32 %v848, 1.442695
      %v968 = vpow.pop %v967
      %v969 = vmul.f32 %v849, 1.442695
      %v970 = vpow.pop %v969
      %v971 = vmul.f32 %v850, 1.442695
      %v972 = vpow.pop %v971
      %v973 = vmul.f32 %v851, 1.442695
      %v974 = vpow.pop %v973
      %v975 = vmul.f32 %v852, 1.442695
      %v976 = vpow.pop %v975
      %v977 = vmul.f32 %v853, 1.442695
      %v978 = vpow.pop %v977
      %v979 = vmul.f32 %v854, 1.442695
      %v980 = vpow.pop %v979
      %v981 = vmul.f32 %v855, 1.442695
      %v982 = vpow.pop %v981
      %v983 = vmul.f32 %v856, 1.442695
      %v984 = vpow.pop %v983
      %v985 = vadd.f32 %v858, %v860
      %986 = vadd.xlane.f32.xlu0 %v985
      %v987 = vpop.xlane.xlu0 %986
      %v988 = vadd.f32 %v862, %v864
      %989 = vadd.xlane.f32.xlu0 %v988
      %v990 = vpop.xlane.xlu0 %989
      %v991 = vadd.f32 %v866, %v868
      %992 = vadd.xlane.f32.xlu0 %v991
      %v993 = vpop.xlane.xlu0 %992
      %v994 = vadd.f32 %v870, %v872
      %995 = vadd.xlane.f32.xlu0 %v994
      %v996 = vpop.xlane.xlu0 %995
      %v997 = vadd.f32 %v874, %v876
      %998 = vadd.xlane.f32.xlu0 %v997
      %v999 = vpop.xlane.xlu0 %998
      %v1000 = vadd.f32 %v878, %v880
      %1001 = vadd.xlane.f32.xlu0 %v1000
      %v1002 = vpop.xlane.xlu0 %1001
      %v1003 = vadd.f32 %v882, %v884
      %1004 = vadd.xlane.f32.xlu0 %v1003
      %v1005 = vpop.xlane.xlu0 %1004
      %v1006 = vadd.f32 %v886, %v888
      %1007 = vadd.xlane.f32.xlu0 %v1006
      %v1008 = vpop.xlane.xlu0 %1007
      %v1009 = vadd.f32 %v890, %v892
      %1010 = vadd.xlane.f32.xlu0 %v1009
      %v1011 = vpop.xlane.xlu0 %1010
      %v1012 = vadd.f32 %v894, %v896
      %1013 = vadd.xlane.f32.xlu0 %v1012
      %v1014 = vpop.xlane.xlu0 %1013
      %v1015 = vadd.f32 %v898, %v900
      %1016 = vadd.xlane.f32.xlu0 %v1015
      %v1017 = vpop.xlane.xlu0 %1016
      %v1018 = vadd.f32 %v902, %v904
      %1019 = vadd.xlane.f32.xlu0 %v1018
      %v1020 = vpop.xlane.xlu0 %1019
      %v1021 = vadd.f32 %v906, %v908
      %1022 = vadd.xlane.f32.xlu0 %v1021
      %v1023 = vpop.xlane.xlu0 %1022
      %v1024 = vadd.f32 %v910, %v912
      %1025 = vadd.xlane.f32.xlu0 %v1024
      %v1026 = vpop.xlane.xlu0 %1025
      %v1027 = vadd.f32 %v914, %v916
      %1028 = vadd.xlane.f32.xlu0 %v1027
      %v1029 = vpop.xlane.xlu0 %1028
      %v1030 = vadd.f32 %v918, %v920
      %1031 = vadd.xlane.f32.xlu0 %v1030
      %v1032 = vpop.xlane.xlu0 %1031
      %v1033 = vadd.f32 %v922, %v924
      %1034 = vadd.xlane.f32.xlu0 %v1033
      %v1035 = vpop.xlane.xlu0 %1034
      %v1036 = vadd.f32 %v926, %v928
      %1037 = vadd.xlane.f32.xlu0 %v1036
      %v1038 = vpop.xlane.xlu0 %1037
      %v1039 = vadd.f32 %v930, %v932
      %1040 = vadd.xlane.f32.xlu0 %v1039
      %v1041 = vpop.xlane.xlu0 %1040
      %v1042 = vadd.f32 %v934, %v936
      %1043 = vadd.xlane.f32.xlu0 %v1042
      %v1044 = vpop.xlane.xlu0 %1043
      %v1045 = vadd.f32 %v938, %v940
      %1046 = vadd.xlane.f32.xlu0 %v1045
      %v1047 = vpop.xlane.xlu0 %1046
      %v1048 = vadd.f32 %v942, %v944
      %1049 = vadd.xlane.f32.xlu0 %v1048
      %v1050 = vpop.xlane.xlu0 %1049
      %v1051 = vadd.f32 %v946, %v948
      %1052 = vadd.xlane.f32.xlu0 %v1051
      %v1053 = vpop.xlane.xlu0 %1052
      %v1054 = vadd.f32 %v950, %v952
      %1055 = vadd.xlane.f32.xlu0 %v1054
      %v1056 = vpop.xlane.xlu0 %1055
      %v1057 = vadd.f32 %v954, %v956
      %1058 = vadd.xlane.f32.xlu0 %v1057
      %v1059 = vpop.xlane.xlu0 %1058
      %v1060 = vadd.f32 %v958, %v960
      %1061 = vadd.xlane.f32.xlu0 %v1060
      %v1062 = vpop.xlane.xlu0 %1061
      %v1063 = vadd.f32 %v962, %v964
      %1064 = vadd.xlane.f32.xlu0 %v1063
      %v1065 = vpop.xlane.xlu0 %1064
      %v1066 = vadd.f32 %v966, %v968
      %1067 = vadd.xlane.f32.xlu0 %v1066
      %v1068 = vpop.xlane.xlu0 %1067
      %v1069 = vadd.f32 %v970, %v972
      %1070 = vadd.xlane.f32.xlu0 %v1069
      %v1071 = vpop.xlane.xlu0 %1070
      %v1072 = vadd.f32 %v974, %v976
      %1073 = vadd.xlane.f32.xlu0 %v1072
      %v1074 = vpop.xlane.xlu0 %1073
      %v1075 = vadd.f32 %v978, %v980
      %1076 = vadd.xlane.f32.xlu0 %v1075
      %v1077 = vpop.xlane.xlu0 %1076
      %v1078 = vadd.f32 %v982, %v984
      %1079 = vadd.xlane.f32.xlu0 %v1078
      %v1080 = vpop.xlane.xlu0 %1079
      %v1081 = vrcp.pop %v987
      %v1082 = vrcp.pop %v990
      %v1083 = vrcp.pop %v993
      %v1084 = vrcp.pop %v996
      %v1085 = vrcp.pop %v999
      %v1086 = vrcp.pop %v1002
      %v1087 = vrcp.pop %v1005
      %v1088 = vrcp.pop %v1008
      %v1089 = vrcp.pop %v1011
      %v1090 = vrcp.pop %v1014
      %v1091 = vrcp.pop %v1017
      %v1092 = vrcp.pop %v1020
      %v1093 = vrcp.pop %v1023
      %v1094 = vrcp.pop %v1026
      %v1095 = vrcp.pop %v1029
      %v1096 = vrcp.pop %v1032
      %v1097 = vrcp.pop %v1035
      %v1098 = vrcp.pop %v1038
      %v1099 = vrcp.pop %v1041
      %v1100 = vrcp.pop %v1044
      %v1101 = vrcp.pop %v1047
      %v1102 = vrcp.pop %v1050
      %v1103 = vrcp.pop %v1053
      %v1104 = vrcp.pop %v1056
      %v1105 = vrcp.pop %v1059
      %v1106 = vrcp.pop %v1062
      %v1107 = vrcp.pop %v1065
      %v1108 = vrcp.pop %v1068
      %v1109 = vrcp.pop %v1071
      %v1110 = vrcp.pop %v1074
      %v1111 = vrcp.pop %v1077
      %v1112 = vrcp.pop %v1080
      %v1113 = vmul.f32 %v858, %v1081
      %v1114 = vmul.f32 %v860, %v1081
      %v1115 = vmul.f32 %v862, %v1082
      %v1116 = vmul.f32 %v864, %v1082
      %v1117 = vmul.f32 %v866, %v1083
      %v1118 = vmul.f32 %v868, %v1083
      %v1119 = vmul.f32 %v870, %v1084
      %v1120 = vmul.f32 %v872, %v1084
      %v1121 = vmul.f32 %v874, %v1085
      %v1122 = vmul.f32 %v876, %v1085
      %v1123 = vmul.f32 %v878, %v1086
      %v1124 = vmul.f32 %v880, %v1086
      %v1125 = vmul.f32 %v882, %v1087
      %v1126 = vmul.f32 %v884, %v1087
      %v1127 = vmul.f32 %v886, %v1088
      %v1128 = vmul.f32 %v888, %v1088
      %v1129 = vmul.f32 %v890, %v1089
      %v1130 = vmul.f32 %v892, %v1089
      %v1131 = vmul.f32 %v894, %v1090
      %v1132 = vmul.f32 %v896, %v1090
      %v1133 = vmul.f32 %v898, %v1091
      %v1134 = vmul.f32 %v900, %v1091
      %v1135 = vmul.f32 %v902, %v1092
      %v1136 = vmul.f32 %v904, %v1092
      %v1137 = vmul.f32 %v906, %v1093
      %v1138 = vmul.f32 %v908, %v1093
      %v1139 = vmul.f32 %v910, %v1094
      %v1140 = vmul.f32 %v912, %v1094
      %v1141 = vmul.f32 %v914, %v1095
      %v1142 = vmul.f32 %v916, %v1095
      %v1143 = vmul.f32 %v918, %v1096
      %v1144 = vmul.f32 %v920, %v1096
      %v1145 = vmul.f32 %v922, %v1097
      %v1146 = vmul.f32 %v924, %v1097
      %v1147 = vmul.f32 %v926, %v1098
      %v1148 = vmul.f32 %v928, %v1098
      %v1149 = vmul.f32 %v930, %v1099
      %v1150 = vmul.f32 %v932, %v1099
      %v1151 = vmul.f32 %v934, %v1100
      %v1152 = vmul.f32 %v936, %v1100
      %v1153 = vmul.f32 %v938, %v1101
      %v1154 = vmul.f32 %v940, %v1101
      %v1155 = vmul.f32 %v942, %v1102
      %v1156 = vmul.f32 %v944, %v1102
      %v1157 = vmul.f32 %v946, %v1103
      %v1158 = vmul.f32 %v948, %v1103
      %v1159 = vmul.f32 %v950, %v1104
      %v1160 = vmul.f32 %v952, %v1104
      %v1161 = vmul.f32 %v954, %v1105
      %v1162 = vmul.f32 %v956, %v1105
      %v1163 = vmul.f32 %v958, %v1106
      %v1164 = vmul.f32 %v960, %v1106
      %v1165 = vmul.f32 %v962, %v1107
      %v1166 = vmul.f32 %v964, %v1107
      %v1167 = vmul.f32 %v966, %v1108
      %v1168 = vmul.f32 %v968, %v1108
      %v1169 = vmul.f32 %v970, %v1109
      %v1170 = vmul.f32 %v972, %v1109
      %v1171 = vmul.f32 %v974, %v1110
      %v1172 = vmul.f32 %v976, %v1110
      %v1173 = vmul.f32 %v978, %v1111
      %v1174 = vmul.f32 %v980, %v1111
      %v1175 = vmul.f32 %v982, %v1112
      %v1176 = vmul.f32 %v984, %v1112
      %v1177 = vpack.c.bf16 %v1115, %v1113
      %v1178 = vpack.c.bf16 %v1116, %v1114
      %v1179 = vpack.c.bf16 %v1119, %v1117
      %v1180 = vpack.c.bf16 %v1120, %v1118
      %v1181 = vpack.c.bf16 %v1123, %v1121
      %v1182 = vpack.c.bf16 %v1124, %v1122
      %v1183 = vpack.c.bf16 %v1127, %v1125
      %v1184 = vpack.c.bf16 %v1128, %v1126
      %v1185 = vpack.c.bf16 %v1131, %v1129
      %v1186 = vpack.c.bf16 %v1132, %v1130
      %v1187 = vpack.c.bf16 %v1135, %v1133
      %v1188 = vpack.c.bf16 %v1136, %v1134
      %v1189 = vpack.c.bf16 %v1139, %v1137
      %v1190 = vpack.c.bf16 %v1140, %v1138
      %v1191 = vpack.c.bf16 %v1143, %v1141
      %v1192 = vpack.c.bf16 %v1144, %v1142
      %v1193 = vpack.c.bf16 %v1147, %v1145
      %v1194 = vpack.c.bf16 %v1148, %v1146
      %v1195 = vpack.c.bf16 %v1151, %v1149
      %v1196 = vpack.c.bf16 %v1152, %v1150
      %v1197 = vpack.c.bf16 %v1155, %v1153
      %v1198 = vpack.c.bf16 %v1156, %v1154
      %v1199 = vpack.c.bf16 %v1159, %v1157
      %v1200 = vpack.c.bf16 %v1160, %v1158
      %v1201 = vpack.c.bf16 %v1163, %v1161
      %v1202 = vpack.c.bf16 %v1164, %v1162
      %v1203 = vpack.c.bf16 %v1167, %v1165
      %v1204 = vpack.c.bf16 %v1168, %v1166
      %v1205 = vpack.c.bf16 %v1171, %v1169
      %v1206 = vpack.c.bf16 %v1172, %v1170
      %v1207 = vpack.c.bf16 %v1175, %v1173
      %v1208 = vpack.c.bf16 %v1176, %v1174
      %1209 = vrot.lane.b32.xlu0 %v295, 112
      %v1210 = vpop.permute.xlu0 %1209
      %1211 = vrot.lane.b32.xlu0 %v296, 112
      %v1212 = vpop.permute.xlu0 %1211
      %1213 = vrot.lane.b32.xlu0 %v297, 112
      %v1214 = vpop.permute.xlu0 %1213
      %1215 = vrot.lane.b32.xlu0 %v298, 112
      %v1216 = vpop.permute.xlu0 %1215
      %1217 = vrot.lane.b32.xlu0 %v299, 112
      %v1218 = vpop.permute.xlu0 %1217
      %1219 = vrot.lane.b32.xlu0 %v300, 112
      %v1220 = vpop.permute.xlu0 %1219
      %1221 = vrot.lane.b32.xlu0 %v301, 112
      %v1222 = vpop.permute.xlu0 %1221
      %1223 = vrot.lane.b32.xlu0 %v302, 112
      %v1224 = vpop.permute.xlu0 %1223
      %1225 = vrot.lane.b32.xlu0 %v303, 112
      %v1226 = vpop.permute.xlu0 %1225
      %1227 = vrot.lane.b32.xlu0 %v304, 112
      %v1228 = vpop.permute.xlu0 %1227
      %1229 = vrot.lane.b32.xlu0 %v305, 112
      %v1230 = vpop.permute.xlu0 %1229
      %1231 = vrot.lane.b32.xlu0 %v306, 112
      %v1232 = vpop.permute.xlu0 %1231
      %1233 = vrot.lane.b32.xlu0 %v307, 112
      %v1234 = vpop.permute.xlu0 %1233
      %1235 = vrot.lane.b32.xlu0 %v308, 112
      %v1236 = vpop.permute.xlu0 %1235
      %1237 = vrot.lane.b32.xlu0 %v309, 112
      %v1238 = vpop.permute.xlu0 %1237
      %1239 = vrot.lane.b32.xlu0 %v310, 112
      %v1240 = vpop.permute.xlu0 %1239
      %1257 = vmatprep.subr.bf16.mxu0 0
      %1258 = vmatpush1.bf16.msra.mxu0 %v1210
      %1259 = vmatprep.subr.bf16.mxu0 0
      %1260 = vmatpush1.bf16.msra.mxu0 %v1212
      %1261 = vmatprep.subr.bf16.mxu0 0
      %1262 = vmatpush1.bf16.msra.mxu0 %v1214
      %1263 = vmatprep.subr.bf16.mxu0 0
      %1264 = vmatpush1.bf16.msra.mxu0 %v1216
      %1265 = vmatprep.subr.bf16.mxu0 0
      %1266 = vmatpush1.bf16.msra.mxu0 %v1218
      %1267 = vmatprep.subr.bf16.mxu0 0
      %1268 = vmatpush1.bf16.msra.mxu0 %v1220
      %1269 = vmatprep.subr.bf16.mxu0 0
      %1270 = vmatpush1.bf16.msra.mxu0 %v1222
      %1271 = vmatprep.subr.bf16.mxu0 0
      %1272 = vmatpush1.bf16.msra.mxu0 %v1224
      %1273 = vmatprep.subr.bf16.mxu0 0
      %1274 = vmatpush1.bf16.msra.mxu0 %v1226
      %1275 = vmatprep.subr.bf16.mxu0 0
      %1276 = vmatpush1.bf16.msra.mxu0 %v1228
      %1277 = vmatprep.subr.bf16.mxu0 0
      %1278 = vmatpush1.bf16.msra.mxu0 %v1230
      %1279 = vmatprep.subr.bf16.mxu0 0
      %1280 = vmatpush1.bf16.msra.mxu0 %v1232
      %1281 = vmatprep.subr.bf16.mxu0 0
      %1282 = vmatpush1.bf16.msra.mxu0 %v1234
      %1283 = vmatprep.subr.bf16.mxu0 0
      %1284 = vmatpush1.bf16.msra.mxu0 %v1236
      %1285 = vmatprep.subr.bf16.mxu0 0
      %1286 = vmatpush1.bf16.msra.mxu0 %v1238
      %1287 = vmatprep.subr.bf16.mxu0 0
      %1288 = vmatpush1.bf16.msra.mxu0 %v1240
      %1289 = vmatprep.mubr.bf16.mxu0 %v1178
      %1290 = vmatmul.mubr.bf16.gmra.mrb[0].mxu0 %v1177
      %v1291 = vpop.f32.mrb[0].mxu0
      %v1292 = vadd.f32 0.0, %v1291
      %v1293 = vpop.f32.mrb[0].mxu0
      %v1294 = vpop.f32.mrb[0].mxu0
      %v1295 = vadd.f32 0.0, %v1294
      %v1296 = vpop.f32.mrb[0].mxu0
      %1297 = vmatprep.mubr.bf16.mxu0 %v1180
      %1298 = vmatmul.mubr.bf16.gmra.mrb[0].mxu0 %v1179
      %v1299 = vpop.f32.mrb[0].mxu0
      %v1300 = vadd.f32 0.0, %v1299
      %v1301 = vpop.f32.mrb[0].mxu0
      %v1302 = vpop.f32.mrb[0].mxu0
      %v1303 = vadd.f32 0.0, %v1302
      %v1304 = vpop.f32.mrb[0].mxu0
      %1305 = vmatprep.mubr.bf16.mxu0 %v1182
      %1306 = vmatmul.mubr.bf16.gmra.mrb[0].mxu0 %v1181
      %v1307 = vpop.f32.mrb[0].mxu0
      %v1308 = vadd.f32 0.0, %v1307
      %v1309 = vpop.f32.mrb[0].mxu0
      %v1310 = vpop.f32.mrb[0].mxu0
      %v1311 = vadd.f32 0.0, %v1310
      %v1312 = vpop.f32.mrb[0].mxu0
      %1313 = vmatprep.mubr.bf16.mxu0 %v1184
      %1314 = vmatmul.mubr.bf16.gmra.mrb[0].mxu0 %v1183
      %v1315 = vpop.f32.mrb[0].mxu0
      %v1316 = vadd.f32 0.0, %v1315
      %v1317 = vpop.f32.mrb[0].mxu0
      %v1318 = vpop.f32.mrb[0].mxu0
      %v1319 = vadd.f32 0.0, %v1318
      %v1320 = vpop.f32.mrb[0].mxu0
      %1321 = vmatprep.mubr.bf16.mxu0 %v1186
      %1322 = vmatmul.mubr.bf16.gmra.mrb[0].mxu0 %v1185
      %v1323 = vpop.f32.mrb[0].mxu0
      %v1324 = vadd.f32 0.0, %v1323
      %v1325 = vpop.f32.mrb[0].mxu0
      %v1326 = vpop.f32.mrb[0].mxu0
      %v1327 = vadd.f32 0.0, %v1326
      %v1328 = vpop.f32.mrb[0].mxu0
      %1329 = vmatprep.mubr.bf16.mxu0 %v1188
      %1330 = vmatmul.mubr.bf16.gmra.mrb[0].mxu0 %v1187
      %v1331 = vpop.f32.mrb[0].mxu0
      %v1332 = vadd.f32 0.0, %v1331
      %v1333 = vpop.f32.mrb[0].mxu0
      %v1334 = vpop.f32.mrb[0].mxu0
      %v1335 = vadd.f32 0.0, %v1334
      %v1336 = vpop.f32.mrb[0].mxu0
      %1337 = vmatprep.mubr.bf16.mxu0 %v1190
      %1338 = vmatmul.mubr.bf16.gmra.mrb[0].mxu0 %v1189
      %v1339 = vpop.f32.mrb[0].mxu0
      %v1340 = vadd.f32 0.0, %v1339
      %v1341 = vpop.f32.mrb[0].mxu0
      %v1342 = vpop.f32.mrb[0].mxu0
      %v1343 = vadd.f32 0.0, %v1342
      %v1344 = vpop.f32.mrb[0].mxu0
      %1345 = vmatprep.mubr.bf16.mxu0 %v1192
      %1346 = vmatmul.mubr.bf16.gmra.mrb[0].mxu0 %v1191
      %v1347 = vpop.f32.mrb[0].mxu0
      %v1348 = vadd.f32 0.0, %v1347
      %v1349 = vpop.f32.mrb[0].mxu0
      %v1350 = vpop.f32.mrb[0].mxu0
      %v1351 = vadd.f32 0.0, %v1350
      %v1352 = vpop.f32.mrb[0].mxu0
      %1353 = vmatprep.mubr.bf16.mxu0 %v1194
      %1354 = vmatmul.mubr.bf16.gmra.mrb[0].mxu0 %v1193
      %v1355 = vpop.f32.mrb[0].mxu0
      %v1356 = vadd.f32 0.0, %v1355
      %v1357 = vpop.f32.mrb[0].mxu0
      %v1358 = vpop.f32.mrb[0].mxu0
      %v1359 = vadd.f32 0.0, %v1358
      %v1360 = vpop.f32.mrb[0].mxu0
      %1361 = vmatprep.mubr.bf16.mxu0 %v1196
      %1362 = vmatmul.mubr.bf16.gmra.mrb[0].mxu0 %v1195
      %v1363 = vpop.f32.mrb[0].mxu0
      %v1364 = vadd.f32 0.0, %v1363
      %v1365 = vpop.f32.mrb[0].mxu0
      %v1366 = vpop.f32.mrb[0].mxu0
      %v1367 = vadd.f32 0.0, %v1366
      %v1368 = vpop.f32.mrb[0].mxu0
      %1369 = vmatprep.mubr.bf16.mxu0 %v1198
      %1370 = vmatmul.mubr.bf16.gmra.mrb[0].mxu0 %v1197
      %v1371 = vpop.f32.mrb[0].mxu0
      %v1372 = vadd.f32 0.0, %v1371
      %v1373 = vpop.f32.mrb[0].mxu0
      %v1374 = vpop.f32.mrb[0].mxu0
      %v1375 = vadd.f32 0.0, %v1374
      %v1376 = vpop.f32.mrb[0].mxu0
      %1377 = vmatprep.mubr.bf16.mxu0 %v1200
      %1378 = vmatmul.mubr.bf16.gmra.mrb[0].mxu0 %v1199
      %v1379 = vpop.f32.mrb[0].mxu0
      %v1380 = vadd.f32 0.0, %v1379
      %v1381 = vpop.f32.mrb[0].mxu0
      %v1382 = vpop.f32.mrb[0].mxu0
      %v1383 = vadd.f32 0.0, %v1382
      %v1384 = vpop.f32.mrb[0].mxu0
      %1385 = vmatprep.mubr.bf16.mxu0 %v1202
      %1386 = vmatmul.mubr.bf16.gmra.mrb[0].mxu0 %v1201
      %v1387 = vpop.f32.mrb[0].mxu0
      %v1388 = vadd.f32 0.0, %v1387
      %v1389 = vpop.f32.mrb[0].mxu0
      %v1390 = vpop.f32.mrb[0].mxu0
      %v1391 = vadd.f32 0.0, %v1390
      %v1392 = vpop.f32.mrb[0].mxu0
      %1393 = vmatprep.mubr.bf16.mxu0 %v1204
      %1394 = vmatmul.mubr.bf16.gmra.mrb[0].mxu0 %v1203
      %v1395 = vpop.f32.mrb[0].mxu0
      %v1396 = vadd.f32 0.0, %v1395
      %v1397 = vpop.f32.mrb[0].mxu0
      %v1398 = vpop.f32.mrb[0].mxu0
      %v1399 = vadd.f32 0.0, %v1398
      %v1400 = vpop.f32.mrb[0].mxu0
      %1401 = vmatprep.mubr.bf16.mxu0 %v1206
      %1402 = vmatmul.mubr.bf16.gmra.mrb[0].mxu0 %v1205
      %v1403 = vpop.f32.mrb[0].mxu0
      %v1404 = vadd.f32 0.0, %v1403
      %v1405 = vpop.f32.mrb[0].mxu0
      %v1406 = vpop.f32.mrb[0].mxu0
      %v1407 = vadd.f32 0.0, %v1406
      %v1408 = vpop.f32.mrb[0].mxu0
      %1409 = vmatprep.mubr.bf16.mxu0 %v1208
      %1410 = vmatmul.mubr.bf16.gmra.mrb[0].mxu0 %v1207
      %v1411 = vpop.f32.mrb[0].mxu0
      %v1412 = vadd.f32 0.0, %v1411
      %v1413 = vpop.f32.mrb[0].mxu0
      %v1414 = vpop.f32.mrb[0].mxu0
      %v1415 = vadd.f32 0.0, %v1414
      %v1416 = vpop.f32.mrb[0].mxu0
      %1417 = vdwg.mxu0
      %v1418 = vld [vmem:[%s2] sm:$0xf]
      %v1419 = vpack.c.bf16 %v1295, %v1292
      %v1420 = vpack.c.bf16 %v1303, %v1300
      %v1421 = vpack.c.bf16 %v1311, %v1308
      %v1422 = vpack.c.bf16 %v1319, %v1316
      %v1423 = vpack.c.bf16 %v1327, %v1324
      %v1424 = vpack.c.bf16 %v1335, %v1332
      %v1425 = vpack.c.bf16 %v1343, %v1340
      %v1426 = vpack.c.bf16 %v1351, %v1348
      %v1427 = vpack.c.bf16 %v1359, %v1356
      %v1428 = vpack.c.bf16 %v1367, %v1364
      %v1429 = vpack.c.bf16 %v1375, %v1372
      %v1430 = vpack.c.bf16 %v1383, %v1380
      %v1431 = vpack.c.bf16 %v1391, %v1388
      %v1432 = vpack.c.bf16 %v1399, %v1396
      %v1433 = vpack.c.bf16 %v1407, %v1404
      %v1434 = vpack.c.bf16 %v1415, %v1412
      %1435 = vrot.lane.b32.xlu0 %v295, 124
      %v1436 = vpop.permute.xlu0 %1435
      %1437 = vrot.lane.b32.xlu0 %v296, 124
      %v1438 = vpop.permute.xlu0 %1437
      %1439 = vrot.lane.b32.xlu0 %v297, 124
      %v1440 = vpop.permute.xlu0 %1439
      %1441 = vrot.lane.b32.xlu0 %v298, 124
      %v1442 = vpop.permute.xlu0 %1441
      %1443 = vrot.lane.b32.xlu0 %v299, 124
      %v1444 = vpop.permute.xlu0 %1443
      %1445 = vrot.lane.b32.xlu0 %v300, 124
      %v1446 = vpop.permute.xlu0 %1445
      %1447 = vrot.lane.b32.xlu0 %v301, 124
      %v1448 = vpop.permute.xlu0 %1447
      %1449 = vrot.lane.b32.xlu0 %v302, 124
      %v1450 = vpop.permute.xlu0 %1449
      %1451 = vrot.lane.b32.xlu0 %v303, 124
      %v1452 = vpop.permute.xlu0 %1451
      %1453 = vrot.lane.b32.xlu0 %v304, 124
      %v1454 = vpop.permute.xlu0 %1453
      %1455 = vrot.lane.b32.xlu0 %v305, 124
      %v1456 = vpop.permute.xlu0 %1455
      %1457 = vrot.lane.b32.xlu0 %v306, 124
      %v1458 = vpop.permute.xlu0 %1457
      %1459 = vrot.lane.b32.xlu0 %v307, 124
      %v1460 = vpop.permute.xlu0 %1459
      %1461 = vrot.lane.b32.xlu0 %v308, 124
      %v1462 = vpop.permute.xlu0 %1461
      %1463 = vrot.lane.b32.xlu0 %v309, 124
      %v1464 = vpop.permute.xlu0 %1463
      %1465 = vrot.lane.b32.xlu0 %v310, 124
      %v1466 = vpop.permute.xlu0 %1465
      %1467 = vrot.lane.b32.xlu0 %v295, 116
      %v1468 = vpop.permute.xlu0 %1467
      %1469 = vrot.lane.b32.xlu0 %v296, 116
      %v1470 = vpop.permute.xlu0 %1469
      %1471 = vrot.lane.b32.xlu0 %v297, 116
      %v1472 = vpop.permute.xlu0 %1471
      %1473 = vrot.lane.b32.xlu0 %v298, 116
      %v1474 = vpop.permute.xlu0 %1473
      %1475 = vrot.lane.b32.xlu0 %v299, 116
      %v1476 = vpop.permute.xlu0 %1475
      %1477 = vrot.lane.b32.xlu0 %v300, 116
      %v1478 = vpop.permute.xlu0 %1477
      %1479 = vrot.lane.b32.xlu0 %v301, 116
      %v1480 = vpop.permute.xlu0 %1479
      %1481 = vrot.lane.b32.xlu0 %v302, 116
      %v1482 = vpop.permute.xlu0 %1481
      %1483 = vrot.lane.b32.xlu0 %v303, 116
      %v1484 = vpop.permute.xlu0 %1483
      %1485 = vrot.lane.b32.xlu0 %v304, 116
      %v1486 = vpop.permute.xlu0 %1485
      %1487 = vrot.lane.b32.xlu0 %v305, 116
      %v1488 = vpop.permute.xlu0 %1487
      %1489 = vrot.lane.b32.xlu0 %v306, 116
      %v1490 = vpop.permute.xlu0 %1489
      %1491 = vrot.lane.b32.xlu0 %v307, 116
      %v1492 = vpop.permute.xlu0 %1491
      %1493 = vrot.lane.b32.xlu0 %v308, 116
      %v1494 = vpop.permute.xlu0 %1493
      %1495 = vrot.lane.b32.xlu0 %v309, 116
      %v1496 = vpop.permute.xlu0 %1495
      %1497 = vrot.lane.b32.xlu0 %v310, 116
      %v1498 = vpop.permute.xlu0 %1497
      %v1500 = vsel %vm343, %v1436, 0
      %v1503 = vsel %vm343, %v1438, 0
      %v1506 = vsel %vm343, %v1440, 0
      %v1509 = vsel %vm343, %v1442, 0
      %v1512 = vsel %vm343, %v1444, 0
      %v1515 = vsel %vm343, %v1446, 0
      %v1518 = vsel %vm343, %v1448, 0
      %v1521 = vsel %vm343, %v1450, 0
      %v1524 = vsel %vm343, %v1452, 0
      %v1527 = vsel %vm343, %v1454, 0
      %v1530 = vsel %vm343, %v1456, 0
      %v1533 = vsel %vm343, %v1458, 0
      %v1536 = vsel %vm343, %v1460, 0
      %v1539 = vsel %vm343, %v1462, 0
      %v1542 = vsel %vm343, %v1464, 0
      %v1545 = vsel %vm343, %v1466, 0
      %v1548 = vsel %vm343, %v1468, 0
      %v1551 = vsel %vm343, %v1470, 0
      %v1554 = vsel %vm343, %v1472, 0
      %v1557 = vsel %vm343, %v1474, 0
      %v1560 = vsel %vm343, %v1476, 0
      %v1563 = vsel %vm343, %v1478, 0
      %v1566 = vsel %vm343, %v1480, 0
      %v1569 = vsel %vm343, %v1482, 0
      %v1572 = vsel %vm343, %v1484, 0
      %v1575 = vsel %vm343, %v1486, 0
      %v1578 = vsel %vm343, %v1488, 0
      %v1581 = vsel %vm343, %v1490, 0
      %v1584 = vsel %vm343, %v1492, 0
      %v1587 = vsel %vm343, %v1494, 0
      %v1590 = vsel %vm343, %v1496, 0
      %v1593 = vsel %vm343, %v1498, 0
      %1595 = vmatprep.subr.bf16.mxu0 0
      %1596 = vmatpush1.bf16.xpose.msra.mxu0 %v1548
      %1597 = vmatprep.subr.bf16.mxu0 0
      %1598 = vmatpush1.bf16.xpose.msra.mxu0 %v1551
      %1599 = vmatprep.subr.bf16.mxu0 0
      %1600 = vmatpush1.bf16.xpose.msra.mxu0 %v1554
      %1601 = vmatprep.subr.bf16.mxu0 0
      %1602 = vmatpush1.bf16.xpose.msra.mxu0 %v1557
      %1603 = vmatprep.subr.bf16.mxu0 0
      %1604 = vmatpush1.bf16.xpose.msra.mxu0 %v1560
      %1605 = vmatprep.subr.bf16.mxu0 0
      %1606 = vmatpush1.bf16.xpose.msra.mxu0 %v1563
      %1607 = vmatprep.subr.bf16.mxu0 0
      %1608 = vmatpush1.bf16.xpose.msra.mxu0 %v1566
      %1609 = vmatprep.subr.bf16.mxu0 0
      %1610 = vmatpush1.bf16.xpose.msra.mxu0 %v1569
      %1611 = vmatprep.subr.bf16.mxu0 0
      %1612 = vmatpush1.bf16.xpose.msra.mxu0 %v1572
      %1613 = vmatprep.subr.bf16.mxu0 0
      %1614 = vmatpush1.bf16.xpose.msra.mxu0 %v1575
      %1615 = vmatprep.subr.bf16.mxu0 0
      %1616 = vmatpush1.bf16.xpose.msra.mxu0 %v1578
      %1617 = vmatprep.subr.bf16.mxu0 0
      %1618 = vmatpush1.bf16.xpose.msra.mxu0 %v1581
      %1619 = vmatprep.subr.bf16.mxu0 0
      %1620 = vmatpush1.bf16.xpose.msra.mxu0 %v1584
      %1621 = vmatprep.subr.bf16.mxu0 0
      %1622 = vmatpush1.bf16.xpose.msra.mxu0 %v1587
      %1623 = vmatprep.subr.bf16.mxu0 0
      %1624 = vmatpush1.bf16.xpose.msra.mxu0 %v1590
      %1625 = vmatprep.subr.bf16.mxu0 0
      %1626 = vmatpush1.bf16.xpose.msra.mxu0 %v1593
      %1627 = vmatprep.mubr.bf16.mxu0 0
      %1628 = vmatmul.mubr.bf16.gmra.mrb[0].mxu0 %v1500
      %v1629 = vpop.f32.mrb[0].mxu0
      %v1630 = vadd.f32 0.0, %v1629
      %v1631 = vpop.f32.mrb[0].mxu0
      %v1632 = vadd.f32 0.0, %v1631
      %v1633 = vpop.f32.mrb[0].mxu0
      %v1634 = vadd.f32 0.0, %v1633
      %v1635 = vpop.f32.mrb[0].mxu0
      %v1636 = vadd.f32 0.0, %v1635
      %1637 = vmatprep.mubr.bf16.mxu0 0
      %1638 = vmatmul.mubr.bf16.gmra.mrb[0].mxu0 %v1503
      %v1639 = vpop.f32.mrb[0].mxu0
      %v1640 = vadd.f32 0.0, %v1639
      %v1641 = vpop.f32.mrb[0].mxu0
      %v1642 = vadd.f32 0.0, %v1641
      %v1643 = vpop.f32.mrb[0].mxu0
      %v1644 = vadd.f32 0.0, %v1643
      %v1645 = vpop.f32.mrb[0].mxu0
      %v1646 = vadd.f32 0.0, %v1645
      %1647 = vmatprep.mubr.bf16.mxu0 0
      %1648 = vmatmul.mubr.bf16.gmra.mrb[0].mxu0 %v1506
      %v1649 = vpop.f32.mrb[0].mxu0
      %v1650 = vadd.f32 0.0, %v1649
      %v1651 = vpop.f32.mrb[0].mxu0
      %v1652 = vadd.f32 0.0, %v1651
      %v1653 = vpop.f32.mrb[0].mxu0
      %v1654 = vadd.f32 0.0, %v1653
      %v1655 = vpop.f32.mrb[0].mxu0
      %v1656 = vadd.f32 0.0, %v1655
      %1657 = vmatprep.mubr.bf16.mxu0 0
      %1658 = vmatmul.mubr.bf16.gmra.mrb[0].mxu0 %v1509
      %v1659 = vpop.f32.mrb[0].mxu0
      %v1660 = vadd.f32 0.0, %v1659
      %v1661 = vpop.f32.mrb[0].mxu0
      %v1662 = vadd.f32 0.0, %v1661
      %v1663 = vpop.f32.mrb[0].mxu0
      %v1664 = vadd.f32 0.0, %v1663
      %v1665 = vpop.f32.mrb[0].mxu0
      %v1666 = vadd.f32 0.0, %v1665
      %1667 = vmatprep.mubr.bf16.mxu0 0
      %1668 = vmatmul.mubr.bf16.gmra.mrb[0].mxu0 %v1512
      %v1669 = vpop.f32.mrb[0].mxu0
      %v1670 = vadd.f32 0.0, %v1669
      %v1671 = vpop.f32.mrb[0].mxu0
      %v1672 = vadd.f32 0.0, %v1671
      %v1673 = vpop.f32.mrb[0].mxu0
      %v1674 = vadd.f32 0.0, %v1673
      %v1675 = vpop.f32.mrb[0].mxu0
      %v1676 = vadd.f32 0.0, %v1675
      %1677 = vmatprep.mubr.bf16.mxu0 0
      %1678 = vmatmul.mubr.bf16.gmra.mrb[0].mxu0 %v1515
      %v1679 = vpop.f32.mrb[0].mxu0
      %v1680 = vadd.f32 0.0, %v1679
      %v1681 = vpop.f32.mrb[0].mxu0
      %v1682 = vadd.f32 0.0, %v1681
      %v1683 = vpop.f32.mrb[0].mxu0
      %v1684 = vadd.f32 0.0, %v1683
      %v1685 = vpop.f32.mrb[0].mxu0
      %v1686 = vadd.f32 0.0, %v1685
      %1687 = vmatprep.mubr.bf16.mxu0 0
      %1688 = vmatmul.mubr.bf16.gmra.mrb[0].mxu0 %v1518
      %v1689 = vpop.f32.mrb[0].mxu0
      %v1690 = vadd.f32 0.0, %v1689
      %v1691 = vpop.f32.mrb[0].mxu0
      %v1692 = vadd.f32 0.0, %v1691
      %v1693 = vpop.f32.mrb[0].mxu0
      %v1694 = vadd.f32 0.0, %v1693
      %v1695 = vpop.f32.mrb[0].mxu0
      %v1696 = vadd.f32 0.0, %v1695
      %1697 = vmatprep.mubr.bf16.mxu0 0
      %1698 = vmatmul.mubr.bf16.gmra.mrb[0].mxu0 %v1521
      %v1699 = vpop.f32.mrb[0].mxu0
      %v1700 = vadd.f32 0.0, %v1699
      %v1701 = vpop.f32.mrb[0].mxu0
      %v1702 = vadd.f32 0.0, %v1701
      %v1703 = vpop.f32.mrb[0].mxu0
      %v1704 = vadd.f32 0.0, %v1703
      %v1705 = vpop.f32.mrb[0].mxu0
      %v1706 = vadd.f32 0.0, %v1705
      %1707 = vmatprep.mubr.bf16.mxu0 0
      %1708 = vmatmul.mubr.bf16.gmra.mrb[0].mxu0 %v1524
      %v1709 = vpop.f32.mrb[0].mxu0
      %v1710 = vadd.f32 0.0, %v1709
      %v1711 = vpop.f32.mrb[0].mxu0
      %v1712 = vadd.f32 0.0, %v1711
      %v1713 = vpop.f32.mrb[0].mxu0
      %v1714 = vadd.f32 0.0, %v1713
      %v1715 = vpop.f32.mrb[0].mxu0
      %v1716 = vadd.f32 0.0, %v1715
      %1717 = vmatprep.mubr.bf16.mxu0 0
      %1718 = vmatmul.mubr.bf16.gmra.mrb[0].mxu0 %v1527
      %v1719 = vpop.f32.mrb[0].mxu0
      %v1720 = vadd.f32 0.0, %v1719
      %v1721 = vpop.f32.mrb[0].mxu0
      %v1722 = vadd.f32 0.0, %v1721
      %v1723 = vpop.f32.mrb[0].mxu0
      %v1724 = vadd.f32 0.0, %v1723
      %v1725 = vpop.f32.mrb[0].mxu0
      %v1726 = vadd.f32 0.0, %v1725
      %1727 = vmatprep.mubr.bf16.mxu0 0
      %1728 = vmatmul.mubr.bf16.gmra.mrb[0].mxu0 %v1530
      %v1729 = vpop.f32.mrb[0].mxu0
      %v1730 = vadd.f32 0.0, %v1729
      %v1731 = vpop.f32.mrb[0].mxu0
      %v1732 = vadd.f32 0.0, %v1731
      %v1733 = vpop.f32.mrb[0].mxu0
      %v1734 = vadd.f32 0.0, %v1733
      %v1735 = vpop.f32.mrb[0].mxu0
      %v1736 = vadd.f32 0.0, %v1735
      %1737 = vmatprep.mubr.bf16.mxu0 0
      %1738 = vmatmul.mubr.bf16.gmra.mrb[0].mxu0 %v1533
      %v1739 = vpop.f32.mrb[0].mxu0
      %v1740 = vadd.f32 0.0, %v1739
      %v1741 = vpop.f32.mrb[0].mxu0
      %v1742 = vadd.f32 0.0, %v1741
      %v1743 = vpop.f32.mrb[0].mxu0
      %v1744 = vadd.f32 0.0, %v1743
      %v1745 = vpop.f32.mrb[0].mxu0
      %v1746 = vadd.f32 0.0, %v1745
      %1747 = vmatprep.mubr.bf16.mxu0 0
      %1748 = vmatmul.mubr.bf16.gmra.mrb[0].mxu0 %v1536
      %v1749 = vpop.f32.mrb[0].mxu0
      %v1750 = vadd.f32 0.0, %v1749
      %v1751 = vpop.f32.mrb[0].mxu0
      %v1752 = vadd.f32 0.0, %v1751
      %v1753 = vpop.f32.mrb[0].mxu0
      %v1754 = vadd.f32 0.0, %v1753
      %v1755 = vpop.f32.mrb[0].mxu0
      %v1756 = vadd.f32 0.0, %v1755
      %1757 = vmatprep.mubr.bf16.mxu0 0
      %1758 = vmatmul.mubr.bf16.gmra.mrb[0].mxu0 %v1539
      %v1759 = vpop.f32.mrb[0].mxu0
      %v1760 = vadd.f32 0.0, %v1759
      %v1761 = vpop.f32.mrb[0].mxu0
      %v1762 = vadd.f32 0.0, %v1761
      %v1763 = vpop.f32.mrb[0].mxu0
      %v1764 = vadd.f32 0.0, %v1763
      %v1765 = vpop.f32.mrb[0].mxu0
      %v1766 = vadd.f32 0.0, %v1765
      %1767 = vmatprep.mubr.bf16.mxu0 0
      %1768 = vmatmul.mubr.bf16.gmra.mrb[0].mxu0 %v1542
      %v1769 = vpop.f32.mrb[0].mxu0
      %v1770 = vadd.f32 0.0, %v1769
      %v1771 = vpop.f32.mrb[0].mxu0
      %v1772 = vadd.f32 0.0, %v1771
      %v1773 = vpop.f32.mrb[0].mxu0
      %v1774 = vadd.f32 0.0, %v1773
      %v1775 = vpop.f32.mrb[0].mxu0
      %v1776 = vadd.f32 0.0, %v1775
      %1777 = vmatprep.mubr.bf16.mxu0 0
      %1778 = vmatmul.mubr.bf16.gmra.mrb[0].mxu0 %v1545
      %v1779 = vpop.f32.mrb[0].mxu0
      %v1780 = vadd.f32 0.0, %v1779
      %v1781 = vpop.f32.mrb[0].mxu0
      %v1782 = vadd.f32 0.0, %v1781
      %v1783 = vpop.f32.mrb[0].mxu0
      %v1784 = vadd.f32 0.0, %v1783
      %v1785 = vpop.f32.mrb[0].mxu0
      %v1786 = vadd.f32 0.0, %v1785
      %1787 = vdwg.mxu0
      %v1788 = vmul.f32 %v1630, 0.5
      %v1789 = vmul.f32 %v1632, 0.5
      %v1790 = vmul.f32 %v1634, 0.5
      %v1791 = vmul.f32 %v1636, 0.5
      %v1792 = vmul.f32 %v1640, 0.5
      %v1793 = vmul.f32 %v1642, 0.5
      %v1794 = vmul.f32 %v1644, 0.5
      %v1795 = vmul.f32 %v1646, 0.5
      %v1796 = vmul.f32 %v1650, 0.5
      %v1797 = vmul.f32 %v1652, 0.5
      %v1798 = vmul.f32 %v1654, 0.5
      %v1799 = vmul.f32 %v1656, 0.5
      %v1800 = vmul.f32 %v1660, 0.5
      %v1801 = vmul.f32 %v1662, 0.5
      %v1802 = vmul.f32 %v1664, 0.5
      %v1803 = vmul.f32 %v1666, 0.5
      %v1804 = vmul.f32 %v1670, 0.5
      %v1805 = vmul.f32 %v1672, 0.5
      %v1806 = vmul.f32 %v1674, 0.5
      %v1807 = vmul.f32 %v1676, 0.5
      %v1808 = vmul.f32 %v1680, 0.5
      %v1809 = vmul.f32 %v1682, 0.5
      %v1810 = vmul.f32 %v1684, 0.5
      %v1811 = vmul.f32 %v1686, 0.5
      %v1812 = vmul.f32 %v1690, 0.5
      %v1813 = vmul.f32 %v1692, 0.5
      %v1814 = vmul.f32 %v1694, 0.5
      %v1815 = vmul.f32 %v1696, 0.5
      %v1816 = vmul.f32 %v1700, 0.5
      %v1817 = vmul.f32 %v1702, 0.5
      %v1818 = vmul.f32 %v1704, 0.5
      %v1819 = vmul.f32 %v1706, 0.5
      %v1820 = vmul.f32 %v1710, 0.5
      %v1821 = vmul.f32 %v1712, 0.5
      %v1822 = vmul.f32 %v1714, 0.5
      %v1823 = vmul.f32 %v1716, 0.5
      %v1824 = vmul.f32 %v1720, 0.5
      %v1825 = vmul.f32 %v1722, 0.5
      %v1826 = vmul.f32 %v1724, 0.5
      %v1827 = vmul.f32 %v1726, 0.5
      %v1828 = vmul.f32 %v1730, 0.5
      %v1829 = vmul.f32 %v1732, 0.5
      %v1830 = vmul.f32 %v1734, 0.5
      %v1831 = vmul.f32 %v1736, 0.5
      %v1832 = vmul.f32 %v1740, 0.5
      %v1833 = vmul.f32 %v1742, 0.5
      %v1834 = vmul.f32 %v1744, 0.5
      %v1835 = vmul.f32 %v1746, 0.5
      %v1836 = vmul.f32 %v1750, 0.5
      %v1837 = vmul.f32 %v1752, 0.5
      %v1838 = vmul.f32 %v1754, 0.5
      %v1839 = vmul.f32 %v1756, 0.5
      %v1840 = vmul.f32 %v1760, 0.5
      %v1841 = vmul.f32 %v1762, 0.5
      %v1842 = vmul.f32 %v1764, 0.5
      %v1843 = vmul.f32 %v1766, 0.5
      %v1844 = vmul.f32 %v1770, 0.5
      %v1845 = vmul.f32 %v1772, 0.5
      %v1846 = vmul.f32 %v1774, 0.5
      %v1847 = vmul.f32 %v1776, 0.5
      %v1848 = vmul.f32 %v1780, 0.5
      %v1849 = vmul.f32 %v1782, 0.5
      %v1850 = vmul.f32 %v1784, 0.5
      %v1851 = vmul.f32 %v1786, 0.5
      %v1852 = vmax.f32 %v1788, %v1789
      %1853 = vmax.xlane.f32.xlu0 %v1852
      %v1854 = vpop.xlane.xlu0 %1853
      %v1855 = vmax.f32 %v1790, %v1791
      %1856 = vmax.xlane.f32.xlu0 %v1855
      %v1857 = vpop.xlane.xlu0 %1856
      %v1858 = vmax.f32 %v1792, %v1793
      %1859 = vmax.xlane.f32.xlu0 %v1858
      %v1860 = vpop.xlane.xlu0 %1859
      %v1861 = vmax.f32 %v1794, %v1795
      %1862 = vmax.xlane.f32.xlu0 %v1861
      %v1863 = vpop.xlane.xlu0 %1862
      %v1864 = vmax.f32 %v1796, %v1797
      %1865 = vmax.xlane.f32.xlu0 %v1864
      %v1866 = vpop.xlane.xlu0 %1865
      %v1867 = vmax.f32 %v1798, %v1799
      %1868 = vmax.xlane.f32.xlu0 %v1867
      %v1869 = vpop.xlane.xlu0 %1868
      %v1870 = vmax.f32 %v1800, %v1801
      %1871 = vmax.xlane.f32.xlu0 %v1870
      %v1872 = vpop.xlane.xlu0 %1871
      %v1873 = vmax.f32 %v1802, %v1803
      %1874 = vmax.xlane.f32.xlu0 %v1873
      %v1875 = vpop.xlane.xlu0 %1874
      %v1876 = vmax.f32 %v1804, %v1805
      %1877 = vmax.xlane.f32.xlu0 %v1876
      %v1878 = vpop.xlane.xlu0 %1877
      %v1879 = vmax.f32 %v1806, %v1807
      %1880 = vmax.xlane.f32.xlu0 %v1879
      %v1881 = vpop.xlane.xlu0 %1880
      %v1882 = vmax.f32 %v1808, %v1809
      %1883 = vmax.xlane.f32.xlu0 %v1882
      %v1884 = vpop.xlane.xlu0 %1883
      %v1885 = vmax.f32 %v1810, %v1811
      %1886 = vmax.xlane.f32.xlu0 %v1885
      %v1887 = vpop.xlane.xlu0 %1886
      %v1888 = vmax.f32 %v1812, %v1813
      %1889 = vmax.xlane.f32.xlu0 %v1888
      %v1890 = vpop.xlane.xlu0 %1889
      %v1891 = vmax.f32 %v1814, %v1815
      %1892 = vmax.xlane.f32.xlu0 %v1891
      %v1893 = vpop.xlane.xlu0 %1892
      %v1894 = vmax.f32 %v1816, %v1817
      %1895 = vmax.xlane.f32.xlu0 %v1894
      %v1896 = vpop.xlane.xlu0 %1895
      %v1897 = vmax.f32 %v1818, %v1819
      %1898 = vmax.xlane.f32.xlu0 %v1897
      %v1899 = vpop.xlane.xlu0 %1898
      %v1900 = vmax.f32 %v1820, %v1821
      %1901 = vmax.xlane.f32.xlu0 %v1900
      %v1902 = vpop.xlane.xlu0 %1901
      %v1903 = vmax.f32 %v1822, %v1823
      %1904 = vmax.xlane.f32.xlu0 %v1903
      %v1905 = vpop.xlane.xlu0 %1904
      %v1906 = vmax.f32 %v1824, %v1825
      %1907 = vmax.xlane.f32.xlu0 %v1906
      %v1908 = vpop.xlane.xlu0 %1907
      %v1909 = vmax.f32 %v1826, %v1827
      %1910 = vmax.xlane.f32.xlu0 %v1909
      %v1911 = vpop.xlane.xlu0 %1910
      %v1912 = vmax.f32 %v1828, %v1829
      %1913 = vmax.xlane.f32.xlu0 %v1912
      %v1914 = vpop.xlane.xlu0 %1913
      %v1915 = vmax.f32 %v1830, %v1831
      %1916 = vmax.xlane.f32.xlu0 %v1915
      %v1917 = vpop.xlane.xlu0 %1916
      %v1918 = vmax.f32 %v1832, %v1833
      %1919 = vmax.xlane.f32.xlu0 %v1918
      %v1920 = vpop.xlane.xlu0 %1919
      %v1921 = vmax.f32 %v1834, %v1835
      %1922 = vmax.xlane.f32.xlu0 %v1921
      %v1923 = vpop.xlane.xlu0 %1922
      %v1924 = vmax.f32 %v1836, %v1837
      %1925 = vmax.xlane.f32.xlu0 %v1924
      %v1926 = vpop.xlane.xlu0 %1925
      %v1927 = vmax.f32 %v1838, %v1839
      %1928 = vmax.xlane.f32.xlu0 %v1927
      %v1929 = vpop.xlane.xlu0 %1928
      %v1930 = vmax.f32 %v1840, %v1841
      %1931 = vmax.xlane.f32.xlu0 %v1930
      %v1932 = vpop.xlane.xlu0 %1931
      %v1933 = vmax.f32 %v1842, %v1843
      %1934 = vmax.xlane.f32.xlu0 %v1933
      %v1935 = vpop.xlane.xlu0 %1934
      %v1936 = vmax.f32 %v1844, %v1845
      %1937 = vmax.xlane.f32.xlu0 %v1936
      %v1938 = vpop.xlane.xlu0 %1937
      %v1939 = vmax.f32 %v1846, %v1847
      %1940 = vmax.xlane.f32.xlu0 %v1939
      %v1941 = vpop.xlane.xlu0 %1940
      %v1942 = vmax.f32 %v1848, %v1849
      %1943 = vmax.xlane.f32.xlu0 %v1942
      %v1944 = vpop.xlane.xlu0 %1943
      %v1945 = vmax.f32 %v1850, %v1851
      %1946 = vmax.xlane.f32.xlu0 %v1945
      %v1947 = vpop.xlane.xlu0 %1946
      %v1948 = vsub.f32 %v1788, %v1854
      %v1949 = vsub.f32 %v1789, %v1854
      %v1950 = vsub.f32 %v1790, %v1857
      %v1951 = vsub.f32 %v1791, %v1857
      %v1952 = vsub.f32 %v1792, %v1860
      %v1953 = vsub.f32 %v1793, %v1860
      %v1954 = vsub.f32 %v1794, %v1863
      %v1955 = vsub.f32 %v1795, %v1863
      %v1956 = vsub.f32 %v1796, %v1866
      %v1957 = vsub.f32 %v1797, %v1866
      %v1958 = vsub.f32 %v1798, %v1869
      %v1959 = vsub.f32 %v1799, %v1869
      %v1960 = vsub.f32 %v1800, %v1872
      %v1961 = vsub.f32 %v1801, %v1872
      %v1962 = vsub.f32 %v1802, %v1875
      %v1963 = vsub.f32 %v1803, %v1875
      %v1964 = vsub.f32 %v1804, %v1878
      %v1965 = vsub.f32 %v1805, %v1878
      %v1966 = vsub.f32 %v1806, %v1881
      %v1967 = vsub.f32 %v1807, %v1881
      %v1968 = vsub.f32 %v1808, %v1884
      %v1969 = vsub.f32 %v1809, %v1884
      %v1970 = vsub.f32 %v1810, %v1887
      %v1971 = vsub.f32 %v1811, %v1887
      %v1972 = vsub.f32 %v1812, %v1890
      %v1973 = vsub.f32 %v1813, %v1890
      %v1974 = vsub.f32 %v1814, %v1893
      %v1975 = vsub.f32 %v1815, %v1893
      %v1976 = vsub.f32 %v1816, %v1896
      %v1977 = vsub.f32 %v1817, %v1896
      %v1978 = vsub.f32 %v1818, %v1899
      %v1979 = vsub.f32 %v1819, %v1899
      %v1980 = vsub.f32 %v1820, %v1902
      %v1981 = vsub.f32 %v1821, %v1902
      %v1982 = vsub.f32 %v1822, %v1905
      %v1983 = vsub.f32 %v1823, %v1905
      %v1984 = vsub.f32 %v1824, %v1908
      %v1985 = vsub.f32 %v1825, %v1908
      %v1986 = vsub.f32 %v1826, %v1911
      %v1987 = vsub.f32 %v1827, %v1911
      %v1988 = vsub.f32 %v1828, %v1914
      %v1989 = vsub.f32 %v1829, %v1914
      %v1990 = vsub.f32 %v1830, %v1917
      %v1991 = vsub.f32 %v1831, %v1917
      %v1992 = vsub.f32 %v1832, %v1920
      %v1993 = vsub.f32 %v1833, %v1920
      %v1994 = vsub.f32 %v1834, %v1923
      %v1995 = vsub.f32 %v1835, %v1923
      %v1996 = vsub.f32 %v1836, %v1926
      %v1997 = vsub.f32 %v1837, %v1926
      %v1998 = vsub.f32 %v1838, %v1929
      %v1999 = vsub.f32 %v1839, %v1929
      %v2000 = vsub.f32 %v1840, %v1932
      %v2001 = vsub.f32 %v1841, %v1932
      %v2002 = vsub.f32 %v1842, %v1935
      %v2003 = vsub.f32 %v1843, %v1935
      %v2004 = vsub.f32 %v1844, %v1938
      %v2005 = vsub.f32 %v1845, %v1938
      %v2006 = vsub.f32 %v1846, %v1941
      %v2007 = vsub.f32 %v1847, %v1941
      %v2008 = vsub.f32 %v1848, %v1944
      %v2009 = vsub.f32 %v1849, %v1944
      %v2010 = vsub.f32 %v1850, %v1947
      %v2011 = vsub.f32 %v1851, %v1947
      %v2012 = vmul.f32 %v1948, 1.442695
      %v2013 = vpow.pop %v2012
      %v2014 = vmul.f32 %v1949, 1.442695
      %v2015 = vpow.pop %v2014
      %v2016 = vmul.f32 %v1950, 1.442695
      %v2017 = vpow.pop %v2016
      %v2018 = vmul.f32 %v1951, 1.442695
      %v2019 = vpow.pop %v2018
      %v2020 = vmul.f32 %v1952, 1.442695
      %v2021 = vpow.pop %v2020
      %v2022 = vmul.f32 %v1953, 1.442695
      %v2023 = vpow.pop %v2022
      %v2024 = vmul.f32 %v1954, 1.442695
      %v2025 = vpow.pop %v2024
      %v2026 = vmul.f32 %v1955, 1.442695
      %v2027 = vpow.pop %v2026
      %v2028 = vmul.f32 %v1956, 1.442695
      %v2029 = vpow.pop %v2028
      %v2030 = vmul.f32 %v1957, 1.442695
      %v2031 = vpow.pop %v2030
      %v2032 = vmul.f32 %v1958, 1.442695
      %v2033 = vpow.pop %v2032
      %v2034 = vmul.f32 %v1959, 1.442695
      %v2035 = vpow.pop %v2034
      %v2036 = vmul.f32 %v1960, 1.442695
      %v2037 = vpow.pop %v2036
      %v2038 = vmul.f32 %v1961, 1.442695
      %v2039 = vpow.pop %v2038
      %v2040 = vmul.f32 %v1962, 1.442695
      %v2041 = vpow.pop %v2040
      %v2042 = vmul.f32 %v1963, 1.442695
      %v2043 = vpow.pop %v2042
      %v2044 = vmul.f32 %v1964, 1.442695
      %v2045 = vpow.pop %v2044
      %v2046 = vmul.f32 %v1965, 1.442695
      %v2047 = vpow.pop %v2046
      %v2048 = vmul.f32 %v1966, 1.442695
      %v2049 = vpow.pop %v2048
      %v2050 = vmul.f32 %v1967, 1.442695
      %v2051 = vpow.pop %v2050
      %v2052 = vmul.f32 %v1968, 1.442695
      %v2053 = vpow.pop %v2052
      %v2054 = vmul.f32 %v1969, 1.442695
      %v2055 = vpow.pop %v2054
      %v2056 = vmul.f32 %v1970, 1.442695
      %v2057 = vpow.pop %v2056
      %v2058 = vmul.f32 %v1971, 1.442695
      %v2059 = vpow.pop %v2058
      %v2060 = vmul.f32 %v1972, 1.442695
      %v2061 = vpow.pop %v2060
      %v2062 = vmul.f32 %v1973, 1.442695
      %v2063 = vpow.pop %v2062
      %v2064 = vmul.f32 %v1974, 1.442695
      %v2065 = vpow.pop %v2064
      %v2066 = vmul.f32 %v1975, 1.442695
      %v2067 = vpow.pop %v2066
      %v2068 = vmul.f32 %v1976, 1.442695
      %v2069 = vpow.pop %v2068
      %v2070 = vmul.f32 %v1977, 1.442695
      %v2071 = vpow.pop %v2070
      %v2072 = vmul.f32 %v1978, 1.442695
      %v2073 = vpow.pop %v2072
      %v2074 = vmul.f32 %v1979, 1.442695
      %v2075 = vpow.pop %v2074
      %v2076 = vmul.f32 %v1980, 1.442695
      %v2077 = vpow.pop %v2076
      %v2078 = vmul.f32 %v1981, 1.442695
      %v2079 = vpow.pop %v2078
      %v2080 = vmul.f32 %v1982, 1.442695
      %v2081 = vpow.pop %v2080
      %v2082 = vmul.f32 %v1983, 1.442695
      %v2083 = vpow.pop %v2082
      %v2084 = vmul.f32 %v1984, 1.442695
      %v2085 = vpow.pop %v2084
      %v2086 = vmul.f32 %v1985, 1.442695
      %v2087 = vpow.pop %v2086
      %v2088 = vmul.f32 %v1986, 1.442695
      %v2089 = vpow.pop %v2088
      %v2090 = vmul.f32 %v1987, 1.442695
      %v2091 = vpow.pop %v2090
      %v2092 = vmul.f32 %v1988, 1.442695
      %v2093 = vpow.pop %v2092
      %v2094 = vmul.f32 %v1989, 1.442695
      %v2095 = vpow.pop %v2094
      %v2096 = vmul.f32 %v1990, 1.442695
      %v2097 = vpow.pop %v2096
      %v2098 = vmul.f32 %v1991, 1.442695
      %v2099 = vpow.pop %v2098
      %v2100 = vmul.f32 %v1992, 1.442695
      %v2101 = vpow.pop %v2100
      %v2102 = vmul.f32 %v1993, 1.442695
      %v2103 = vpow.pop %v2102
      %v2104 = vmul.f32 %v1994, 1.442695
      %v2105 = vpow.pop %v2104
      %v2106 = vmul.f32 %v1995, 1.442695
      %v2107 = vpow.pop %v2106
      %v2108 = vmul.f32 %v1996, 1.442695
      %v2109 = vpow.pop %v2108
      %v2110 = vmul.f32 %v1997, 1.442695
      %v2111 = vpow.pop %v2110
      %v2112 = vmul.f32 %v1998, 1.442695
      %v2113 = vpow.pop %v2112
      %v2114 = vmul.f32 %v1999, 1.442695
      %v2115 = vpow.pop %v2114
      %v2116 = vmul.f32 %v2000, 1.442695
      %v2117 = vpow.pop %v2116
      %v2118 = vmul.f32 %v2001, 1.442695
      %v2119 = vpow.pop %v2118
      %v2120 = vmul.f32 %v2002, 1.442695
      %v2121 = vpow.pop %v2120
      %v2122 = vmul.f32 %v2003, 1.442695
      %v2123 = vpow.pop %v2122
      %v2124 = vmul.f32 %v2004, 1.442695
      %v2125 = vpow.pop %v2124
      %v2126 = vmul.f32 %v2005, 1.442695
      %v2127 = vpow.pop %v2126
      %v2128 = vmul.f32 %v2006, 1.442695
      %v2129 = vpow.pop %v2128
      %v2130 = vmul.f32 %v2007, 1.442695
      %v2131 = vpow.pop %v2130
      %v2132 = vmul.f32 %v2008, 1.442695
      %v2133 = vpow.pop %v2132
      %v2134 = vmul.f32 %v2009, 1.442695
      %v2135 = vpow.pop %v2134
      %v2136 = vmul.f32 %v2010, 1.442695
      %v2137 = vpow.pop %v2136
      %v2138 = vmul.f32 %v2011, 1.442695
      %v2139 = vpow.pop %v2138
      %v2140 = vadd.f32 %v2013, %v2015
      %2141 = vadd.xlane.f32.xlu0 %v2140
      %v2142 = vpop.xlane.xlu0 %2141
      %v2143 = vadd.f32 %v2017, %v2019
      %2144 = vadd.xlane.f32.xlu0 %v2143
      %v2145 = vpop.xlane.xlu0 %2144
      %v2146 = vadd.f32 %v2021, %v2023
      %2147 = vadd.xlane.f32.xlu0 %v2146
      %v2148 = vpop.xlane.xlu0 %2147
      %v2149 = vadd.f32 %v2025, %v2027
      %2150 = vadd.xlane.f32.xlu0 %v2149
      %v2151 = vpop.xlane.xlu0 %2150
      %v2152 = vadd.f32 %v2029, %v2031
      %2153 = vadd.xlane.f32.xlu0 %v2152
      %v2154 = vpop.xlane.xlu0 %2153
      %v2155 = vadd.f32 %v2033, %v2035
      %2156 = vadd.xlane.f32.xlu0 %v2155
      %v2157 = vpop.xlane.xlu0 %2156
      %v2158 = vadd.f32 %v2037, %v2039
      %2159 = vadd.xlane.f32.xlu0 %v2158
      %v2160 = vpop.xlane.xlu0 %2159
      %v2161 = vadd.f32 %v2041, %v2043
      %2162 = vadd.xlane.f32.xlu0 %v2161
      %v2163 = vpop.xlane.xlu0 %2162
      %v2164 = vadd.f32 %v2045, %v2047
      %2165 = vadd.xlane.f32.xlu0 %v2164
      %v2166 = vpop.xlane.xlu0 %2165
      %v2167 = vadd.f32 %v2049, %v2051
      %2168 = vadd.xlane.f32.xlu0 %v2167
      %v2169 = vpop.xlane.xlu0 %2168
      %v2170 = vadd.f32 %v2053, %v2055
      %2171 = vadd.xlane.f32.xlu0 %v2170
      %v2172 = vpop.xlane.xlu0 %2171
      %v2173 = vadd.f32 %v2057, %v2059
      %2174 = vadd.xlane.f32.xlu0 %v2173
      %v2175 = vpop.xlane.xlu0 %2174
      %v2176 = vadd.f32 %v2061, %v2063
      %2177 = vadd.xlane.f32.xlu0 %v2176
      %v2178 = vpop.xlane.xlu0 %2177
      %v2179 = vadd.f32 %v2065, %v2067
      %2180 = vadd.xlane.f32.xlu0 %v2179
      %v2181 = vpop.xlane.xlu0 %2180
      %v2182 = vadd.f32 %v2069, %v2071
      %2183 = vadd.xlane.f32.xlu0 %v2182
      %v2184 = vpop.xlane.xlu0 %2183
      %v2185 = vadd.f32 %v2073, %v2075
      %2186 = vadd.xlane.f32.xlu0 %v2185
      %v2187 = vpop.xlane.xlu0 %2186
      %v2188 = vadd.f32 %v2077, %v2079
      %2189 = vadd.xlane.f32.xlu0 %v2188
      %v2190 = vpop.xlane.xlu0 %2189
      %v2191 = vadd.f32 %v2081, %v2083
      %2192 = vadd.xlane.f32.xlu0 %v2191
      %v2193 = vpop.xlane.xlu0 %2192
      %v2194 = vadd.f32 %v2085, %v2087
      %2195 = vadd.xlane.f32.xlu0 %v2194
      %v2196 = vpop.xlane.xlu0 %2195
      %v2197 = vadd.f32 %v2089, %v2091
      %2198 = vadd.xlane.f32.xlu0 %v2197
      %v2199 = vpop.xlane.xlu0 %2198
      %v2200 = vadd.f32 %v2093, %v2095
      %2201 = vadd.xlane.f32.xlu0 %v2200
      %v2202 = vpop.xlane.xlu0 %2201
      %v2203 = vadd.f32 %v2097, %v2099
      %2204 = vadd.xlane.f32.xlu0 %v2203
      %v2205 = vpop.xlane.xlu0 %2204
      %v2206 = vadd.f32 %v2101, %v2103
      %2207 = vadd.xlane.f32.xlu0 %v2206
      %v2208 = vpop.xlane.xlu0 %2207
      %v2209 = vadd.f32 %v2105, %v2107
      %2210 = vadd.xlane.f32.xlu0 %v2209
      %v2211 = vpop.xlane.xlu0 %2210
      %v2212 = vadd.f32 %v2109, %v2111
      %2213 = vadd.xlane.f32.xlu0 %v2212
      %v2214 = vpop.xlane.xlu0 %2213
      %v2215 = vadd.f32 %v2113, %v2115
      %2216 = vadd.xlane.f32.xlu0 %v2215
      %v2217 = vpop.xlane.xlu0 %2216
      %v2218 = vadd.f32 %v2117, %v2119
      %2219 = vadd.xlane.f32.xlu0 %v2218
      %v2220 = vpop.xlane.xlu0 %2219
      %v2221 = vadd.f32 %v2121, %v2123
      %2222 = vadd.xlane.f32.xlu0 %v2221
      %v2223 = vpop.xlane.xlu0 %2222
      %v2224 = vadd.f32 %v2125, %v2127
      %2225 = vadd.xlane.f32.xlu0 %v2224
      %v2226 = vpop.xlane.xlu0 %2225
      %v2227 = vadd.f32 %v2129, %v2131
      %2228 = vadd.xlane.f32.xlu0 %v2227
      %v2229 = vpop.xlane.xlu0 %2228
      %v2230 = vadd.f32 %v2133, %v2135
      %2231 = vadd.xlane.f32.xlu0 %v2230
      %v2232 = vpop.xlane.xlu0 %2231
      %v2233 = vadd.f32 %v2137, %v2139
      %2234 = vadd.xlane.f32.xlu0 %v2233
      %v2235 = vpop.xlane.xlu0 %2234
      %v2236 = vrcp.pop %v2142
      %v2237 = vrcp.pop %v2145
      %v2238 = vrcp.pop %v2148
      %v2239 = vrcp.pop %v2151
      %v2240 = vrcp.pop %v2154
      %v2241 = vrcp.pop %v2157
      %v2242 = vrcp.pop %v2160
      %v2243 = vrcp.pop %v2163
      %v2244 = vrcp.pop %v2166
      %v2245 = vrcp.pop %v2169
      %v2246 = vrcp.pop %v2172
      %v2247 = vrcp.pop %v2175
      %v2248 = vrcp.pop %v2178
      %v2249 = vrcp.pop %v2181
      %v2250 = vrcp.pop %v2184
      %v2251 = vrcp.pop %v2187
      %v2252 = vrcp.pop %v2190
      %v2253 = vrcp.pop %v2193
      %v2254 = vrcp.pop %v2196
      %v2255 = vrcp.pop %v2199
      %v2256 = vrcp.pop %v2202
      %v2257 = vrcp.pop %v2205
      %v2258 = vrcp.pop %v2208
      %v2259 = vrcp.pop %v2211
      %v2260 = vrcp.pop %v2214
      %v2261 = vrcp.pop %v2217
      %v2262 = vrcp.pop %v2220
      %v2263 = vrcp.pop %v2223
      %v2264 = vrcp.pop %v2226
      %v2265 = vrcp.pop %v2229
      %v2266 = vrcp.pop %v2232
      %v2267 = vrcp.pop %v2235
      %v2268 = vmul.f32 %v2013, %v2236
      %v2269 = vmul.f32 %v2015, %v2236
      %v2270 = vmul.f32 %v2017, %v2237
      %v2271 = vmul.f32 %v2019, %v2237
      %v2272 = vmul.f32 %v2021, %v2238
      %v2273 = vmul.f32 %v2023, %v2238
      %v2274 = vmul.f32 %v2025, %v2239
      %v2275 = vmul.f32 %v2027, %v2239
      %v2276 = vmul.f32 %v2029, %v2240
      %v2277 = vmul.f32 %v2031, %v2240
      %v2278 = vmul.f32 %v2033, %v2241
      %v2279 = vmul.f32 %v2035, %v2241
      %v2280 = vmul.f32 %v2037, %v2242
      %v2281 = vmul.f32 %v2039, %v2242
      %v2282 = vmul.f32 %v2041, %v2243
      %v2283 = vmul.f32 %v2043, %v2243
      %v2284 = vmul.f32 %v2045, %v2244
      %v2285 = vmul.f32 %v2047, %v2244
      %v2286 = vmul.f32 %v2049, %v2245
      %v2287 = vmul.f32 %v2051, %v2245
      %v2288 = vmul.f32 %v2053, %v2246
      %v2289 = vmul.f32 %v2055, %v2246
      %v2290 = vmul.f32 %v2057, %v2247
      %v2291 = vmul.f32 %v2059, %v2247
      %v2292 = vmul.f32 %v2061, %v2248
      %v2293 = vmul.f32 %v2063, %v2248
      %v2294 = vmul.f32 %v2065, %v2249
      %v2295 = vmul.f32 %v2067, %v2249
      %v2296 = vmul.f32 %v2069, %v2250
      %v2297 = vmul.f32 %v2071, %v2250
      %v2298 = vmul.f32 %v2073, %v2251
      %v2299 = vmul.f32 %v2075, %v2251
      %v2300 = vmul.f32 %v2077, %v2252
      %v2301 = vmul.f32 %v2079, %v2252
      %v2302 = vmul.f32 %v2081, %v2253
      %v2303 = vmul.f32 %v2083, %v2253
      %v2304 = vmul.f32 %v2085, %v2254
      %v2305 = vmul.f32 %v2087, %v2254
      %v2306 = vmul.f32 %v2089, %v2255
      %v2307 = vmul.f32 %v2091, %v2255
      %v2308 = vmul.f32 %v2093, %v2256
      %v2309 = vmul.f32 %v2095, %v2256
      %v2310 = vmul.f32 %v2097, %v2257
      %v2311 = vmul.f32 %v2099, %v2257
      %v2312 = vmul.f32 %v2101, %v2258
      %v2313 = vmul.f32 %v2103, %v2258
      %v2314 = vmul.f32 %v2105, %v2259
      %v2315 = vmul.f32 %v2107, %v2259
      %v2316 = vmul.f32 %v2109, %v2260
      %v2317 = vmul.f32 %v2111, %v2260
      %v2318 = vmul.f32 %v2113, %v2261
      %v2319 = vmul.f32 %v2115, %v2261
      %v2320 = vmul.f32 %v2117, %v2262
      %v2321 = vmul.f32 %v2119, %v2262
      %v2322 = vmul.f32 %v2121, %v2263
      %v2323 = vmul.f32 %v2123, %v2263
      %v2324 = vmul.f32 %v2125, %v2264
      %v2325 = vmul.f32 %v2127, %v2264
      %v2326 = vmul.f32 %v2129, %v2265
      %v2327 = vmul.f32 %v2131, %v2265
      %v2328 = vmul.f32 %v2133, %v2266
      %v2329 = vmul.f32 %v2135, %v2266
      %v2330 = vmul.f32 %v2137, %v2267
      %v2331 = vmul.f32 %v2139, %v2267
      %v2332 = vpack.c.bf16 %v2270, %v2268
      %v2333 = vpack.c.bf16 %v2271, %v2269
      %v2334 = vpack.c.bf16 %v2274, %v2272
      %v2335 = vpack.c.bf16 %v2275, %v2273
      %v2336 = vpack.c.bf16 %v2278, %v2276
      %v2337 = vpack.c.bf16 %v2279, %v2277
      %v2338 = vpack.c.bf16 %v2282, %v2280
      %v2339 = vpack.c.bf16 %v2283, %v2281
      %v2340 = vpack.c.bf16 %v2286, %v2284
      %v2341 = vpack.c.bf16 %v2287, %v2285
      %v2342 = vpack.c.bf16 %v2290, %v2288
      %v2343 = vpack.c.bf16 %v2291, %v2289
      %v2344 = vpack.c.bf16 %v2294, %v2292
      %v2345 = vpack.c.bf16 %v2295, %v2293
      %v2346 = vpack.c.bf16 %v2298, %v2296
      %v2347 = vpack.c.bf16 %v2299, %v2297
      %v2348 = vpack.c.bf16 %v2302, %v2300
      %v2349 = vpack.c.bf16 %v2303, %v2301
      %v2350 = vpack.c.bf16 %v2306, %v2304
      %v2351 = vpack.c.bf16 %v2307, %v2305
      %v2352 = vpack.c.bf16 %v2310, %v2308
      %v2353 = vpack.c.bf16 %v2311, %v2309
      %v2354 = vpack.c.bf16 %v2314, %v2312
      %v2355 = vpack.c.bf16 %v2315, %v2313
      %v2356 = vpack.c.bf16 %v2318, %v2316
      %v2357 = vpack.c.bf16 %v2319, %v2317
      %v2358 = vpack.c.bf16 %v2322, %v2320
      %v2359 = vpack.c.bf16 %v2323, %v2321
      %v2360 = vpack.c.bf16 %v2326, %v2324
      %v2361 = vpack.c.bf16 %v2327, %v2325
      %v2362 = vpack.c.bf16 %v2330, %v2328
      %v2363 = vpack.c.bf16 %v2331, %v2329
      %2364 = vrot.lane.b32.xlu0 %v295, 108
      %v2365 = vpop.permute.xlu0 %2364
      %2366 = vrot.lane.b32.xlu0 %v296, 108
      %v2367 = vpop.permute.xlu0 %2366
      %2368 = vrot.lane.b32.xlu0 %v297, 108
      %v2369 = vpop.permute.xlu0 %2368
      %2370 = vrot.lane.b32.xlu0 %v298, 108
      %v2371 = vpop.permute.xlu0 %2370
      %2372 = vrot.lane.b32.xlu0 %v299, 108
      %v2373 = vpop.permute.xlu0 %2372
      %2374 = vrot.lane.b32.xlu0 %v300, 108
      %v2375 = vpop.permute.xlu0 %2374
      %2376 = vrot.lane.b32.xlu0 %v301, 108
      %v2377 = vpop.permute.xlu0 %2376
      %2378 = vrot.lane.b32.xlu0 %v302, 108
      %v2379 = vpop.permute.xlu0 %2378
      %2380 = vrot.lane.b32.xlu0 %v303, 108
      %v2381 = vpop.permute.xlu0 %2380
      %2382 = vrot.lane.b32.xlu0 %v304, 108
      %v2383 = vpop.permute.xlu0 %2382
      %2384 = vrot.lane.b32.xlu0 %v305, 108
      %v2385 = vpop.permute.xlu0 %2384
      %2386 = vrot.lane.b32.xlu0 %v306, 108
      %v2387 = vpop.permute.xlu0 %2386
      %2388 = vrot.lane.b32.xlu0 %v307, 108
      %v2389 = vpop.permute.xlu0 %2388
      %2390 = vrot.lane.b32.xlu0 %v308, 108
      %v2391 = vpop.permute.xlu0 %2390
      %2392 = vrot.lane.b32.xlu0 %v309, 108
      %v2393 = vpop.permute.xlu0 %2392
      %2394 = vrot.lane.b32.xlu0 %v310, 108
      %v2395 = vpop.permute.xlu0 %2394
      %2412 = vmatprep.subr.bf16.mxu0 0
      %2413 = vmatpush1.bf16.msra.mxu0 %v2365
      %2414 = vmatprep.subr.bf16.mxu0 0
      %2415 = vmatpush1.bf16.msra.mxu0 %v2367
      %2416 = vmatprep.subr.bf16.mxu0 0
      %2417 = vmatpush1.bf16.msra.mxu0 %v2369
      %2418 = vmatprep.subr.bf16.mxu0 0
      %2419 = vmatpush1.bf16.msra.mxu0 %v2371
      %2420 = vmatprep.subr.bf16.mxu0 0
      %2421 = vmatpush1.bf16.msra.mxu0 %v2373
      %2422 = vmatprep.subr.bf16.mxu0 0
      %2423 = vmatpush1.bf16.msra.mxu0 %v2375
      %2424 = vmatprep.subr.bf16.mxu0 0
      %2425 = vmatpush1.bf16.msra.mxu0 %v2377
      %2426 = vmatprep.subr.bf16.mxu0 0
      %2427 = vmatpush1.bf16.msra.mxu0 %v2379
      %2428 = vmatprep.subr.bf16.mxu0 0
      %2429 = vmatpush1.bf16.msra.mxu0 %v2381
      %2430 = vmatprep.subr.bf16.mxu0 0
      %2431 = vmatpush1.bf16.msra.mxu0 %v2383
      %2432 = vmatprep.subr.bf16.mxu0 0
      %2433 = vmatpush1.bf16.msra.mxu0 %v2385
      %2434 = vmatprep.subr.bf16.mxu0 0
      %2435 = vmatpush1.bf16.msra.mxu0 %v2387
      %2436 = vmatprep.subr.bf16.mxu0 0
      %2437 = vmatpush1.bf16.msra.mxu0 %v2389
      %2438 = vmatprep.subr.bf16.mxu0 0
      %2439 = vmatpush1.bf16.msra.mxu0 %v2391
      %2440 = vmatprep.subr.bf16.mxu0 0
      %2441 = vmatpush1.bf16.msra.mxu0 %v2393
      %2442 = vmatprep.subr.bf16.mxu0 0
      %2443 = vmatpush1.bf16.msra.mxu0 %v2395
      %2444 = vmatprep.mubr.bf16.mxu0 %v2333
      %2445 = vmatmul.mubr.bf16.gmra.mrb[0].mxu0 %v2332
      %v2446 = vpop.f32.mrb[0].mxu0
      %v2447 = vadd.f32 0.0, %v2446
      %v2448 = vpop.f32.mrb[0].mxu0
      %v2449 = vpop.f32.mrb[0].mxu0
      %v2450 = vadd.f32 0.0, %v2449
      %v2451 = vpop.f32.mrb[0].mxu0
      %2452 = vmatprep.mubr.bf16.mxu0 %v2335
      %2453 = vmatmul.mubr.bf16.gmra.mrb[0].mxu0 %v2334
      %v2454 = vpop.f32.mrb[0].mxu0
      %v2455 = vadd.f32 0.0, %v2454
      %v2456 = vpop.f32.mrb[0].mxu0
      %v2457 = vpop.f32.mrb[0].mxu0
      %v2458 = vadd.f32 0.0, %v2457
      %v2459 = vpop.f32.mrb[0].mxu0
      %2460 = vmatprep.mubr.bf16.mxu0 %v2337
      %2461 = vmatmul.mubr.bf16.gmra.mrb[0].mxu0 %v2336
      %v2462 = vpop.f32.mrb[0].mxu0
      %v2463 = vadd.f32 0.0, %v2462
      %v2464 = vpop.f32.mrb[0].mxu0
      %v2465 = vpop.f32.mrb[0].mxu0
      %v2466 = vadd.f32 0.0, %v2465
      %v2467 = vpop.f32.mrb[0].mxu0
      %2468 = vmatprep.mubr.bf16.mxu0 %v2339
      %2469 = vmatmul.mubr.bf16.gmra.mrb[0].mxu0 %v2338
      %v2470 = vpop.f32.mrb[0].mxu0
      %v2471 = vadd.f32 0.0, %v2470
      %v2472 = vpop.f32.mrb[0].mxu0
      %v2473 = vpop.f32.mrb[0].mxu0
      %v2474 = vadd.f32 0.0, %v2473
      %v2475 = vpop.f32.mrb[0].mxu0
      %2476 = vmatprep.mubr.bf16.mxu0 %v2341
      %2477 = vmatmul.mubr.bf16.gmra.mrb[0].mxu0 %v2340
      %v2478 = vpop.f32.mrb[0].mxu0
      %v2479 = vadd.f32 0.0, %v2478
      %v2480 = vpop.f32.mrb[0].mxu0
      %v2481 = vpop.f32.mrb[0].mxu0
      %v2482 = vadd.f32 0.0, %v2481
      %v2483 = vpop.f32.mrb[0].mxu0
      %2484 = vmatprep.mubr.bf16.mxu0 %v2343
      %2485 = vmatmul.mubr.bf16.gmra.mrb[0].mxu0 %v2342
      %v2486 = vpop.f32.mrb[0].mxu0
      %v2487 = vadd.f32 0.0, %v2486
      %v2488 = vpop.f32.mrb[0].mxu0
      %v2489 = vpop.f32.mrb[0].mxu0
      %v2490 = vadd.f32 0.0, %v2489
      %v2491 = vpop.f32.mrb[0].mxu0
      %2492 = vmatprep.mubr.bf16.mxu0 %v2345
      %2493 = vmatmul.mubr.bf16.gmra.mrb[0].mxu0 %v2344
      %v2494 = vpop.f32.mrb[0].mxu0
      %v2495 = vadd.f32 0.0, %v2494
      %v2496 = vpop.f32.mrb[0].mxu0
      %v2497 = vpop.f32.mrb[0].mxu0
      %v2498 = vadd.f32 0.0, %v2497
      %v2499 = vpop.f32.mrb[0].mxu0
      %2500 = vmatprep.mubr.bf16.mxu0 %v2347
      %2501 = vmatmul.mubr.bf16.gmra.mrb[0].mxu0 %v2346
      %v2502 = vpop.f32.mrb[0].mxu0
      %v2503 = vadd.f32 0.0, %v2502
      %v2504 = vpop.f32.mrb[0].mxu0
      %v2505 = vpop.f32.mrb[0].mxu0
      %v2506 = vadd.f32 0.0, %v2505
      %v2507 = vpop.f32.mrb[0].mxu0
      %2508 = vmatprep.mubr.bf16.mxu0 %v2349
      %2509 = vmatmul.mubr.bf16.gmra.mrb[0].mxu0 %v2348
      %v2510 = vpop.f32.mrb[0].mxu0
      %v2511 = vadd.f32 0.0, %v2510
      %v2512 = vpop.f32.mrb[0].mxu0
      %v2513 = vpop.f32.mrb[0].mxu0
      %v2514 = vadd.f32 0.0, %v2513
      %v2515 = vpop.f32.mrb[0].mxu0
      %2516 = vmatprep.mubr.bf16.mxu0 %v2351
      %2517 = vmatmul.mubr.bf16.gmra.mrb[0].mxu0 %v2350
      %v2518 = vpop.f32.mrb[0].mxu0
      %v2519 = vadd.f32 0.0, %v2518
      %v2520 = vpop.f32.mrb[0].mxu0
      %v2521 = vpop.f32.mrb[0].mxu0
      %v2522 = vadd.f32 0.0, %v2521
      %v2523 = vpop.f32.mrb[0].mxu0
      %2524 = vmatprep.mubr.bf16.mxu0 %v2353
      %2525 = vmatmul.mubr.bf16.gmra.mrb[0].mxu0 %v2352
      %v2526 = vpop.f32.mrb[0].mxu0
      %v2527 = vadd.f32 0.0, %v2526
      %v2528 = vpop.f32.mrb[0].mxu0
      %v2529 = vpop.f32.mrb[0].mxu0
      %v2530 = vadd.f32 0.0, %v2529
      %v2531 = vpop.f32.mrb[0].mxu0
      %2532 = vmatprep.mubr.bf16.mxu0 %v2355
      %2533 = vmatmul.mubr.bf16.gmra.mrb[0].mxu0 %v2354
      %v2534 = vpop.f32.mrb[0].mxu0
      %v2535 = vadd.f32 0.0, %v2534
      %v2536 = vpop.f32.mrb[0].mxu0
      %v2537 = vpop.f32.mrb[0].mxu0
      %v2538 = vadd.f32 0.0, %v2537
      %v2539 = vpop.f32.mrb[0].mxu0
      %2540 = vmatprep.mubr.bf16.mxu0 %v2357
      %2541 = vmatmul.mubr.bf16.gmra.mrb[0].mxu0 %v2356
      %v2542 = vpop.f32.mrb[0].mxu0
      %v2543 = vadd.f32 0.0, %v2542
      %v2544 = vpop.f32.mrb[0].mxu0
      %v2545 = vpop.f32.mrb[0].mxu0
      %v2546 = vadd.f32 0.0, %v2545
      %v2547 = vpop.f32.mrb[0].mxu0
      %2548 = vmatprep.mubr.bf16.mxu0 %v2359
      %2549 = vmatmul.mubr.bf16.gmra.mrb[0].mxu0 %v2358
      %v2550 = vpop.f32.mrb[0].mxu0
      %v2551 = vadd.f32 0.0, %v2550
      %v2552 = vpop.f32.mrb[0].mxu0
      %v2553 = vpop.f32.mrb[0].mxu0
      %v2554 = vadd.f32 0.0, %v2553
      %v2555 = vpop.f32.mrb[0].mxu0
      %2556 = vmatprep.mubr.bf16.mxu0 %v2361
      %2557 = vmatmul.mubr.bf16.gmra.mrb[0].mxu0 %v2360
      %v2558 = vpop.f32.mrb[0].mxu0
      %v2559 = vadd.f32 0.0, %v2558
      %v2560 = vpop.f32.mrb[0].mxu0
      %v2561 = vpop.f32.mrb[0].mxu0
      %v2562 = vadd.f32 0.0, %v2561
      %v2563 = vpop.f32.mrb[0].mxu0
      %2564 = vmatprep.mubr.bf16.mxu0 %v2363
      %2565 = vmatmul.mubr.bf16.gmra.mrb[0].mxu0 %v2362
      %v2566 = vpop.f32.mrb[0].mxu0
      %v2567 = vadd.f32 0.0, %v2566
      %v2568 = vpop.f32.mrb[0].mxu0
      %v2569 = vpop.f32.mrb[0].mxu0
      %v2570 = vadd.f32 0.0, %v2569
      %v2571 = vpop.f32.mrb[0].mxu0
      %2572 = vdwg.mxu0
      %v2573 = vpack.c.bf16 %v2450, %v2447
      %v2574 = vpack.c.bf16 %v2458, %v2455
      %v2575 = vpack.c.bf16 %v2466, %v2463
      %v2576 = vpack.c.bf16 %v2474, %v2471
      %v2577 = vpack.c.bf16 %v2482, %v2479
      %v2578 = vpack.c.bf16 %v2490, %v2487
      %v2579 = vpack.c.bf16 %v2498, %v2495
      %v2580 = vpack.c.bf16 %v2506, %v2503
      %v2581 = vpack.c.bf16 %v2514, %v2511
      %v2582 = vpack.c.bf16 %v2522, %v2519
      %v2583 = vpack.c.bf16 %v2530, %v2527
      %v2584 = vpack.c.bf16 %v2538, %v2535
      %v2585 = vpack.c.bf16 %v2546, %v2543
      %v2586 = vpack.c.bf16 %v2554, %v2551
      %v2587 = vpack.c.bf16 %v2562, %v2559
      %v2588 = vpack.c.bf16 %v2570, %v2567
      %v2590 = vunpack.c.l.b16 %v1418
      %v2591 = vpack.c.b16 %v2590, %v2590
      %2592 = vrot.lane.b32.xlu0 %v2591, 124
      %v2593 = vpop.permute.xlu0 %2592
      %v2595 = vsel %vm343, %v2593, 0
      %v2598 = vsel %vm343, %v2573, 0
      %v2601 = vsel %vm343, %v2574, 0
      %v2604 = vsel %vm343, %v2575, 0
      %v2607 = vsel %vm343, %v2576, 0
      %v2610 = vsel %vm343, %v2577, 0
      %v2613 = vsel %vm343, %v2578, 0
      %v2616 = vsel %vm343, %v2579, 0
      %v2619 = vsel %vm343, %v2580, 0
      %v2622 = vsel %vm343, %v2581, 0
      %v2625 = vsel %vm343, %v2582, 0
      %v2628 = vsel %vm343, %v2583, 0
      %v2631 = vsel %vm343, %v2584, 0
      %v2634 = vsel %vm343, %v2585, 0
      %v2637 = vsel %vm343, %v2586, 0
      %v2640 = vsel %vm343, %v2587, 0
      %v2643 = vsel %vm343, %v2588, 0
      %2645 = vmatprep.subr.bf16.mxu0 0
      %2646 = vmatpush1.bf16.xpose.msra.mxu0 %v2598
      %2647 = vmatprep.subr.bf16.mxu0 0
      %2648 = vmatpush1.bf16.xpose.msra.mxu0 %v2601
      %2649 = vmatprep.subr.bf16.mxu0 0
      %2650 = vmatpush1.bf16.xpose.msra.mxu0 %v2604
      %2651 = vmatprep.subr.bf16.mxu0 0
      %2652 = vmatpush1.bf16.xpose.msra.mxu0 %v2607
      %2653 = vmatprep.subr.bf16.mxu0 0
      %2654 = vmatpush1.bf16.xpose.msra.mxu0 %v2610
      %2655 = vmatprep.subr.bf16.mxu0 0
      %2656 = vmatpush1.bf16.xpose.msra.mxu0 %v2613
      %2657 = vmatprep.subr.bf16.mxu0 0
      %2658 = vmatpush1.bf16.xpose.msra.mxu0 %v2616
      %2659 = vmatprep.subr.bf16.mxu0 0
      %2660 = vmatpush1.bf16.xpose.msra.mxu0 %v2619
      %2661 = vmatprep.subr.bf16.mxu0 0
      %2662 = vmatpush1.bf16.xpose.msra.mxu0 %v2622
      %2663 = vmatprep.subr.bf16.mxu0 0
      %2664 = vmatpush1.bf16.xpose.msra.mxu0 %v2625
      %2665 = vmatprep.subr.bf16.mxu0 0
      %2666 = vmatpush1.bf16.xpose.msra.mxu0 %v2628
      %2667 = vmatprep.subr.bf16.mxu0 0
      %2668 = vmatpush1.bf16.xpose.msra.mxu0 %v2631
      %2669 = vmatprep.subr.bf16.mxu0 0
      %2670 = vmatpush1.bf16.xpose.msra.mxu0 %v2634
      %2671 = vmatprep.subr.bf16.mxu0 0
      %2672 = vmatpush1.bf16.xpose.msra.mxu0 %v2637
      %2673 = vmatprep.subr.bf16.mxu0 0
      %2674 = vmatpush1.bf16.xpose.msra.mxu0 %v2640
      %2675 = vmatprep.subr.bf16.mxu0 0
      %2676 = vmatpush1.bf16.xpose.msra.mxu0 %v2643
      %2677 = vmatprep.mubr.bf16.mxu0 0
      %2678 = vmatmul.mubr.bf16.gmra.mrb[0].mxu0 %v2595
      %v2679 = vpop.f32.mrb[0].mxu0
      %v2680 = vadd.f32 0.0, %v2679
      %v2681 = vpop.f32.mrb[0].mxu0
      %v2682 = vadd.f32 0.0, %v2681
      %v2683 = vpop.f32.mrb[0].mxu0
      %v2684 = vpop.f32.mrb[0].mxu0
      %2685 = vdwg.mxu0
      %v2687 = vsel %vm343, %v1418, 0
      %v2690 = vsel %vm343, %v1419, 0
      %v2693 = vsel %vm343, %v1420, 0
      %v2696 = vsel %vm343, %v1421, 0
      %v2699 = vsel %vm343, %v1422, 0
      %v2702 = vsel %vm343, %v1423, 0
      %v2705 = vsel %vm343, %v1424, 0
      %v2708 = vsel %vm343, %v1425, 0
      %v2711 = vsel %vm343, %v1426, 0
      %v2714 = vsel %vm343, %v1427, 0
      %v2717 = vsel %vm343, %v1428, 0
      %v2720 = vsel %vm343, %v1429, 0
      %v2723 = vsel %vm343, %v1430, 0
      %v2726 = vsel %vm343, %v1431, 0
      %v2729 = vsel %vm343, %v1432, 0
      %v2732 = vsel %vm343, %v1433, 0
      %v2735 = vsel %vm343, %v1434, 0
      %2737 = vmatprep.subr.bf16.mxu0 0
      %2738 = vmatpush1.bf16.xpose.msra.mxu0 %v2690
      %2739 = vmatprep.subr.bf16.mxu0 0
      %2740 = vmatpush1.bf16.xpose.msra.mxu0 %v2693
      %2741 = vmatprep.subr.bf16.mxu0 0
      %2742 = vmatpush1.bf16.xpose.msra.mxu0 %v2696
      %2743 = vmatprep.subr.bf16.mxu0 0
      %2744 = vmatpush1.bf16.xpose.msra.mxu0 %v2699
      %2745 = vmatprep.subr.bf16.mxu0 0
      %2746 = vmatpush1.bf16.xpose.msra.mxu0 %v2702
      %2747 = vmatprep.subr.bf16.mxu0 0
      %2748 = vmatpush1.bf16.xpose.msra.mxu0 %v2705
      %2749 = vmatprep.subr.bf16.mxu0 0
      %2750 = vmatpush1.bf16.xpose.msra.mxu0 %v2708
      %2751 = vmatprep.subr.bf16.mxu0 0
      %2752 = vmatpush1.bf16.xpose.msra.mxu0 %v2711
      %2753 = vmatprep.subr.bf16.mxu0 0
      %2754 = vmatpush1.bf16.xpose.msra.mxu0 %v2714
      %2755 = vmatprep.subr.bf16.mxu0 0
      %2756 = vmatpush1.bf16.xpose.msra.mxu0 %v2717
      %2757 = vmatprep.subr.bf16.mxu0 0
      %2758 = vmatpush1.bf16.xpose.msra.mxu0 %v2720
      %2759 = vmatprep.subr.bf16.mxu0 0
      %2760 = vmatpush1.bf16.xpose.msra.mxu0 %v2723
      %2761 = vmatprep.subr.bf16.mxu0 0
      %2762 = vmatpush1.bf16.xpose.msra.mxu0 %v2726
      %2763 = vmatprep.subr.bf16.mxu0 0
      %2764 = vmatpush1.bf16.xpose.msra.mxu0 %v2729
      %2765 = vmatprep.subr.bf16.mxu0 0
      %2766 = vmatpush1.bf16.xpose.msra.mxu0 %v2732
      %2767 = vmatprep.subr.bf16.mxu0 0
      %2768 = vmatpush1.bf16.xpose.msra.mxu0 %v2735
      %2769 = vmatprep.mubr.bf16.mxu0 0
      %2770 = vmatmul.mubr.bf16.gmra.mrb[0].mxu0 %v2687
      %v2771 = vpop.f32.mrb[0].mxu0
      %v2772 = vadd.f32 %v2680, %v2771
      %v2773 = vpop.f32.mrb[0].mxu0
      %v2774 = vadd.f32 %v2682, %v2773
      %v2775 = vpop.f32.mrb[0].mxu0
      %v2776 = vpop.f32.mrb[0].mxu0
      %2777 = vdwg.mxu0
      %v2778 = vld [vmem:[%s3] sm:$0xff]
      %2780 = vset.pattern.permute.xlu0 0
      %2781 = vperm.xlu0 %2780, %v2778
      %v2782 = vpop.permute.xlu0 %2781
      %v2784 = vadd.f32 %v2772, %v2782
      %v2785 = vadd.f32 %v2774, %v2782
      %2786 = vst [vmem:[%s197] sm:$0xff] %v2784
      %2787 = vst [vmem:[%s197 + $0x8] sm:$0xff] %v2785
      %p2788 = scmp.lt.s32.totalorder %s15, 1
      %s2789 = scalar_select %p2788, %s15, 1
      %s2790 = smul.addr %s2789, 2
      %s2791 = smul.addr %s2790, 8
      %s2792 = scalar_lea.vmem %s4, %s2791
      // Predicated region
      $region37: #{pos_attention_2d.3} parent=35 // pred_check
        %p2793 = pneg %p122
      $region38: #{pos_attention_2d.3} parent=35 // pred_check_branch
        %2795 = sbr.rel (%p2793) target = $region40
      $region39: #{pos_attention_2d.3} parent=35 // pred_region
        _
      $region40: #{pos_attention_2d.3} parent=35 // pred_fallthru
        _
    $region36: #{pos_attention_2d.3} parent=5 // pred_fallthru
      _
    %p2796 = scmp.le.s32.totalorder 2, %s10
    // Predicated region
    $region41: #{pos_attention_2d.3} parent=5 // pred_check
      %p2797 = pneg %p2796
    $region42: #{pos_attention_2d.3} parent=5 // pred_check_branch
      %2799 = sbr.rel (%p2797) target = $region44
    $region43: #{pos_attention_2d.3} parent=5 // pred_region
      %s2800 = ssub.s32 %s10, 2
      // Predicated region
      $region45: #{pos_attention_2d.3} parent=43 // pred_check
        %p2801 = pneg %p128
      $region46: #{pos_attention_2d.3} parent=43 // pred_check_branch
        %2803 = sbr.rel (%p2801) target = $region48
      $region47: #{pos_attention_2d.3} parent=43 // pred_region
        %p2804 = scmp.lt.s32.totalorder %s16, 1
        %s2805 = scalar_select %p2804, %s16, 1
        %s2806 = smul.addr %s2805, 2
        %s2807 = smul.addr %s2806, 8
        %s2808 = scalar_lea.vmem %s4, %s2807
      $region48: #{pos_attention_2d.3} parent=43 // pred_fallthru
        _
    $region44: #{pos_attention_2d.3} parent=5 // pred_fallthru
      _
  $region6: #{pos_attention_2d.3} parent=0 // loop_footer
    %s14 = sadd.s32 1, %s10
  $region7: #{pos_attention_2d.3} parent=0 // loop_footer_branch
    %9 = sbr.rel target = $region3
  $region8: #{pos_attention_2d.3} parent=0 // loop_exit
    _

</llo_original>
